<compile_context>
chip_gen: v7x
topology: tpu7x:2x2x1
jax: 0.10.0
libtpu: 0.0.40
codegen_flags: <defaults>
</compile_context>

<pallas_src>
import numpy as np

import jax
import jax.numpy as jnp
from jax.experimental import pallas as pl
from jax.experimental.pallas import tpu as pltpu


# --------------------------------------------------------------------------
# Parameter initialisation (PyTorch-default-style U(-1/sqrt(fan_in), ...)).
# --------------------------------------------------------------------------
def init_lenet_params(key):
    ks = jax.random.split(key, 10)

    def uni(k, shape, fan_in):
        bound = 1.0 / np.sqrt(fan_in)
        return jax.random.uniform(k, shape, jnp.float32, -bound, bound)

    w1 = uni(ks[0], (6, 1, 5, 5), 25)
    b1 = uni(ks[1], (6,), 25)
    w2 = uni(ks[2], (16, 6, 5, 5), 150)
    b2 = uni(ks[3], (16,), 150)
    w3 = uni(ks[4], (120, 256), 256)
    b3 = uni(ks[5], (120,), 256)
    w4 = uni(ks[6], (84, 120), 120)
    b4 = uni(ks[7], (84,), 120)
    w5 = uni(ks[8], (10, 84), 84)
    b5 = uni(ks[9], (10,), 84)
    return (w1, b1, w2, b2, w3, b3, w4, b4, w5, b5)


# --------------------------------------------------------------------------
# One-time host-side weight preparation (conv -> GEMM matrices, FC padding,
# flatten-permutation folded into fc1, bf16 cast for the MXU operands).
# --------------------------------------------------------------------------
def prepare_lenet_weights(params):
    w1, b1, w2, b2, w3, b3, w4, b4, w5, b5 = [
        np.asarray(p, np.float32) for p in params
    ]

    # conv1: Xcat1[b,i, di*28+t] = x[b, i+di, t]  (K = 5*28 = 140)
    # Output column layout: par*72 + co*12 + jp  with j = 2*jp + par, so the
    # width max-pool is max(y[:, :72], y[:, 72:]).
    w1big = np.zeros((5 * 28, 144), np.float32)
    b1big = np.zeros((1, 144), np.float32)
    for co in range(6):
        for jp in range(12):
            for par in range(2):
                col = par * 72 + co * 12 + jp
                j = 2 * jp + par
                b1big[0, col] = b1[co]
                for di in range(5):
                    for dj in range(5):
                        w1big[di * 28 + (j + dj), col] = w1[co, 0, di, dj]

    # conv2: Xcat2[b,i, (c*5+di)*12+t] = pooled1[b, i+di, c*12+t]  (K = 360)
    # Output column layout: par*64 + co*4 + jp with j = 2*jp + par.
    w2big = np.zeros((6 * 5 * 12, 128), np.float32)
    b2big = np.zeros((1, 128), np.float32)
    for co in range(16):
        for jp in range(4):
            for par in range(2):
                col = par * 64 + co * 4 + jp
                j = 2 * jp + par
                b2big[0, col] = b2[co]
                for c in range(6):
                    for di in range(5):
                        for dj in range(5):
                            w2big[(c * 5 + di) * 12 + (j + dj), col] = w2[co, c, di, dj]

    # fc1: kernel flatten order is ip*64 + co*4 + jp; PyTorch order is
    # co*16 + ip*4 + jp.  Fold the permutation into the weight; pad N 120->128.
    perm = np.zeros(256, np.int64)
    for ip in range(4):
        for co in range(16):
            for jp in range(4):
                perm[ip * 64 + co * 4 + jp] = co * 16 + ip * 4 + jp
    w3p = np.zeros((256, 128), np.float32)
    w3p[:, :120] = w3.T[perm, :]
    b3p = np.zeros((1, 128), np.float32)
    b3p[0, :120] = b3

    # fc2: pad K 120->128, N 84->128 (padded rows/cols are exactly zero).
    w4p = np.zeros((128, 128), np.float32)
    w4p[:120, :84] = w4.T
    b4p = np.zeros((1, 128), np.float32)
    b4p[0, :84] = b4

    # fc3: pad K 84->128.
    w5p = np.zeros((128, 10), np.float32)
    w5p[:84, :] = w5.T
    b5p = b5.reshape(1, 10).astype(np.float32)

    bf16 = jnp.bfloat16
    return (jnp.asarray(w1big, bf16), jnp.asarray(b1big),
            jnp.asarray(w2big, bf16), jnp.asarray(b2big),
            jnp.asarray(w3p, bf16), jnp.asarray(b3p),
            jnp.asarray(w4p, bf16), jnp.asarray(b4p),
            jnp.asarray(w5p, bf16), jnp.asarray(b5p))


# --------------------------------------------------------------------------
# Fused kernel: whole LeNet forward for one batch tile.
# --------------------------------------------------------------------------
def _lenet_kernel(x_ref, w1_ref, b1_ref, w2_ref, b2_ref, w3_ref, b3_ref,
                  w4_ref, b4_ref, w5_ref, b5_ref, out_ref, t1_ref, t2_ref):
    bt = x_ref.shape[0]
    x = x_ref[...]                                                # (BT, 28, 28) f32

    # ---- conv1 + ReLU: in-kernel im2col -> one MXU matmul (lane dim 144) ----
    xcat1 = jnp.concatenate([x[:, di:di + 24, :] for di in range(5)], axis=-1)
    xcat1 = xcat1.reshape(bt * 24, 5 * 28).astype(jnp.bfloat16)   # (BT*24, 140)
    y1 = jnp.dot(xcat1, w1_ref[...], preferred_element_type=jnp.float32)
    y1 = jnp.maximum(y1 + b1_ref[...], 0.0)                       # (BT*24, 144)

    # ---- pool1: width = max of the two column halves, height = stride-2 rows
    p1w = jnp.maximum(y1[:, 0:72], y1[:, 72:144])                 # (BT*24, 72)
    t1_ref[...] = p1w.reshape(bt, 24, 72)
    p1 = jnp.maximum(t1_ref[:, pl.ds(0, 12, 2), :],
                     t1_ref[:, pl.ds(1, 12, 2), :])               # (BT, 12, 72)

    # ---- conv2 + ReLU (lane dim 128) ----
    xcat2 = jnp.concatenate(
        [p1[:, di:di + 8, c * 12:(c + 1) * 12]
         for c in range(6) for di in range(5)], axis=-1)          # (BT, 8, 360)
    xcat2 = xcat2.reshape(bt * 8, 360).astype(jnp.bfloat16)
    y2 = jnp.dot(xcat2, w2_ref[...], preferred_element_type=jnp.float32)
    y2 = jnp.maximum(y2 + b2_ref[...], 0.0)                       # (BT*8, 128)

    # ---- pool2 ----
    p2w = jnp.maximum(y2[:, 0:64], y2[:, 64:128])                 # (BT*8, 64)
    t2_ref[...] = p2w.reshape(bt, 8, 64)
    p2 = jnp.maximum(t2_ref[:, pl.ds(0, 4, 2), :],
                     t2_ref[:, pl.ds(1, 4, 2), :])                # (BT, 4, 64)

    # ---- flatten (PyTorch order folded into the fc1 weight permutation) ----
    q = jnp.concatenate([p2[:, i, :] for i in range(4)], axis=-1)  # (BT, 256)

    # ---- fc1 / fc2 / fc3, each with f32 accumulate + f32 bias/ReLU epilogue --
    h1 = jnp.maximum(
        jnp.dot(q.astype(jnp.bfloat16), w3_ref[...],
                preferred_element_type=jnp.float32) + b3_ref[...], 0.0)
    h2 = jnp.maximum(
        jnp.dot(h1.astype(jnp.bfloat16), w4_ref[...],
                preferred_element_type=jnp.float32) + b4_ref[...], 0.0)
    h3 = jnp.maximum(
        jnp.dot(h2.astype(jnp.bfloat16), w5_ref[...],
                preferred_element_type=jnp.float32) + b5_ref[...], 0.0)
    out_ref[...] = h3                                             # (BT, 10)


def _full_spec(shape):
    return pl.BlockSpec(shape, lambda i: (0,) * len(shape))


# --------------------------------------------------------------------------
# Wrapper: pad batch, set up grid / BlockSpecs, run the fused kernel.
# --------------------------------------------------------------------------
def lenet_forward(x, prepped, *, batch_tile=8):
    (w1big, b1big, w2big, b2big, w3p, b3p, w4p, b4p, w5p, b5p) = prepped
    b = x.shape[0]
    assert x.shape[1:] == (1, 28, 28), x.shape

    xs = x.reshape(b, 28, 28).astype(jnp.float32)
    bp = ((b + batch_tile - 1) // batch_tile) * batch_tile
    if bp != b:
        xs = jnp.pad(xs, ((0, bp - b), (0, 0), (0, 0)))

    out = pl.pallas_call(
        _lenet_kernel,
        out_shape=jax.ShapeDtypeStruct((bp, 10), jnp.float32),
        grid=(bp // batch_tile,),
        in_specs=[
            pl.BlockSpec((batch_tile, 28, 28), lambda i: (i, 0, 0)),
            _full_spec((140, 144)), _full_spec((1, 144)),   # conv1
            _full_spec((360, 128)), _full_spec((1, 128)),   # conv2
            _full_spec((256, 128)), _full_spec((1, 128)),   # fc1
            _full_spec((128, 128)), _full_spec((1, 128)),   # fc2
            _full_spec((128, 10)),  _full_spec((1, 10)),    # fc3
        ],
        out_specs=pl.BlockSpec((batch_tile, 10), lambda i: (i, 0)),
        scratch_shapes=[
            pltpu.VMEM((batch_tile, 24, 72), jnp.float32),  # pool1 staging
            pltpu.VMEM((batch_tile, 8, 64), jnp.float32),   # pool2 staging
        ],
        compiler_params=pltpu.CompilerParams(
            dimension_semantics=("parallel",)),              # v7x: 2 TCs split batch
    )(xs, w1big, b1big, w2big, b2big, w3p, b3p, w4p, b4p, w5p, b5p)
    return out[:b]


# --------------------------------------------------------------------------
# Pure-JAX reference (mirrors the PyTorch forward) for a correctness check.
# --------------------------------------------------------------------------
def lenet_reference(x, params):
    w1, b1, w2, b2, w3, b3, w4, b4, w5, b5 = params
    dn = ('NCHW', 'OIHW', 'NCHW')

    def maxpool2x2(y):
        n, c, h, w = y.shape
        return y.reshape(n, c, h // 2, 2, w // 2, 2).max(axis=(3, 5))

    y = jax.lax.conv_general_dilated(x, w1, (1, 1), 'VALID', dimension_numbers=dn)
    y = jax.nn.relu(y + b1[None, :, None, None])
    y = maxpool2x2(y)
    y = jax.lax.conv_general_dilated(y, w2, (1, 1), 'VALID', dimension_numbers=dn)
    y = jax.nn.relu(y + b2[None, :, None, None])
    y = maxpool2x2(y)
    y = y.reshape(y.shape[0], -1)
    y = jax.nn.relu(y @ w3.T + b3)
    y = jax.nn.relu(y @ w4.T + b4)
    y = jax.nn.relu(y @ w5.T + b5)
    return y


if __name__ == "__main__":
    key = jax.random.PRNGKey(0)
    kx, kp = jax.random.split(key)
    params = init_lenet_params(kp)
    # Shapes implied by the module: fc1 expects 256 = 16*4*4 -> 1x28x28 input.
    x = jax.random.normal(kx, (2, 1, 28, 28), dtype=jnp.float32)

    prepped = prepare_lenet_weights(params)
    out = lenet_forward(x, prepped)
    out = jax.block_until_ready(out)

    ref = lenet_reference(x, params)
    err = float(jnp.max(jnp.abs(out - ref)))
    if not np.isfinite(err) or err > 5e-2:   # generous bound for bf16 MXU path
        raise AssertionError(f"Pallas LeNet mismatch vs reference: max|err|={err}")
    print("KERNEL_OK")
</pallas_src>

<mosaic_0001>
module attributes {stable_mosaic.version = 11 : i64} {
  func.func @_lenet_kernel(%arg0: i32, %arg1: memref<8x28x28xf32, #tpu.memory_space<vmem>>, %arg2: memref<140x144xbf16, #tpu.memory_space<vmem>>, %arg3: memref<1x144xf32, #tpu.memory_space<vmem>>, %arg4: memref<360x128xbf16, #tpu.memory_space<vmem>>, %arg5: memref<1x128xf32, #tpu.memory_space<vmem>>, %arg6: memref<256x128xbf16, #tpu.memory_space<vmem>>, %arg7: memref<1x128xf32, #tpu.memory_space<vmem>>, %arg8: memref<128x128xbf16, #tpu.memory_space<vmem>>, %arg9: memref<1x128xf32, #tpu.memory_space<vmem>>, %arg10: memref<128x10xbf16, #tpu.memory_space<vmem>>, %arg11: memref<1x10xf32, #tpu.memory_space<vmem>>, %arg12: memref<8x10xf32, #tpu.memory_space<vmem>>, %arg13: memref<8x24x72xf32, #tpu.memory_space<vmem>>, %arg14: memref<8x8x64xf32, #tpu.memory_space<vmem>>) attributes {dimension_semantics = [#tpu.dimension_semantics<parallel>], iteration_bounds = array<i64: 1>, scalar_prefetch = 0 : i64, scratch_operands = 2 : i64, tpu.core_type = #tpu.core_type<tc>, window_params = [{transform_indices = @transform_0, window_bounds = array<i64: 8, 28, 28>}, {pipeline_mode = #tpu.pipeline_mode<synchronous>, transform_indices = @transform_1, window_bounds = array<i64: 140, 144>}, {pipeline_mode = #tpu.pipeline_mode<synchronous>, transform_indices = @transform_2, window_bounds = array<i64: 1, 144>}, {pipeline_mode = #tpu.pipeline_mode<synchronous>, transform_indices = @transform_3, window_bounds = array<i64: 360, 128>}, {pipeline_mode = #tpu.pipeline_mode<synchronous>, transform_indices = @transform_4, window_bounds = array<i64: 1, 128>}, {pipeline_mode = #tpu.pipeline_mode<synchronous>, transform_indices = @transform_5, window_bounds = array<i64: 256, 128>}, {pipeline_mode = #tpu.pipeline_mode<synchronous>, transform_indices = @transform_6, window_bounds = array<i64: 1, 128>}, {pipeline_mode = #tpu.pipeline_mode<synchronous>, transform_indices = @transform_7, window_bounds = array<i64: 128, 128>}, {pipeline_mode = #tpu.pipeline_mode<synchronous>, transform_indices = @transform_8, window_bounds = array<i64: 1, 128>}, {pipeline_mode = #tpu.pipeline_mode<synchronous>, transform_indices = @transform_9, window_bounds = array<i64: 128, 10>}, {pipeline_mode = #tpu.pipeline_mode<synchronous>, transform_indices = @transform_10, window_bounds = array<i64: 1, 10>}, {transform_indices = @transform_11, window_bounds = array<i64: 8, 10>}]} {
    %c0 = arith.constant 0 : index
    %c0_0 = arith.constant 0 : index
    %c0_1 = arith.constant 0 : index
    %0 = vector.load %arg1[%c0, %c0_0, %c0_1] : memref<8x28x28xf32, #tpu.memory_space<vmem>>, vector<8x28x28xf32>
    %1 = vector.extract_strided_slice %0 {offsets = [0, 0, 0], sizes = [8, 24, 28], strides = [1, 1, 1]} : vector<8x28x28xf32> to vector<8x24x28xf32>
    %2 = vector.extract_strided_slice %0 {offsets = [0, 1, 0], sizes = [8, 24, 28], strides = [1, 1, 1]} : vector<8x28x28xf32> to vector<8x24x28xf32>
    %3 = vector.extract_strided_slice %0 {offsets = [0, 2, 0], sizes = [8, 24, 28], strides = [1, 1, 1]} : vector<8x28x28xf32> to vector<8x24x28xf32>
    %4 = vector.extract_strided_slice %0 {offsets = [0, 3, 0], sizes = [8, 24, 28], strides = [1, 1, 1]} : vector<8x28x28xf32> to vector<8x24x28xf32>
    %5 = vector.extract_strided_slice %0 {offsets = [0, 4, 0], sizes = [8, 24, 28], strides = [1, 1, 1]} : vector<8x28x28xf32> to vector<8x24x28xf32>
    %6 = tpu.concatenate %1, %2, %3, %4, %5 in 2 : vector<8x24x28xf32>, vector<8x24x28xf32>, vector<8x24x28xf32>, vector<8x24x28xf32>, vector<8x24x28xf32> -> vector<8x24x140xf32>
    %7 = vector.shape_cast %6 : vector<8x24x140xf32> to vector<192x140xf32>
    %8 = arith.truncf %7 : vector<192x140xf32> to vector<192x140xbf16>
    %c0_2 = arith.constant 0 : index
    %c0_3 = arith.constant 0 : index
    %9 = vector.load %arg2[%c0_2, %c0_3] : memref<140x144xbf16, #tpu.memory_space<vmem>>, vector<140x144xbf16>
    %cst = arith.constant dense<0.000000e+00> : vector<192x144xf32>
    %10 = tpu.matmul %8, %9, %cst {dimension_numbers = #tpu.dot_dimension_numbers<[1], [0], [0], [1], [0, 0, 1, 1], [], []>} : vector<192x140xbf16>, vector<140x144xbf16>, vector<192x144xf32> -> vector<192x144xf32>
    %c0_4 = arith.constant 0 : index
    %c0_5 = arith.constant 0 : index
    %11 = vector.load %arg3[%c0_4, %c0_5] : memref<1x144xf32, #tpu.memory_space<vmem>>, vector<1x144xf32>
    %12 = vector.broadcast %11 : vector<1x144xf32> to vector<192x144xf32>
    %13 = arith.addf %10, %12 : vector<192x144xf32>
    %cst_6 = arith.constant 0.000000e+00 : f32
    %14 = vector.broadcast %cst_6 : f32 to vector<192x144xf32>
    %15 = arith.maximumf %13, %14 : vector<192x144xf32>
    %16 = vector.extract_strided_slice %15 {offsets = [0, 0], sizes = [192, 72], strides = [1, 1]} : vector<192x144xf32> to vector<192x72xf32>
    %17 = vector.extract_strided_slice %15 {offsets = [0, 72], sizes = [192, 72], strides = [1, 1]} : vector<192x144xf32> to vector<192x72xf32>
    %18 = arith.maximumf %16, %17 : vector<192x72xf32>
    %19 = vector.shape_cast %18 : vector<192x72xf32> to vector<8x24x72xf32>
    %c0_7 = arith.constant 0 : index
    %c0_8 = arith.constant 0 : index
    %c0_9 = arith.constant 0 : index
    %20 = vector.load %arg13[%c0_7, %c0_8, %c0_9] : memref<8x24x72xf32, #tpu.memory_space<vmem>>, vector<8x24x72xf32>
    tpu.vector_store %arg13[%c0_7, %c0_8, %c0_9], %19 {strides = array<i32>} : memref<8x24x72xf32, #tpu.memory_space<vmem>>, vector<8x24x72xf32>,
    %c0_10 = arith.constant 0 : index
    %c0_11 = arith.constant 0 : index
    %c0_12 = arith.constant 0 : index
    %21 = tpu.strided_load %arg13[%c0_10, %c0_11, %c0_12] {strides = array<i32: 1, 2, 1>} : memref<8x24x72xf32, #tpu.memory_space<vmem>>, vector<8x12x72xf32>
    %c0_13 = arith.constant 0 : index
    %c1 = arith.constant 1 : index
    %c0_14 = arith.constant 0 : index
    %22 = tpu.strided_load %arg13[%c0_13, %c1, %c0_14] {strides = array<i32: 1, 2, 1>} : memref<8x24x72xf32, #tpu.memory_space<vmem>>, vector<8x12x72xf32>
    %23 = arith.maximumf %21, %22 : vector<8x12x72xf32>
    %24 = vector.extract_strided_slice %23 {offsets = [0, 0, 0], sizes = [8, 8, 12], strides = [1, 1, 1]} : vector<8x12x72xf32> to vector<8x8x12xf32>
    %25 = vector.extract_strided_slice %23 {offsets = [0, 1, 0], sizes = [8, 8, 12], strides = [1, 1, 1]} : vector<8x12x72xf32> to vector<8x8x12xf32>
    %26 = vector.extract_strided_slice %23 {offsets = [0, 2, 0], sizes = [8, 8, 12], strides = [1, 1, 1]} : vector<8x12x72xf32> to vector<8x8x12xf32>
    %27 = vector.extract_strided_slice %23 {offsets = [0, 3, 0], sizes = [8, 8, 12], strides = [1, 1, 1]} : vector<8x12x72xf32> to vector<8x8x12xf32>
    %28 = vector.extract_strided_slice %23 {offsets = [0, 4, 0], sizes = [8, 8, 12], strides = [1, 1, 1]} : vector<8x12x72xf32> to vector<8x8x12xf32>
    %29 = vector.extract_strided_slice %23 {offsets = [0, 0, 12], sizes = [8, 8, 12], strides = [1, 1, 1]} : vector<8x12x72xf32> to vector<8x8x12xf32>
    %30 = vector.extract_strided_slice %23 {offsets = [0, 1, 12], sizes = [8, 8, 12], strides = [1, 1, 1]} : vector<8x12x72xf32> to vector<8x8x12xf32>
    %31 = vector.extract_strided_slice %23 {offsets = [0, 2, 12], sizes = [8, 8, 12], strides = [1, 1, 1]} : vector<8x12x72xf32> to vector<8x8x12xf32>
    %32 = vector.extract_strided_slice %23 {offsets = [0, 3, 12], sizes = [8, 8, 12], strides = [1, 1, 1]} : vector<8x12x72xf32> to vector<8x8x12xf32>
    %33 = vector.extract_strided_slice %23 {offsets = [0, 4, 12], sizes = [8, 8, 12], strides = [1, 1, 1]} : vector<8x12x72xf32> to vector<8x8x12xf32>
    %34 = vector.extract_strided_slice %23 {offsets = [0, 0, 24], sizes = [8, 8, 12], strides = [1, 1, 1]} : vector<8x12x72xf32> to vector<8x8x12xf32>
    %35 = vector.extract_strided_slice %23 {offsets = [0, 1, 24], sizes = [8, 8, 12], strides = [1, 1, 1]} : vector<8x12x72xf32> to vector<8x8x12xf32>
    %36 = vector.extract_strided_slice %23 {offsets = [0, 2, 24], sizes = [8, 8, 12], strides = [1, 1, 1]} : vector<8x12x72xf32> to vector<8x8x12xf32>
    %37 = vector.extract_strided_slice %23 {offsets = [0, 3, 24], sizes = [8, 8, 12], strides = [1, 1, 1]} : vector<8x12x72xf32> to vector<8x8x12xf32>
    %38 = vector.extract_strided_slice %23 {offsets = [0, 4, 24], sizes = [8, 8, 12], strides = [1, 1, 1]} : vector<8x12x72xf32> to vector<8x8x12xf32>
    %39 = vector.extract_strided_slice %23 {offsets = [0, 0, 36], sizes = [8, 8, 12], strides = [1, 1, 1]} : vector<8x12x72xf32> to vector<8x8x12xf32>
    %40 = vector.extract_strided_slice %23 {offsets = [0, 1, 36], sizes = [8, 8, 12], strides = [1, 1, 1]} : vector<8x12x72xf32> to vector<8x8x12xf32>
    %41 = vector.extract_strided_slice %23 {offsets = [0, 2, 36], sizes = [8, 8, 12], strides = [1, 1, 1]} : vector<8x12x72xf32> to vector<8x8x12xf32>
    %42 = vector.extract_strided_slice %23 {offsets = [0, 3, 36], sizes = [8, 8, 12], strides = [1, 1, 1]} : vector<8x12x72xf32> to vector<8x8x12xf32>
    %43 = vector.extract_strided_slice %23 {offsets = [0, 4, 36], sizes = [8, 8, 12], strides = [1, 1, 1]} : vector<8x12x72xf32> to vector<8x8x12xf32>
    %44 = vector.extract_strided_slice %23 {offsets = [0, 0, 48], sizes = [8, 8, 12], strides = [1, 1, 1]} : vector<8x12x72xf32> to vector<8x8x12xf32>
    %45 = vector.extract_strided_slice %23 {offsets = [0, 1, 48], sizes = [8, 8, 12], strides = [1, 1, 1]} : vector<8x12x72xf32> to vector<8x8x12xf32>
    %46 = vector.extract_strided_slice %23 {offsets = [0, 2, 48], sizes = [8, 8, 12], strides = [1, 1, 1]} : vector<8x12x72xf32> to vector<8x8x12xf32>
    %47 = vector.extract_strided_slice %23 {offsets = [0, 3, 48], sizes = [8, 8, 12], strides = [1, 1, 1]} : vector<8x12x72xf32> to vector<8x8x12xf32>
    %48 = vector.extract_strided_slice %23 {offsets = [0, 4, 48], sizes = [8, 8, 12], strides = [1, 1, 1]} : vector<8x12x72xf32> to vector<8x8x12xf32>
    %49 = vector.extract_strided_slice %23 {offsets = [0, 0, 60], sizes = [8, 8, 12], strides = [1, 1, 1]} : vector<8x12x72xf32> to vector<8x8x12xf32>
    %50 = vector.extract_strided_slice %23 {offsets = [0, 1, 60], sizes = [8, 8, 12], strides = [1, 1, 1]} : vector<8x12x72xf32> to vector<8x8x12xf32>
    %51 = vector.extract_strided_slice %23 {offsets = [0, 2, 60], sizes = [8, 8, 12], strides = [1, 1, 1]} : vector<8x12x72xf32> to vector<8x8x12xf32>
    %52 = vector.extract_strided_slice %23 {offsets = [0, 3, 60], sizes = [8, 8, 12], strides = [1, 1, 1]} : vector<8x12x72xf32> to vector<8x8x12xf32>
    %53 = vector.extract_strided_slice %23 {offsets = [0, 4, 60], sizes = [8, 8, 12], strides = [1, 1, 1]} : vector<8x12x72xf32> to vector<8x8x12xf32>
    %54 = tpu.concatenate %24, %25, %26, %27, %28, %29, %30, %31, %32, %33, %34, %35, %36, %37, %38, %39 in 2 : vector<8x8x12xf32>, vector<8x8x12xf32>, vector<8x8x12xf32>, vector<8x8x12xf32>, vector<8x8x12xf32>, vector<8x8x12xf32>, vector<8x8x12xf32>, vector<8x8x12xf32>, vector<8x8x12xf32>, vector<8x8x12xf32>, vector<8x8x12xf32>, vector<8x8x12xf32>, vector<8x8x12xf32>, vector<8x8x12xf32>, vector<8x8x12xf32>, vector<8x8x12xf32> -> vector<8x8x192xf32>
    %55 = tpu.concatenate %40, %41, %42, %43, %44, %45, %46, %47, %48, %49, %50, %51, %52, %53 in 2 : vector<8x8x12xf32>, vector<8x8x12xf32>, vector<8x8x12xf32>, vector<8x8x12xf32>, vector<8x8x12xf32>, vector<8x8x12xf32>, vector<8x8x12xf32>, vector<8x8x12xf32>, vector<8x8x12xf32>, vector<8x8x12xf32>, vector<8x8x12xf32>, vector<8x8x12xf32>, vector<8x8x12xf32>, vector<8x8x12xf32> -> vector<8x8x168xf32>
    %56 = tpu.concatenate %54, %55 in 2 : vector<8x8x192xf32>, vector<8x8x168xf32> -> vector<8x8x360xf32>
    %57 = vector.shape_cast %56 : vector<8x8x360xf32> to vector<64x360xf32>
    %58 = arith.truncf %57 : vector<64x360xf32> to vector<64x360xbf16>
    %c0_15 = arith.constant 0 : index
    %c0_16 = arith.constant 0 : index
    %59 = vector.load %arg4[%c0_15, %c0_16] : memref<360x128xbf16, #tpu.memory_space<vmem>>, vector<360x128xbf16>
    %cst_17 = arith.constant dense<0.000000e+00> : vector<64x128xf32>
    %60 = tpu.matmul %58, %59, %cst_17 {dimension_numbers = #tpu.dot_dimension_numbers<[1], [0], [0], [1], [0, 0, 1, 1], [], []>} : vector<64x360xbf16>, vector<360x128xbf16>, vector<64x128xf32> -> vector<64x128xf32>
    %c0_18 = arith.constant 0 : index
    %c0_19 = arith.constant 0 : index
    %61 = vector.load %arg5[%c0_18, %c0_19] : memref<1x128xf32, #tpu.memory_space<vmem>>, vector<1x128xf32>
    %62 = vector.broadcast %61 : vector<1x128xf32> to vector<64x128xf32>
    %63 = arith.addf %60, %62 : vector<64x128xf32>
    %cst_20 = arith.constant 0.000000e+00 : f32
    %64 = vector.broadcast %cst_20 : f32 to vector<64x128xf32>
    %65 = arith.maximumf %63, %64 : vector<64x128xf32>
    %66 = vector.extract_strided_slice %65 {offsets = [0, 0], sizes = [64, 64], strides = [1, 1]} : vector<64x128xf32> to vector<64x64xf32>
    %67 = vector.extract_strided_slice %65 {offsets = [0, 64], sizes = [64, 64], strides = [1, 1]} : vector<64x128xf32> to vector<64x64xf32>
    %68 = arith.maximumf %66, %67 : vector<64x64xf32>
    %69 = vector.shape_cast %68 : vector<64x64xf32> to vector<8x8x64xf32>
    %c0_21 = arith.constant 0 : index
    %c0_22 = arith.constant 0 : index
    %c0_23 = arith.constant 0 : index
    %70 = vector.load %arg14[%c0_21, %c0_22, %c0_23] : memref<8x8x64xf32, #tpu.memory_space<vmem>>, vector<8x8x64xf32>
    tpu.vector_store %arg14[%c0_21, %c0_22, %c0_23], %69 {strides = array<i32>} : memref<8x8x64xf32, #tpu.memory_space<vmem>>, vector<8x8x64xf32>,
    %c0_24 = arith.constant 0 : index
    %c0_25 = arith.constant 0 : index
    %c0_26 = arith.constant 0 : index
    %71 = tpu.strided_load %arg14[%c0_24, %c0_25, %c0_26] {strides = array<i32: 1, 2, 1>} : memref<8x8x64xf32, #tpu.memory_space<vmem>>, vector<8x4x64xf32>
    %c0_27 = arith.constant 0 : index
    %c1_28 = arith.constant 1 : index
    %c0_29 = arith.constant 0 : index
    %72 = tpu.strided_load %arg14[%c0_27, %c1_28, %c0_29] {strides = array<i32: 1, 2, 1>} : memref<8x8x64xf32, #tpu.memory_space<vmem>>, vector<8x4x64xf32>
    %73 = arith.maximumf %71, %72 : vector<8x4x64xf32>
    %74 = vector.extract_strided_slice %73 {offsets = [0, 0, 0], sizes = [8, 1, 64], strides = [1, 1, 1]} : vector<8x4x64xf32> to vector<8x1x64xf32>
    %75 = vector.shape_cast %74 : vector<8x1x64xf32> to vector<8x64xf32>
    %76 = vector.extract_strided_slice %73 {offsets = [0, 1, 0], sizes = [8, 1, 64], strides = [1, 1, 1]} : vector<8x4x64xf32> to vector<8x1x64xf32>
    %77 = vector.shape_cast %76 : vector<8x1x64xf32> to vector<8x64xf32>
    %78 = vector.extract_strided_slice %73 {offsets = [0, 2, 0], sizes = [8, 1, 64], strides = [1, 1, 1]} : vector<8x4x64xf32> to vector<8x1x64xf32>
    %79 = vector.shape_cast %78 : vector<8x1x64xf32> to vector<8x64xf32>
    %80 = vector.extract_strided_slice %73 {offsets = [0, 3, 0], sizes = [8, 1, 64], strides = [1, 1, 1]} : vector<8x4x64xf32> to vector<8x1x64xf32>
    %81 = vector.shape_cast %80 : vector<8x1x64xf32> to vector<8x64xf32>
    %82 = tpu.concatenate %75, %77, %79, %81 in 1 : vector<8x64xf32>, vector<8x64xf32>, vector<8x64xf32>, vector<8x64xf32> -> vector<8x256xf32>
    %83 = arith.truncf %82 : vector<8x256xf32> to vector<8x256xbf16>
    %c0_30 = arith.constant 0 : index
    %c0_31 = arith.constant 0 : index
    %84 = vector.load %arg6[%c0_30, %c0_31] : memref<256x128xbf16, #tpu.memory_space<vmem>>, vector<256x128xbf16>
    %cst_32 = arith.constant dense<0.000000e+00> : vector<8x128xf32>
    %85 = tpu.matmul %83, %84, %cst_32 {dimension_numbers = #tpu.dot_dimension_numbers<[1], [0], [0], [1], [0, 0, 1, 1], [], []>} : vector<8x256xbf16>, vector<256x128xbf16>, vector<8x128xf32> -> vector<8x128xf32>
    %c0_33 = arith.constant 0 : index
    %c0_34 = arith.constant 0 : index
    %86 = vector.load %arg7[%c0_33, %c0_34] : memref<1x128xf32, #tpu.memory_space<vmem>>, vector<1x128xf32>
    %87 = vector.broadcast %86 : vector<1x128xf32> to vector<8x128xf32>
    %88 = arith.addf %85, %87 : vector<8x128xf32>
    %cst_35 = arith.constant 0.000000e+00 : f32
    %89 = vector.broadcast %cst_35 : f32 to vector<8x128xf32>
    %90 = arith.maximumf %88, %89 : vector<8x128xf32>
    %91 = arith.truncf %90 : vector<8x128xf32> to vector<8x128xbf16>
    %c0_36 = arith.constant 0 : index
    %c0_37 = arith.constant 0 : index
    %92 = vector.load %arg8[%c0_36, %c0_37] : memref<128x128xbf16, #tpu.memory_space<vmem>>, vector<128x128xbf16>
    %cst_38 = arith.constant dense<0.000000e+00> : vector<8x128xf32>
    %93 = tpu.matmul %91, %92, %cst_38 {dimension_numbers = #tpu.dot_dimension_numbers<[1], [0], [0], [1], [0, 0, 1, 1], [], []>} : vector<8x128xbf16>, vector<128x128xbf16>, vector<8x128xf32> -> vector<8x128xf32>
    %c0_39 = arith.constant 0 : index
    %c0_40 = arith.constant 0 : index
    %94 = vector.load %arg9[%c0_39, %c0_40] : memref<1x128xf32, #tpu.memory_space<vmem>>, vector<1x128xf32>
    %95 = vector.broadcast %94 : vector<1x128xf32> to vector<8x128xf32>
    %96 = arith.addf %93, %95 : vector<8x128xf32>
    %cst_41 = arith.constant 0.000000e+00 : f32
    %97 = vector.broadcast %cst_41 : f32 to vector<8x128xf32>
    %98 = arith.maximumf %96, %97 : vector<8x128xf32>
    %99 = arith.truncf %98 : vector<8x128xf32> to vector<8x128xbf16>
    %c0_42 = arith.constant 0 : index
    %c0_43 = arith.constant 0 : index
    %100 = vector.load %arg10[%c0_42, %c0_43] : memref<128x10xbf16, #tpu.memory_space<vmem>>, vector<128x10xbf16>
    %cst_44 = arith.constant dense<0.000000e+00> : vector<8x10xf32>
    %101 = tpu.matmul %99, %100, %cst_44 {dimension_numbers = #tpu.dot_dimension_numbers<[1], [0], [0], [1], [0, 0, 1, 1], [], []>} : vector<8x128xbf16>, vector<128x10xbf16>, vector<8x10xf32> -> vector<8x10xf32>
    %c0_45 = arith.constant 0 : index
    %c0_46 = arith.constant 0 : index
    %102 = vector.load %arg11[%c0_45, %c0_46] : memref<1x10xf32, #tpu.memory_space<vmem>>, vector<1x10xf32>
    %103 = vector.broadcast %102 : vector<1x10xf32> to vector<8x10xf32>
    %104 = arith.addf %101, %103 : vector<8x10xf32>
    %cst_47 = arith.constant 0.000000e+00 : f32
    %105 = vector.broadcast %cst_47 : f32 to vector<8x10xf32>
    %106 = arith.maximumf %104, %105 : vector<8x10xf32>
    %c0_48 = arith.constant 0 : index
    %c0_49 = arith.constant 0 : index
    %107 = vector.load %arg12[%c0_48, %c0_49] : memref<8x10xf32, #tpu.memory_space<vmem>>, vector<8x10xf32>
    tpu.vector_store %arg12[%c0_48, %c0_49], %106 {strides = array<i32>} : memref<8x10xf32, #tpu.memory_space<vmem>>, vector<8x10xf32>,
    return
  }
  func.func @transform_0(%arg0: i32) -> (i32, i32, i32) {
    %c0_i32 = arith.constant 0 : i32
    %c0_i32_0 = arith.constant 0 : i32
    %c0_i32_1 = arith.constant 0 : i32
    return %arg0, %c0_i32, %c0_i32_0 : i32, i32, i32
  }
  func.func @transform_1(%arg0: i32) -> (i32, i32) {
    %c0_i32 = arith.constant 0 : i32
    %c0_i32_0 = arith.constant 0 : i32
    %c0_i32_1 = arith.constant 0 : i32
    return %c0_i32, %c0_i32_0 : i32, i32
  }
  func.func @transform_2(%arg0: i32) -> (i32, i32) {
    %c0_i32 = arith.constant 0 : i32
    %c0_i32_0 = arith.constant 0 : i32
    %c0_i32_1 = arith.constant 0 : i32
    return %c0_i32, %c0_i32_0 : i32, i32
  }
  func.func @transform_3(%arg0: i32) -> (i32, i32) {
    %c0_i32 = arith.constant 0 : i32
    %c0_i32_0 = arith.constant 0 : i32
    %c0_i32_1 = arith.constant 0 : i32
    return %c0_i32, %c0_i32_0 : i32, i32
  }
  func.func @transform_4(%arg0: i32) -> (i32, i32) {
    %c0_i32 = arith.constant 0 : i32
    %c0_i32_0 = arith.constant 0 : i32
    %c0_i32_1 = arith.constant 0 : i32
    return %c0_i32, %c0_i32_0 : i32, i32
  }
  func.func @transform_5(%arg0: i32) -> (i32, i32) {
    %c0_i32 = arith.constant 0 : i32
    %c0_i32_0 = arith.constant 0 : i32
    %c0_i32_1 = arith.constant 0 : i32
    return %c0_i32, %c0_i32_0 : i32, i32
  }
  func.func @transform_6(%arg0: i32) -> (i32, i32) {
    %c0_i32 = arith.constant 0 : i32
    %c0_i32_0 = arith.constant 0 : i32
    %c0_i32_1 = arith.constant 0 : i32
    return %c0_i32, %c0_i32_0 : i32, i32
  }
  func.func @transform_7(%arg0: i32) -> (i32, i32) {
    %c0_i32 = arith.constant 0 : i32
    %c0_i32_0 = arith.constant 0 : i32
    %c0_i32_1 = arith.constant 0 : i32
    return %c0_i32, %c0_i32_0 : i32, i32
  }
  func.func @transform_8(%arg0: i32) -> (i32, i32) {
    %c0_i32 = arith.constant 0 : i32
    %c0_i32_0 = arith.constant 0 : i32
    %c0_i32_1 = arith.constant 0 : i32
    return %c0_i32, %c0_i32_0 : i32, i32
  }
  func.func @transform_9(%arg0: i32) -> (i32, i32) {
    %c0_i32 = arith.constant 0 : i32
    %c0_i32_0 = arith.constant 0 : i32
    %c0_i32_1 = arith.constant 0 : i32
    return %c0_i32, %c0_i32_0 : i32, i32
  }
  func.func @transform_10(%arg0: i32) -> (i32, i32) {
    %c0_i32 = arith.constant 0 : i32
    %c0_i32_0 = arith.constant 0 : i32
    %c0_i32_1 = arith.constant 0 : i32
    return %c0_i32, %c0_i32_0 : i32, i32
  }
  func.func @transform_11(%arg0: i32) -> (i32, i32) {
    %c0_i32 = arith.constant 0 : i32
    %c0_i32_0 = arith.constant 0 : i32
    return %arg0, %c0_i32 : i32, i32
  }
}

</mosaic_0001>

<llo_original>
// kernel: tpu_custom_call.1
$region0: #{tpu_custom_call.1}
  #allocation0 [shape = 'u32[]', space=smem, size = 0x4, offset = 0x4, fixed_abs, tag = 'smem constant byte address 0x4 - core index']
  #allocation1 [shape = 'u32[144,128]{1,0:T(1,128)}', space=vmem, size = 0x12000, scoped, tag = 'internal scratch']
  #allocation2 [shape = 'f32[8,24,72]{2,1,0:T(8,128)}', space=vmem, size = 0x18000, scoped, tag = 'scratch operand']
  #allocation3 [shape = 'f32[8,8,64]{2,1,0:T(8,128)}', space=vmem, size = 0x8000, scoped, tag = 'scratch operand']
  %s0 = inlined_call_operand.vmem [shape: f32[8,28,28], index: 0, kind: input, shape index: {}]
  %s1 = inlined_call_operand.vmem [shape: bf16[140,144], index: 1, kind: input, shape index: {}]
  %s2 = inlined_call_operand.vmem [shape: f32[1,144], index: 2, kind: input, shape index: {}]
  %s3 = inlined_call_operand.vmem [shape: bf16[360,128], index: 3, kind: input, shape index: {}]
  %s4 = inlined_call_operand.vmem [shape: f32[1,128], index: 4, kind: input, shape index: {}]
  %s5 = inlined_call_operand.vmem [shape: bf16[256,128], index: 5, kind: input, shape index: {}]
  %s6 = inlined_call_operand.vmem [shape: f32[1,128], index: 6, kind: input, shape index: {}]
  %s7 = inlined_call_operand.vmem [shape: bf16[128,128], index: 7, kind: input, shape index: {}]
  %s8 = inlined_call_operand.vmem [shape: f32[1,128], index: 8, kind: input, shape index: {}]
  %s9 = inlined_call_operand.vmem [shape: bf16[128,10], index: 9, kind: input, shape index: {}]
  %s10 = inlined_call_operand.vmem [shape: f32[1,10], index: 10, kind: input, shape index: {}]
  %s11 = inlined_call_operand.hbm [shape: f32[8,10], index: 11, kind: output, shape index: {}]
  %s12 = sld [smem:[#allocation0]]
  $region54: #{tpu_custom_call.1} parent=0
    _
  %s14 = ssub.s32 1, %s12
  %s15 = scalar_select 0, %s14, %s12
  $region1: #{tpu_custom_call.1} parent=0
    #allocation4 [shape = 'u8[4096]{0}', space=vmem, size = 0x1000, scoped, tag = 'output window, operand 0, single buffered']
    #allocation5 [shape = 's32[1]{0}', space=sflag, size = 0x4, scoped, tag = 'scoped memory for tpu_custom_call.1']
    %16 = vsyncpa [#allocation5], 0
    // Predicated region
    $region2: #{tpu_custom_call.1} parent=1 // pred_check
      _
    $region3: #{tpu_custom_call.1} parent=1 // pred_check_branch
      %18 = sbr.rel (0) target = $region5
    $region4: #{tpu_custom_call.1} parent=1 // pred_region
      _
    $region5: #{tpu_custom_call.1} parent=1 // pred_fallthru
      _
    // Predicated region
    $region6: #{tpu_custom_call.1} parent=1 // pred_check
      _
    $region7: #{tpu_custom_call.1} parent=1 // pred_check_branch
      %20 = sbr.rel (0) target = $region9
    $region8: #{tpu_custom_call.1} parent=1 // pred_region
      _
    $region9: #{tpu_custom_call.1} parent=1 // pred_fallthru
      _
    // Predicated region
    $region10: #{tpu_custom_call.1} parent=1 // pred_check
      _
    $region11: #{tpu_custom_call.1} parent=1 // pred_check_branch
      %22 = sbr.rel (0) target = $region13
    $region12: #{tpu_custom_call.1} parent=1 // pred_region
      _
    $region13: #{tpu_custom_call.1} parent=1 // pred_fallthru
      _
    // Predicated region
    $region14: #{tpu_custom_call.1} parent=1 // pred_check
      _
    $region15: #{tpu_custom_call.1} parent=1 // pred_check_branch
      %24 = sbr.rel (0) target = $region17
    $region16: #{tpu_custom_call.1} parent=1 // pred_region
      _
    $region17: #{tpu_custom_call.1} parent=1 // pred_fallthru
      _
    // Predicated region
    $region18: #{tpu_custom_call.1} parent=1 // pred_check
      _
    $region19: #{tpu_custom_call.1} parent=1 // pred_check_branch
      %26 = sbr.rel (0) target = $region21
    $region20: #{tpu_custom_call.1} parent=1 // pred_region
      _
    $region21: #{tpu_custom_call.1} parent=1 // pred_fallthru
      _
    // Predicated region
    $region22: #{tpu_custom_call.1} parent=1 // pred_check
      _
    $region23: #{tpu_custom_call.1} parent=1 // pred_check_branch
      %28 = sbr.rel (0) target = $region25
    $region24: #{tpu_custom_call.1} parent=1 // pred_region
      _
    $region25: #{tpu_custom_call.1} parent=1 // pred_fallthru
      _
    // Predicated region
    $region26: #{tpu_custom_call.1} parent=1 // pred_check
      _
    $region27: #{tpu_custom_call.1} parent=1 // pred_check_branch
      %30 = sbr.rel (0) target = $region29
    $region28: #{tpu_custom_call.1} parent=1 // pred_region
      _
    $region29: #{tpu_custom_call.1} parent=1 // pred_fallthru
      _
    // Predicated region
    $region30: #{tpu_custom_call.1} parent=1 // pred_check
      _
    $region31: #{tpu_custom_call.1} parent=1 // pred_check_branch
      %32 = sbr.rel (0) target = $region33
    $region32: #{tpu_custom_call.1} parent=1 // pred_region
      _
    $region33: #{tpu_custom_call.1} parent=1 // pred_fallthru
      _
    // Predicated region
    $region34: #{tpu_custom_call.1} parent=1 // pred_check
      _
    $region35: #{tpu_custom_call.1} parent=1 // pred_check_branch
      %34 = sbr.rel (0) target = $region37
    $region36: #{tpu_custom_call.1} parent=1 // pred_region
      _
    $region37: #{tpu_custom_call.1} parent=1 // pred_fallthru
      _
    // Predicated region
    $region38: #{tpu_custom_call.1} parent=1 // pred_check
      _
    $region39: #{tpu_custom_call.1} parent=1 // pred_check_branch
      %36 = sbr.rel (0) target = $region41
    $region40: #{tpu_custom_call.1} parent=1 // pred_region
      _
    $region41: #{tpu_custom_call.1} parent=1 // pred_fallthru
      _
    // Predicated region
    $region42: #{tpu_custom_call.1} parent=1 // pred_check
      _
    $region43: #{tpu_custom_call.1} parent=1 // pred_check_branch
      %38 = sbr.rel (0) target = $region45
    $region44: #{tpu_custom_call.1} parent=1 // pred_region
      _
    $region45: #{tpu_custom_call.1} parent=1 // pred_fallthru
      _
    %v40 = vld [vmem:[%s0] sm:$0xff]
    %v41 = vld [vmem:[%s0 + $0x8] sm:$0xff]
    %v42 = vld [vmem:[%s0 + $0x10] sm:$0xff]
    %v43 = vld [vmem:[%s0 + $0x18] sm:$0xf]
    %v44 = vld [vmem:[%s0 + $0x20] sm:$0xff]
    %v45 = vld [vmem:[%s0 + $0x28] sm:$0xff]
    %v46 = vld [vmem:[%s0 + $0x30] sm:$0xff]
    %v47 = vld [vmem:[%s0 + $0x38] sm:$0xf]
    %v48 = vld [vmem:[%s0 + $0x40] sm:$0xff]
    %v49 = vld [vmem:[%s0 + $0x48] sm:$0xff]
    %v50 = vld [vmem:[%s0 + $0x50] sm:$0xff]
    %v51 = vld [vmem:[%s0 + $0x58] sm:$0xf]
    %v52 = vld [vmem:[%s0 + $0x60] sm:$0xff]
    %v53 = vld [vmem:[%s0 + $0x68] sm:$0xff]
    %v54 = vld [vmem:[%s0 + $0x70] sm:$0xff]
    %v55 = vld [vmem:[%s0 + $0x78] sm:$0xf]
    %v56 = vld [vmem:[%s0 + $0x80] sm:$0xff]
    %v57 = vld [vmem:[%s0 + $0x88] sm:$0xff]
    %v58 = vld [vmem:[%s0 + $0x90] sm:$0xff]
    %v59 = vld [vmem:[%s0 + $0x98] sm:$0xf]
    %v60 = vld [vmem:[%s0 + $0xa0] sm:$0xff]
    %v61 = vld [vmem:[%s0 + $0xa8] sm:$0xff]
    %v62 = vld [vmem:[%s0 + $0xb0] sm:$0xff]
    %v63 = vld [vmem:[%s0 + $0xb8] sm:$0xf]
    %v64 = vld [vmem:[%s0 + $0xc0] sm:$0xff]
    %v65 = vld [vmem:[%s0 + $0xc8] sm:$0xff]
    %v66 = vld [vmem:[%s0 + $0xd0] sm:$0xff]
    %v67 = vld [vmem:[%s0 + $0xd8] sm:$0xf]
    %v68 = vld [vmem:[%s0 + $0xe0] sm:$0xff]
    %v69 = vld [vmem:[%s0 + $0xe8] sm:$0xff]
    %v70 = vld [vmem:[%s0 + $0xf0] sm:$0xff]
    %v71 = vld [vmem:[%s0 + $0xf8] sm:$0xf]
    %vm104 = vcmask 1046528
    %v105 = vrot.slane %v40, 1
    %v106 = vrot.slane %v41, 1
    %v107 = vsel %vm104, %v105, %v106
    %v108 = vrot.slane %v42, 1
    %v109 = vsel %vm104, %v106, %v108
    %v110 = vrot.slane %v43, 1
    %v111 = vsel %vm104, %v108, %v110
    %v112 = vrot.slane %v44, 1
    %v113 = vrot.slane %v45, 1
    %v114 = vsel %vm104, %v112, %v113
    %v115 = vrot.slane %v46, 1
    %v116 = vsel %vm104, %v113, %v115
    %v117 = vrot.slane %v47, 1
    %v118 = vsel %vm104, %v115, %v117
    %v119 = vrot.slane %v48, 1
    %v120 = vrot.slane %v49, 1
    %v121 = vsel %vm104, %v119, %v120
    %v122 = vrot.slane %v50, 1
    %v123 = vsel %vm104, %v120, %v122
    %v124 = vrot.slane %v51, 1
    %v125 = vsel %vm104, %v122, %v124
    %v126 = vrot.slane %v52, 1
    %v127 = vrot.slane %v53, 1
    %v128 = vsel %vm104, %v126, %v127
    %v129 = vrot.slane %v54, 1
    %v130 = vsel %vm104, %v127, %v129
    %v131 = vrot.slane %v55, 1
    %v132 = vsel %vm104, %v129, %v131
    %v133 = vrot.slane %v56, 1
    %v134 = vrot.slane %v57, 1
    %v135 = vsel %vm104, %v133, %v134
    %v136 = vrot.slane %v58, 1
    %v137 = vsel %vm104, %v134, %v136
    %v138 = vrot.slane %v59, 1
    %v139 = vsel %vm104, %v136, %v138
    %v140 = vrot.slane %v60, 1
    %v141 = vrot.slane %v61, 1
    %v142 = vsel %vm104, %v140, %v141
    %v143 = vrot.slane %v62, 1
    %v144 = vsel %vm104, %v141, %v143
    %v145 = vrot.slane %v63, 1
    %v146 = vsel %vm104, %v143, %v145
    %v147 = vrot.slane %v64, 1
    %v148 = vrot.slane %v65, 1
    %v149 = vsel %vm104, %v147, %v148
    %v150 = vrot.slane %v66, 1
    %v151 = vsel %vm104, %v148, %v150
    %v152 = vrot.slane %v67, 1
    %v153 = vsel %vm104, %v150, %v152
    %v154 = vrot.slane %v68, 1
    %v155 = vrot.slane %v69, 1
    %v156 = vsel %vm104, %v154, %v155
    %v157 = vrot.slane %v70, 1
    %v158 = vsel %vm104, %v155, %v157
    %v159 = vrot.slane %v71, 1
    %v160 = vsel %vm104, %v157, %v159
    %161 = vrot.lane.b32.xlu0 %v107, 28
    %v162 = vpop.permute.xlu0 %161
    %163 = vrot.lane.b32.xlu0 %v109, 28
    %v164 = vpop.permute.xlu0 %163
    %165 = vrot.lane.b32.xlu0 %v111, 28
    %v166 = vpop.permute.xlu0 %165
    %167 = vrot.lane.b32.xlu0 %v114, 28
    %v168 = vpop.permute.xlu0 %167
    %169 = vrot.lane.b32.xlu0 %v116, 28
    %v170 = vpop.permute.xlu0 %169
    %171 = vrot.lane.b32.xlu0 %v118, 28
    %v172 = vpop.permute.xlu0 %171
    %173 = vrot.lane.b32.xlu0 %v121, 28
    %v174 = vpop.permute.xlu0 %173
    %175 = vrot.lane.b32.xlu0 %v123, 28
    %v176 = vpop.permute.xlu0 %175
    %177 = vrot.lane.b32.xlu0 %v125, 28
    %v178 = vpop.permute.xlu0 %177
    %179 = vrot.lane.b32.xlu0 %v128, 28
    %v180 = vpop.permute.xlu0 %179
    %181 = vrot.lane.b32.xlu0 %v130, 28
    %v182 = vpop.permute.xlu0 %181
    %183 = vrot.lane.b32.xlu0 %v132, 28
    %v184 = vpop.permute.xlu0 %183
    %185 = vrot.lane.b32.xlu0 %v135, 28
    %v186 = vpop.permute.xlu0 %185
    %187 = vrot.lane.b32.xlu0 %v137, 28
    %v188 = vpop.permute.xlu0 %187
    %189 = vrot.lane.b32.xlu0 %v139, 28
    %v190 = vpop.permute.xlu0 %189
    %191 = vrot.lane.b32.xlu0 %v142, 28
    %v192 = vpop.permute.xlu0 %191
    %193 = vrot.lane.b32.xlu0 %v144, 28
    %v194 = vpop.permute.xlu0 %193
    %195 = vrot.lane.b32.xlu0 %v146, 28
    %v196 = vpop.permute.xlu0 %195
    %197 = vrot.lane.b32.xlu0 %v149, 28
    %v198 = vpop.permute.xlu0 %197
    %199 = vrot.lane.b32.xlu0 %v151, 28
    %v200 = vpop.permute.xlu0 %199
    %201 = vrot.lane.b32.xlu0 %v153, 28
    %v202 = vpop.permute.xlu0 %201
    %203 = vrot.lane.b32.xlu0 %v156, 28
    %v204 = vpop.permute.xlu0 %203
    %205 = vrot.lane.b32.xlu0 %v158, 28
    %v206 = vpop.permute.xlu0 %205
    %207 = vrot.lane.b32.xlu0 %v160, 28
    %v208 = vpop.permute.xlu0 %207
    %vm233 = vcmask 1045504
    %v234 = vrot.slane %v40, 2
    %v235 = vrot.slane %v41, 2
    %v236 = vsel %vm233, %v234, %v235
    %v237 = vrot.slane %v42, 2
    %v238 = vsel %vm233, %v235, %v237
    %v239 = vrot.slane %v43, 2
    %v240 = vsel %vm233, %v237, %v239
    %v241 = vrot.slane %v44, 2
    %v242 = vrot.slane %v45, 2
    %v243 = vsel %vm233, %v241, %v242
    %v244 = vrot.slane %v46, 2
    %v245 = vsel %vm233, %v242, %v244
    %v246 = vrot.slane %v47, 2
    %v247 = vsel %vm233, %v244, %v246
    %v248 = vrot.slane %v48, 2
    %v249 = vrot.slane %v49, 2
    %v250 = vsel %vm233, %v248, %v249
    %v251 = vrot.slane %v50, 2
    %v252 = vsel %vm233, %v249, %v251
    %v253 = vrot.slane %v51, 2
    %v254 = vsel %vm233, %v251, %v253
    %v255 = vrot.slane %v52, 2
    %v256 = vrot.slane %v53, 2
    %v257 = vsel %vm233, %v255, %v256
    %v258 = vrot.slane %v54, 2
    %v259 = vsel %vm233, %v256, %v258
    %v260 = vrot.slane %v55, 2
    %v261 = vsel %vm233, %v258, %v260
    %v262 = vrot.slane %v56, 2
    %v263 = vrot.slane %v57, 2
    %v264 = vsel %vm233, %v262, %v263
    %v265 = vrot.slane %v58, 2
    %v266 = vsel %vm233, %v263, %v265
    %v267 = vrot.slane %v59, 2
    %v268 = vsel %vm233, %v265, %v267
    %v269 = vrot.slane %v60, 2
    %v270 = vrot.slane %v61, 2
    %v271 = vsel %vm233, %v269, %v270
    %v272 = vrot.slane %v62, 2
    %v273 = vsel %vm233, %v270, %v272
    %v274 = vrot.slane %v63, 2
    %v275 = vsel %vm233, %v272, %v274
    %v276 = vrot.slane %v64, 2
    %v277 = vrot.slane %v65, 2
    %v278 = vsel %vm233, %v276, %v277
    %v279 = vrot.slane %v66, 2
    %v280 = vsel %vm233, %v277, %v279
    %v281 = vrot.slane %v67, 2
    %v282 = vsel %vm233, %v279, %v281
    %v283 = vrot.slane %v68, 2
    %v284 = vrot.slane %v69, 2
    %v285 = vsel %vm233, %v283, %v284
    %v286 = vrot.slane %v70, 2
    %v287 = vsel %vm233, %v284, %v286
    %v288 = vrot.slane %v71, 2
    %v289 = vsel %vm233, %v286, %v288
    %290 = vrot.lane.b32.xlu0 %v236, 56
    %v291 = vpop.permute.xlu0 %290
    %292 = vrot.lane.b32.xlu0 %v238, 56
    %v293 = vpop.permute.xlu0 %292
    %294 = vrot.lane.b32.xlu0 %v240, 56
    %v295 = vpop.permute.xlu0 %294
    %296 = vrot.lane.b32.xlu0 %v243, 56
    %v297 = vpop.permute.xlu0 %296
    %298 = vrot.lane.b32.xlu0 %v245, 56
    %v299 = vpop.permute.xlu0 %298
    %300 = vrot.lane.b32.xlu0 %v247, 56
    %v301 = vpop.permute.xlu0 %300
    %302 = vrot.lane.b32.xlu0 %v250, 56
    %v303 = vpop.permute.xlu0 %302
    %304 = vrot.lane.b32.xlu0 %v252, 56
    %v305 = vpop.permute.xlu0 %304
    %306 = vrot.lane.b32.xlu0 %v254, 56
    %v307 = vpop.permute.xlu0 %306
    %308 = vrot.lane.b32.xlu0 %v257, 56
    %v309 = vpop.permute.xlu0 %308
    %310 = vrot.lane.b32.xlu0 %v259, 56
    %v311 = vpop.permute.xlu0 %310
    %312 = vrot.lane.b32.xlu0 %v261, 56
    %v313 = vpop.permute.xlu0 %312
    %314 = vrot.lane.b32.xlu0 %v264, 56
    %v315 = vpop.permute.xlu0 %314
    %316 = vrot.lane.b32.xlu0 %v266, 56
    %v317 = vpop.permute.xlu0 %316
    %318 = vrot.lane.b32.xlu0 %v268, 56
    %v319 = vpop.permute.xlu0 %318
    %320 = vrot.lane.b32.xlu0 %v271, 56
    %v321 = vpop.permute.xlu0 %320
    %322 = vrot.lane.b32.xlu0 %v273, 56
    %v323 = vpop.permute.xlu0 %322
    %324 = vrot.lane.b32.xlu0 %v275, 56
    %v325 = vpop.permute.xlu0 %324
    %326 = vrot.lane.b32.xlu0 %v278, 56
    %v327 = vpop.permute.xlu0 %326
    %328 = vrot.lane.b32.xlu0 %v280, 56
    %v329 = vpop.permute.xlu0 %328
    %330 = vrot.lane.b32.xlu0 %v282, 56
    %v331 = vpop.permute.xlu0 %330
    %332 = vrot.lane.b32.xlu0 %v285, 56
    %v333 = vpop.permute.xlu0 %332
    %334 = vrot.lane.b32.xlu0 %v287, 56
    %v335 = vpop.permute.xlu0 %334
    %336 = vrot.lane.b32.xlu0 %v289, 56
    %v337 = vpop.permute.xlu0 %336
    %vm362 = vcmask 1044480
    %v363 = vrot.slane %v40, 3
    %v364 = vrot.slane %v41, 3
    %v365 = vsel %vm362, %v363, %v364
    %v366 = vrot.slane %v42, 3
    %v367 = vsel %vm362, %v364, %v366
    %v368 = vrot.slane %v43, 3
    %v369 = vsel %vm362, %v366, %v368
    %v370 = vrot.slane %v44, 3
    %v371 = vrot.slane %v45, 3
    %v372 = vsel %vm362, %v370, %v371
    %v373 = vrot.slane %v46, 3
    %v374 = vsel %vm362, %v371, %v373
    %v375 = vrot.slane %v47, 3
    %v376 = vsel %vm362, %v373, %v375
    %v377 = vrot.slane %v48, 3
    %v378 = vrot.slane %v49, 3
    %v379 = vsel %vm362, %v377, %v378
    %v380 = vrot.slane %v50, 3
    %v381 = vsel %vm362, %v378, %v380
    %v382 = vrot.slane %v51, 3
    %v383 = vsel %vm362, %v380, %v382
    %v384 = vrot.slane %v52, 3
    %v385 = vrot.slane %v53, 3
    %v386 = vsel %vm362, %v384, %v385
    %v387 = vrot.slane %v54, 3
    %v388 = vsel %vm362, %v385, %v387
    %v389 = vrot.slane %v55, 3
    %v390 = vsel %vm362, %v387, %v389
    %v391 = vrot.slane %v56, 3
    %v392 = vrot.slane %v57, 3
    %v393 = vsel %vm362, %v391, %v392
    %v394 = vrot.slane %v58, 3
    %v395 = vsel %vm362, %v392, %v394
    %v396 = vrot.slane %v59, 3
    %v397 = vsel %vm362, %v394, %v396
    %v398 = vrot.slane %v60, 3
    %v399 = vrot.slane %v61, 3
    %v400 = vsel %vm362, %v398, %v399
    %v401 = vrot.slane %v62, 3
    %v402 = vsel %vm362, %v399, %v401
    %v403 = vrot.slane %v63, 3
    %v404 = vsel %vm362, %v401, %v403
    %v405 = vrot.slane %v64, 3
    %v406 = vrot.slane %v65, 3
    %v407 = vsel %vm362, %v405, %v406
    %v408 = vrot.slane %v66, 3
    %v409 = vsel %vm362, %v406, %v408
    %v410 = vrot.slane %v67, 3
    %v411 = vsel %vm362, %v408, %v410
    %v412 = vrot.slane %v68, 3
    %v413 = vrot.slane %v69, 3
    %v414 = vsel %vm362, %v412, %v413
    %v415 = vrot.slane %v70, 3
    %v416 = vsel %vm362, %v413, %v415
    %v417 = vrot.slane %v71, 3
    %v418 = vsel %vm362, %v415, %v417
    %419 = vrot.lane.b32.xlu0 %v365, 84
    %v420 = vpop.permute.xlu0 %419
    %421 = vrot.lane.b32.xlu0 %v367, 84
    %v422 = vpop.permute.xlu0 %421
    %423 = vrot.lane.b32.xlu0 %v369, 84
    %v424 = vpop.permute.xlu0 %423
    %425 = vrot.lane.b32.xlu0 %v372, 84
    %v426 = vpop.permute.xlu0 %425
    %427 = vrot.lane.b32.xlu0 %v374, 84
    %v428 = vpop.permute.xlu0 %427
    %429 = vrot.lane.b32.xlu0 %v376, 84
    %v430 = vpop.permute.xlu0 %429
    %431 = vrot.lane.b32.xlu0 %v379, 84
    %v432 = vpop.permute.xlu0 %431
    %433 = vrot.lane.b32.xlu0 %v381, 84
    %v434 = vpop.permute.xlu0 %433
    %435 = vrot.lane.b32.xlu0 %v383, 84
    %v436 = vpop.permute.xlu0 %435
    %437 = vrot.lane.b32.xlu0 %v386, 84
    %v438 = vpop.permute.xlu0 %437
    %439 = vrot.lane.b32.xlu0 %v388, 84
    %v440 = vpop.permute.xlu0 %439
    %441 = vrot.lane.b32.xlu0 %v390, 84
    %v442 = vpop.permute.xlu0 %441
    %443 = vrot.lane.b32.xlu0 %v393, 84
    %v444 = vpop.permute.xlu0 %443
    %445 = vrot.lane.b32.xlu0 %v395, 84
    %v446 = vpop.permute.xlu0 %445
    %447 = vrot.lane.b32.xlu0 %v397, 84
    %v448 = vpop.permute.xlu0 %447
    %449 = vrot.lane.b32.xlu0 %v400, 84
    %v450 = vpop.permute.xlu0 %449
    %451 = vrot.lane.b32.xlu0 %v402, 84
    %v452 = vpop.permute.xlu0 %451
    %453 = vrot.lane.b32.xlu0 %v404, 84
    %v454 = vpop.permute.xlu0 %453
    %455 = vrot.lane.b32.xlu0 %v407, 84
    %v456 = vpop.permute.xlu0 %455
    %457 = vrot.lane.b32.xlu0 %v409, 84
    %v458 = vpop.permute.xlu0 %457
    %459 = vrot.lane.b32.xlu0 %v411, 84
    %v460 = vpop.permute.xlu0 %459
    %461 = vrot.lane.b32.xlu0 %v414, 84
    %v462 = vpop.permute.xlu0 %461
    %463 = vrot.lane.b32.xlu0 %v416, 84
    %v464 = vpop.permute.xlu0 %463
    %465 = vrot.lane.b32.xlu0 %v418, 84
    %v466 = vpop.permute.xlu0 %465
    %vm491 = vcmask 1043456
    %v492 = vrot.slane %v40, 4
    %v493 = vrot.slane %v41, 4
    %v494 = vsel %vm491, %v492, %v493
    %v495 = vrot.slane %v42, 4
    %v496 = vsel %vm491, %v493, %v495
    %v497 = vrot.slane %v43, 4
    %v498 = vsel %vm491, %v495, %v497
    %v499 = vrot.slane %v44, 4
    %v500 = vrot.slane %v45, 4
    %v501 = vsel %vm491, %v499, %v500
    %v502 = vrot.slane %v46, 4
    %v503 = vsel %vm491, %v500, %v502
    %v504 = vrot.slane %v47, 4
    %v505 = vsel %vm491, %v502, %v504
    %v506 = vrot.slane %v48, 4
    %v507 = vrot.slane %v49, 4
    %v508 = vsel %vm491, %v506, %v507
    %v509 = vrot.slane %v50, 4
    %v510 = vsel %vm491, %v507, %v509
    %v511 = vrot.slane %v51, 4
    %v512 = vsel %vm491, %v509, %v511
    %v513 = vrot.slane %v52, 4
    %v514 = vrot.slane %v53, 4
    %v515 = vsel %vm491, %v513, %v514
    %v516 = vrot.slane %v54, 4
    %v517 = vsel %vm491, %v514, %v516
    %v518 = vrot.slane %v55, 4
    %v519 = vsel %vm491, %v516, %v518
    %v520 = vrot.slane %v56, 4
    %v521 = vrot.slane %v57, 4
    %v522 = vsel %vm491, %v520, %v521
    %v523 = vrot.slane %v58, 4
    %v524 = vsel %vm491, %v521, %v523
    %v525 = vrot.slane %v59, 4
    %v526 = vsel %vm491, %v523, %v525
    %v527 = vrot.slane %v60, 4
    %v528 = vrot.slane %v61, 4
    %v529 = vsel %vm491, %v527, %v528
    %v530 = vrot.slane %v62, 4
    %v531 = vsel %vm491, %v528, %v530
    %v532 = vrot.slane %v63, 4
    %v533 = vsel %vm491, %v530, %v532
    %v534 = vrot.slane %v64, 4
    %v535 = vrot.slane %v65, 4
    %v536 = vsel %vm491, %v534, %v535
    %v537 = vrot.slane %v66, 4
    %v538 = vsel %vm491, %v535, %v537
    %v539 = vrot.slane %v67, 4
    %v540 = vsel %vm491, %v537, %v539
    %v541 = vrot.slane %v68, 4
    %v542 = vrot.slane %v69, 4
    %v543 = vsel %vm491, %v541, %v542
    %v544 = vrot.slane %v70, 4
    %v545 = vsel %vm491, %v542, %v544
    %v546 = vrot.slane %v71, 4
    %v547 = vsel %vm491, %v544, %v546
    %548 = vrot.lane.b32.xlu0 %v494, 112
    %v549 = vpop.permute.xlu0 %548
    %550 = vrot.lane.b32.xlu0 %v496, 112
    %v551 = vpop.permute.xlu0 %550
    %552 = vrot.lane.b32.xlu0 %v498, 112
    %v553 = vpop.permute.xlu0 %552
    %554 = vrot.lane.b32.xlu0 %v501, 112
    %v555 = vpop.permute.xlu0 %554
    %556 = vrot.lane.b32.xlu0 %v503, 112
    %v557 = vpop.permute.xlu0 %556
    %558 = vrot.lane.b32.xlu0 %v505, 112
    %v559 = vpop.permute.xlu0 %558
    %560 = vrot.lane.b32.xlu0 %v508, 112
    %v561 = vpop.permute.xlu0 %560
    %562 = vrot.lane.b32.xlu0 %v510, 112
    %v563 = vpop.permute.xlu0 %562
    %564 = vrot.lane.b32.xlu0 %v512, 112
    %v565 = vpop.permute.xlu0 %564
    %566 = vrot.lane.b32.xlu0 %v515, 112
    %v567 = vpop.permute.xlu0 %566
    %568 = vrot.lane.b32.xlu0 %v517, 112
    %v569 = vpop.permute.xlu0 %568
    %570 = vrot.lane.b32.xlu0 %v519, 112
    %v571 = vpop.permute.xlu0 %570
    %572 = vrot.lane.b32.xlu0 %v522, 112
    %v573 = vpop.permute.xlu0 %572
    %574 = vrot.lane.b32.xlu0 %v524, 112
    %v575 = vpop.permute.xlu0 %574
    %576 = vrot.lane.b32.xlu0 %v526, 112
    %v577 = vpop.permute.xlu0 %576
    %578 = vrot.lane.b32.xlu0 %v529, 112
    %v579 = vpop.permute.xlu0 %578
    %580 = vrot.lane.b32.xlu0 %v531, 112
    %v581 = vpop.permute.xlu0 %580
    %582 = vrot.lane.b32.xlu0 %v533, 112
    %v583 = vpop.permute.xlu0 %582
    %584 = vrot.lane.b32.xlu0 %v536, 112
    %v585 = vpop.permute.xlu0 %584
    %586 = vrot.lane.b32.xlu0 %v538, 112
    %v587 = vpop.permute.xlu0 %586
    %588 = vrot.lane.b32.xlu0 %v540, 112
    %v589 = vpop.permute.xlu0 %588
    %590 = vrot.lane.b32.xlu0 %v543, 112
    %v591 = vpop.permute.xlu0 %590
    %592 = vrot.lane.b32.xlu0 %v545, 112
    %v593 = vpop.permute.xlu0 %592
    %594 = vrot.lane.b32.xlu0 %v547, 112
    %v595 = vpop.permute.xlu0 %594
    %vm620 = vcmask 228352
    %v621 = vsel %vm620, %v40, %v162
    %v622 = vsel %vm620, %v41, %v164
    %v623 = vsel %vm620, %v42, %v166
    %v624 = vsel %vm620, %v44, %v168
    %v625 = vsel %vm620, %v45, %v170
    %v626 = vsel %vm620, %v46, %v172
    %v627 = vsel %vm620, %v48, %v174
    %v628 = vsel %vm620, %v49, %v176
    %v629 = vsel %vm620, %v50, %v178
    %v630 = vsel %vm620, %v52, %v180
    %v631 = vsel %vm620, %v53, %v182
    %v632 = vsel %vm620, %v54, %v184
    %v633 = vsel %vm620, %v56, %v186
    %v634 = vsel %vm620, %v57, %v188
    %v635 = vsel %vm620, %v58, %v190
    %v636 = vsel %vm620, %v60, %v192
    %v637 = vsel %vm620, %v61, %v194
    %v638 = vsel %vm620, %v62, %v196
    %v639 = vsel %vm620, %v64, %v198
    %v640 = vsel %vm620, %v65, %v200
    %v641 = vsel %vm620, %v66, %v202
    %v642 = vsel %vm620, %v68, %v204
    %v643 = vsel %vm620, %v69, %v206
    %v644 = vsel %vm620, %v70, %v208
    %vm645 = vcmask 457728
    %v646 = vsel %vm645, %v621, %v291
    %v647 = vsel %vm645, %v622, %v293
    %v648 = vsel %vm645, %v623, %v295
    %v649 = vsel %vm645, %v624, %v297
    %v650 = vsel %vm645, %v625, %v299
    %v651 = vsel %vm645, %v626, %v301
    %v652 = vsel %vm645, %v627, %v303
    %v653 = vsel %vm645, %v628, %v305
    %v654 = vsel %vm645, %v629, %v307
    %v655 = vsel %vm645, %v630, %v309
    %v656 = vsel %vm645, %v631, %v311
    %v657 = vsel %vm645, %v632, %v313
    %v658 = vsel %vm645, %v633, %v315
    %v659 = vsel %vm645, %v634, %v317
    %v660 = vsel %vm645, %v635, %v319
    %v661 = vsel %vm645, %v636, %v321
    %v662 = vsel %vm645, %v637, %v323
    %v663 = vsel %vm645, %v638, %v325
    %v664 = vsel %vm645, %v639, %v327
    %v665 = vsel %vm645, %v640, %v329
    %v666 = vsel %vm645, %v641, %v331
    %v667 = vsel %vm645, %v642, %v333
    %v668 = vsel %vm645, %v643, %v335
    %v669 = vsel %vm645, %v644, %v337
    %vm670 = vcmask 687104
    %v671 = vsel %vm670, %v646, %v420
    %v672 = vsel %vm670, %v647, %v422
    %v673 = vsel %vm670, %v648, %v424
    %v674 = vsel %vm670, %v649, %v426
    %v675 = vsel %vm670, %v650, %v428
    %v676 = vsel %vm670, %v651, %v430
    %v677 = vsel %vm670, %v652, %v432
    %v678 = vsel %vm670, %v653, %v434
    %v679 = vsel %vm670, %v654, %v436
    %v680 = vsel %vm670, %v655, %v438
    %v681 = vsel %vm670, %v656, %v440
    %v682 = vsel %vm670, %v657, %v442
    %v683 = vsel %vm670, %v658, %v444
    %v684 = vsel %vm670, %v659, %v446
    %v685 = vsel %vm670, %v660, %v448
    %v686 = vsel %vm670, %v661, %v450
    %v687 = vsel %vm670, %v662, %v452
    %v688 = vsel %vm670, %v663, %v454
    %v689 = vsel %vm670, %v664, %v456
    %v690 = vsel %vm670, %v665, %v458
    %v691 = vsel %vm670, %v666, %v460
    %v692 = vsel %vm670, %v667, %v462
    %v693 = vsel %vm670, %v668, %v464
    %v694 = vsel %vm670, %v669, %v466
    %vm695 = vcmask 916480
    %v696 = vsel %vm695, %v671, %v549
    %v697 = vsel %vm695, %v672, %v551
    %v698 = vsel %vm695, %v673, %v553
    %v699 = vsel %vm695, %v674, %v555
    %v700 = vsel %vm695, %v675, %v557
    %v701 = vsel %vm695, %v676, %v559
    %v702 = vsel %vm695, %v677, %v561
    %v703 = vsel %vm695, %v678, %v563
    %v704 = vsel %vm695, %v679, %v565
    %v705 = vsel %vm695, %v680, %v567
    %v706 = vsel %vm695, %v681, %v569
    %v707 = vsel %vm695, %v682, %v571
    %v708 = vsel %vm695, %v683, %v573
    %v709 = vsel %vm695, %v684, %v575
    %v710 = vsel %vm695, %v685, %v577
    %v711 = vsel %vm695, %v686, %v579
    %v712 = vsel %vm695, %v687, %v581
    %v713 = vsel %vm695, %v688, %v583
    %v714 = vsel %vm695, %v689, %v585
    %v715 = vsel %vm695, %v690, %v587
    %v716 = vsel %vm695, %v691, %v589
    %v717 = vsel %vm695, %v692, %v591
    %v718 = vsel %vm695, %v693, %v593
    %v719 = vsel %vm695, %v694, %v595
    %v720 = vpack.c.bf16 %v697, %v696
    %v721 = vpack.c.bf16 %v551, %v549
    %v722 = vpack.c.bf16 %v699, %v698
    %v723 = vpack.c.bf16 %v555, %v553
    %v724 = vpack.c.bf16 %v701, %v700
    %v725 = vpack.c.bf16 %v559, %v557
    %v726 = vpack.c.bf16 %v703, %v702
    %v727 = vpack.c.bf16 %v563, %v561
    %v728 = vpack.c.bf16 %v705, %v704
    %v729 = vpack.c.bf16 %v567, %v565
    %v730 = vpack.c.bf16 %v707, %v706
    %v731 = vpack.c.bf16 %v571, %v569
    %v732 = vpack.c.bf16 %v709, %v708
    %v733 = vpack.c.bf16 %v575, %v573
    %v734 = vpack.c.bf16 %v711, %v710
    %v735 = vpack.c.bf16 %v579, %v577
    %v736 = vpack.c.bf16 %v713, %v712
    %v737 = vpack.c.bf16 %v583, %v581
    %v738 = vpack.c.bf16 %v715, %v714
    %v739 = vpack.c.bf16 %v587, %v585
    %v740 = vpack.c.bf16 %v717, %v716
    %v741 = vpack.c.bf16 %v591, %v589
    %v742 = vpack.c.bf16 %v719, %v718
    %v743 = vpack.c.bf16 %v595, %v593
    %v744 = vld [vmem:[%s1] sm:$0xff]
    %v745 = vld [vmem:[%s1 + $0x8] sm:$0xff]
    %v746 = vld [vmem:[%s1 + $0x10] sm:$0xff]
    %v747 = vld [vmem:[%s1 + $0x18] sm:$0xff]
    %v748 = vld [vmem:[%s1 + $0x20] sm:$0xff]
    %v749 = vld [vmem:[%s1 + $0x28] sm:$0xff]
    %v750 = vld [vmem:[%s1 + $0x30] sm:$0xff]
    %v751 = vld [vmem:[%s1 + $0x38] sm:$0xff]
    %v752 = vld [vmem:[%s1 + $0x40] sm:$0xff]
    %v753 = vld [vmem:[%s1 + $0x48] sm:$0xff]
    %v754 = vld [vmem:[%s1 + $0x50] sm:$0xff]
    %v755 = vld [vmem:[%s1 + $0x58] sm:$0xff]
    %v756 = vld [vmem:[%s1 + $0x60] sm:$0xff]
    %v757 = vld [vmem:[%s1 + $0x68] sm:$0xff]
    %v758 = vld [vmem:[%s1 + $0x70] sm:$0xff]
    %v759 = vld [vmem:[%s1 + $0x78] sm:$0xff]
    %v760 = vld [vmem:[%s1 + $0x80] sm:$0xff]
    %v761 = vld [vmem:[%s1 + $0x88] sm:$0x33]
    %v762 = vld [vmem:[%s2] sm:$0x3]
    %v764 = vlaneseq
    %v765 = vshrl.u32 %v764, 7
    %v766 = vsub.s32 0, %v765
    %v767 = vrot.slane %v762, %v766
    %v768 = vlaneseq
    %v769 = vshrl.u32 %v768, 7
    %v770 = vsub.s32 1, %v769
    %v771 = vrot.slane %v762, %v770
    %v792 = vunpack.c.l.b16 %v744
    %v793 = vunpack.c.h.b16 %v744
    %v794 = vunpack.c.l.b16 %v745
    %v795 = vunpack.c.h.b16 %v745
    %v796 = vunpack.c.l.b16 %v746
    %v797 = vunpack.c.h.b16 %v746
    %v798 = vunpack.c.l.b16 %v747
    %v799 = vunpack.c.h.b16 %v747
    %v800 = vunpack.c.l.b16 %v748
    %v801 = vunpack.c.h.b16 %v748
    %v802 = vunpack.c.l.b16 %v749
    %v803 = vunpack.c.h.b16 %v749
    %v804 = vunpack.c.l.b16 %v750
    %v805 = vunpack.c.h.b16 %v750
    %v806 = vunpack.c.l.b16 %v751
    %v807 = vunpack.c.h.b16 %v751
    %v808 = vunpack.c.l.b16 %v752
    %v809 = vunpack.c.h.b16 %v752
    %v810 = vunpack.c.l.b16 %v753
    %v811 = vunpack.c.h.b16 %v753
    %v812 = vunpack.c.l.b16 %v754
    %v813 = vunpack.c.h.b16 %v754
    %v814 = vunpack.c.l.b16 %v755
    %v815 = vunpack.c.h.b16 %v755
    %v816 = vunpack.c.l.b16 %v756
    %v817 = vunpack.c.h.b16 %v756
    %v818 = vunpack.c.l.b16 %v757
    %v819 = vunpack.c.h.b16 %v757
    %v820 = vunpack.c.l.b16 %v758
    %v821 = vunpack.c.h.b16 %v758
    %v822 = vunpack.c.l.b16 %v759
    %v823 = vunpack.c.h.b16 %v759
    %v824 = vunpack.c.l.b16 %v760
    %v825 = vunpack.c.h.b16 %v760
    %v826 = vunpack.c.l.b16 %v761
    %v827 = vunpack.c.h.b16 %v761
    %v828 = vpack.c.b16 %v794, %v792
    %v829 = vpack.c.b16 %v795, %v793
    %v830 = vpack.c.b16 %v798, %v796
    %v831 = vpack.c.b16 %v799, %v797
    %v832 = vpack.c.b16 %v802, %v800
    %v833 = vpack.c.b16 %v803, %v801
    %v834 = vpack.c.b16 %v806, %v804
    %v835 = vpack.c.b16 %v807, %v805
    %v836 = vpack.c.b16 %v810, %v808
    %v837 = vpack.c.b16 %v811, %v809
    %v838 = vpack.c.b16 %v814, %v812
    %v839 = vpack.c.b16 %v815, %v813
    %v840 = vpack.c.b16 %v818, %v816
    %v841 = vpack.c.b16 %v819, %v817
    %v842 = vpack.c.b16 %v822, %v820
    %v843 = vpack.c.b16 %v823, %v821
    %v844 = vpack.c.b16 %v826, %v824
    %v845 = vpack.c.b16 %v827, %v825
    %vm862 = vcmask 97280
    %v864 = vsel %vm862, %v721, 0
    %v867 = vsel %vm862, %v723, 0
    %v870 = vsel %vm862, %v725, 0
    %v873 = vsel %vm862, %v727, 0
    %v876 = vsel %vm862, %v729, 0
    %v879 = vsel %vm862, %v731, 0
    %v882 = vsel %vm862, %v733, 0
    %v885 = vsel %vm862, %v735, 0
    %v888 = vsel %vm862, %v737, 0
    %v891 = vsel %vm862, %v739, 0
    %v894 = vsel %vm862, %v741, 0
    %v897 = vsel %vm862, %v743, 0
    %v900 = vsel %vm233, %v844, 0
    %v903 = vsel %vm233, %v845, 0
    %905 = vmatprep.subr.bf16.mxu0 %v829
    %906 = vmatpush1.bf16.msra.mxu0 %v828
    %907 = vmatprep.subr.bf16.mxu0 %v831
    %908 = vmatpush1.bf16.msra.mxu0 %v830
    %909 = vmatprep.subr.bf16.mxu0 %v833
    %910 = vmatpush1.bf16.msra.mxu0 %v832
    %911 = vmatprep.subr.bf16.mxu0 %v835
    %912 = vmatpush1.bf16.msra.mxu0 %v834
    %913 = vmatprep.subr.bf16.mxu0 %v837
    %914 = vmatpush1.bf16.msra.mxu0 %v836
    %915 = vmatprep.subr.bf16.mxu0 %v839
    %916 = vmatpush1.bf16.msra.mxu0 %v838
    %917 = vmatprep.subr.bf16.mxu0 %v841
    %918 = vmatpush1.bf16.msra.mxu0 %v840
    %919 = vmatprep.subr.bf16.mxu0 %v843
    %920 = vmatpush1.bf16.msra.mxu0 %v842
    %921 = vmatprep.subr.bf16.mxu0 %v903
    %922 = vmatpush1.bf16.msra.mxu0 %v900
    %923 = vmatprep.subr.bf16.mxu0 0
    %924 = vmatpush1.bf16.msra.mxu0 0
    %925 = vmatprep.subr.bf16.mxu0 0
    %926 = vmatpush1.bf16.msra.mxu0 0
    %927 = vmatprep.subr.bf16.mxu0 0
    %928 = vmatpush1.bf16.msra.mxu0 0
    %929 = vmatprep.subr.bf16.mxu0 0
    %930 = vmatpush1.bf16.msra.mxu0 0
    %931 = vmatprep.subr.bf16.mxu0 0
    %932 = vmatpush1.bf16.msra.mxu0 0
    %933 = vmatprep.subr.bf16.mxu0 0
    %934 = vmatpush1.bf16.msra.mxu0 0
    %935 = vmatprep.subr.bf16.mxu0 0
    %936 = vmatpush1.bf16.msra.mxu0 0
    %937 = vmatprep.mubr.bf16.mxu0 %v864
    %938 = vmatmul.mubr.bf16.gmra.mrb[0].mxu0 %v720
    %v939 = vpop.f32.mrb[0].mxu0
    %v940 = vadd.f32 %v767, %v939
    %v941 = vpop.f32.mrb[0].mxu0
    %v942 = vadd.f32 %v771, %v941
    %v943 = vpop.f32.mrb[0].mxu0
    %v944 = vadd.f32 %v767, %v943
    %v945 = vpop.f32.mrb[0].mxu0
    %v946 = vadd.f32 %v771, %v945
    %947 = vmatprep.mubr.bf16.mxu0 %v867
    %948 = vmatmul.mubr.bf16.gmra.mrb[0].mxu0 %v722
    %v949 = vpop.f32.mrb[0].mxu0
    %v950 = vadd.f32 %v767, %v949
    %v951 = vpop.f32.mrb[0].mxu0
    %v952 = vadd.f32 %v771, %v951
    %v953 = vpop.f32.mrb[0].mxu0
    %v954 = vadd.f32 %v767, %v953
    %v955 = vpop.f32.mrb[0].mxu0
    %v956 = vadd.f32 %v771, %v955
    %957 = vmatprep.mubr.bf16.mxu0 %v870
    %958 = vmatmul.mubr.bf16.gmra.mrb[0].mxu0 %v724
    %v959 = vpop.f32.mrb[0].mxu0
    %v960 = vadd.f32 %v767, %v959
    %v961 = vpop.f32.mrb[0].mxu0
    %v962 = vadd.f32 %v771, %v961
    %v963 = vpop.f32.mrb[0].mxu0
    %v964 = vadd.f32 %v767, %v963
    %v965 = vpop.f32.mrb[0].mxu0
    %v966 = vadd.f32 %v771, %v965
    %967 = vmatprep.mubr.bf16.mxu0 %v873
    %968 = vmatmul.mubr.bf16.gmra.mrb[0].mxu0 %v726
    %v969 = vpop.f32.mrb[0].mxu0
    %v970 = vadd.f32 %v767, %v969
    %v971 = vpop.f32.mrb[0].mxu0
    %v972 = vadd.f32 %v771, %v971
    %v973 = vpop.f32.mrb[0].mxu0
    %v974 = vadd.f32 %v767, %v973
    %v975 = vpop.f32.mrb[0].mxu0
    %v976 = vadd.f32 %v771, %v975
    %977 = vmatprep.mubr.bf16.mxu0 %v876
    %978 = vmatmul.mubr.bf16.gmra.mrb[0].mxu0 %v728
    %v979 = vpop.f32.mrb[0].mxu0
    %v980 = vadd.f32 %v767, %v979
    %v981 = vpop.f32.mrb[0].mxu0
    %v982 = vadd.f32 %v771, %v981
    %v983 = vpop.f32.mrb[0].mxu0
    %v984 = vadd.f32 %v767, %v983
    %v985 = vpop.f32.mrb[0].mxu0
    %v986 = vadd.f32 %v771, %v985
    %987 = vmatprep.mubr.bf16.mxu0 %v879
    %988 = vmatmul.mubr.bf16.gmra.mrb[0].mxu0 %v730
    %v989 = vpop.f32.mrb[0].mxu0
    %v990 = vadd.f32 %v767, %v989
    %v991 = vpop.f32.mrb[0].mxu0
    %v992 = vadd.f32 %v771, %v991
    %v993 = vpop.f32.mrb[0].mxu0
    %v994 = vadd.f32 %v767, %v993
    %v995 = vpop.f32.mrb[0].mxu0
    %v996 = vadd.f32 %v771, %v995
    %997 = vmatprep.mubr.bf16.mxu0 %v882
    %998 = vmatmul.mubr.bf16.gmra.mrb[0].mxu0 %v732
    %v999 = vpop.f32.mrb[0].mxu0
    %v1000 = vadd.f32 %v767, %v999
    %v1001 = vpop.f32.mrb[0].mxu0
    %v1002 = vadd.f32 %v771, %v1001
    %v1003 = vpop.f32.mrb[0].mxu0
    %v1004 = vadd.f32 %v767, %v1003
    %v1005 = vpop.f32.mrb[0].mxu0
    %v1006 = vadd.f32 %v771, %v1005
    %1007 = vmatprep.mubr.bf16.mxu0 %v885
    %1008 = vmatmul.mubr.bf16.gmra.mrb[0].mxu0 %v734
    %v1009 = vpop.f32.mrb[0].mxu0
    %v1010 = vadd.f32 %v767, %v1009
    %v1011 = vpop.f32.mrb[0].mxu0
    %v1012 = vadd.f32 %v771, %v1011
    %v1013 = vpop.f32.mrb[0].mxu0
    %v1014 = vadd.f32 %v767, %v1013
    %v1015 = vpop.f32.mrb[0].mxu0
    %v1016 = vadd.f32 %v771, %v1015
    %1017 = vmatprep.mubr.bf16.mxu0 %v888
    %1018 = vmatmul.mubr.bf16.gmra.mrb[0].mxu0 %v736
    %v1019 = vpop.f32.mrb[0].mxu0
    %v1020 = vadd.f32 %v767, %v1019
    %v1021 = vpop.f32.mrb[0].mxu0
    %v1022 = vadd.f32 %v771, %v1021
    %v1023 = vpop.f32.mrb[0].mxu0
    %v1024 = vadd.f32 %v767, %v1023
    %v1025 = vpop.f32.mrb[0].mxu0
    %v1026 = vadd.f32 %v771, %v1025
    %1027 = vmatprep.mubr.bf16.mxu0 %v891
    %1028 = vmatmul.mubr.bf16.gmra.mrb[0].mxu0 %v738
    %v1029 = vpop.f32.mrb[0].mxu0
    %v1030 = vadd.f32 %v767, %v1029
    %v1031 = vpop.f32.mrb[0].mxu0
    %v1032 = vadd.f32 %v771, %v1031
    %v1033 = vpop.f32.mrb[0].mxu0
    %v1034 = vadd.f32 %v767, %v1033
    %v1035 = vpop.f32.mrb[0].mxu0
    %v1036 = vadd.f32 %v771, %v1035
    %1037 = vmatprep.mubr.bf16.mxu0 %v894
    %1038 = vmatmul.mubr.bf16.gmra.mrb[0].mxu0 %v740
    %v1039 = vpop.f32.mrb[0].mxu0
    %v1040 = vadd.f32 %v767, %v1039
    %v1041 = vpop.f32.mrb[0].mxu0
    %v1042 = vadd.f32 %v771, %v1041
    %v1043 = vpop.f32.mrb[0].mxu0
    %v1044 = vadd.f32 %v767, %v1043
    %v1045 = vpop.f32.mrb[0].mxu0
    %v1046 = vadd.f32 %v771, %v1045
    %1047 = vmatprep.mubr.bf16.mxu0 %v897
    %1048 = vmatmul.mubr.bf16.gmra.mrb[0].mxu0 %v742
    %v1049 = vpop.f32.mrb[0].mxu0
    %v1050 = vadd.f32 %v767, %v1049
    %v1051 = vpop.f32.mrb[0].mxu0
    %v1052 = vadd.f32 %v771, %v1051
    %v1053 = vpop.f32.mrb[0].mxu0
    %v1054 = vadd.f32 %v767, %v1053
    %v1055 = vpop.f32.mrb[0].mxu0
    %v1056 = vadd.f32 %v771, %v1055
    %1057 = vdwg.mxu0
    %v1058 = vmax.f32 %v940, 0.0
    %v1059 = vmax.f32 %v942, 0.0
    %v1060 = vmax.f32 %v944, 0.0
    %v1061 = vmax.f32 %v946, 0.0
    %v1062 = vmax.f32 %v950, 0.0
    %v1063 = vmax.f32 %v952, 0.0
    %v1064 = vmax.f32 %v954, 0.0
    %v1065 = vmax.f32 %v956, 0.0
    %v1066 = vmax.f32 %v960, 0.0
    %v1067 = vmax.f32 %v962, 0.0
    %v1068 = vmax.f32 %v964, 0.0
    %v1069 = vmax.f32 %v966, 0.0
    %v1070 = vmax.f32 %v970, 0.0
    %v1071 = vmax.f32 %v972, 0.0
    %v1072 = vmax.f32 %v974, 0.0
    %v1073 = vmax.f32 %v976, 0.0
    %v1074 = vmax.f32 %v980, 0.0
    %v1075 = vmax.f32 %v982, 0.0
    %v1076 = vmax.f32 %v984, 0.0
    %v1077 = vmax.f32 %v986, 0.0
    %v1078 = vmax.f32 %v990, 0.0
    %v1079 = vmax.f32 %v992, 0.0
    %v1080 = vmax.f32 %v994, 0.0
    %v1081 = vmax.f32 %v996, 0.0
    %v1082 = vmax.f32 %v1000, 0.0
    %v1083 = vmax.f32 %v1002, 0.0
    %v1084 = vmax.f32 %v1004, 0.0
    %v1085 = vmax.f32 %v1006, 0.0
    %v1086 = vmax.f32 %v1010, 0.0
    %v1087 = vmax.f32 %v1012, 0.0
    %v1088 = vmax.f32 %v1014, 0.0
    %v1089 = vmax.f32 %v1016, 0.0
    %v1090 = vmax.f32 %v1020, 0.0
    %v1091 = vmax.f32 %v1022, 0.0
    %v1092 = vmax.f32 %v1024, 0.0
    %v1093 = vmax.f32 %v1026, 0.0
    %v1094 = vmax.f32 %v1030, 0.0
    %v1095 = vmax.f32 %v1032, 0.0
    %v1096 = vmax.f32 %v1034, 0.0
    %v1097 = vmax.f32 %v1036, 0.0
    %v1098 = vmax.f32 %v1040, 0.0
    %v1099 = vmax.f32 %v1042, 0.0
    %v1100 = vmax.f32 %v1044, 0.0
    %v1101 = vmax.f32 %v1046, 0.0
    %v1102 = vmax.f32 %v1050, 0.0
    %v1103 = vmax.f32 %v1052, 0.0
    %v1104 = vmax.f32 %v1054, 0.0
    %v1105 = vmax.f32 %v1056, 0.0
    %1154 = vrot.lane.b32.xlu0 %v1058, 56
    %v1155 = vpop.permute.xlu0 %1154
    %1156 = vrot.lane.b32.xlu0 %v1059, 56
    %v1157 = vpop.permute.xlu0 %1156
    %1158 = vrot.lane.b32.xlu0 %v1060, 56
    %v1159 = vpop.permute.xlu0 %1158
    %1160 = vrot.lane.b32.xlu0 %v1061, 56
    %v1161 = vpop.permute.xlu0 %1160
    %1162 = vrot.lane.b32.xlu0 %v1062, 56
    %v1163 = vpop.permute.xlu0 %1162
    %1164 = vrot.lane.b32.xlu0 %v1063, 56
    %v1165 = vpop.permute.xlu0 %1164
    %1166 = vrot.lane.b32.xlu0 %v1064, 56
    %v1167 = vpop.permute.xlu0 %1166
    %1168 = vrot.lane.b32.xlu0 %v1065, 56
    %v1169 = vpop.permute.xlu0 %1168
    %1170 = vrot.lane.b32.xlu0 %v1066, 56
    %v1171 = vpop.permute.xlu0 %1170
    %1172 = vrot.lane.b32.xlu0 %v1067, 56
    %v1173 = vpop.permute.xlu0 %1172
    %1174 = vrot.lane.b32.xlu0 %v1068, 56
    %v1175 = vpop.permute.xlu0 %1174
    %1176 = vrot.lane.b32.xlu0 %v1069, 56
    %v1177 = vpop.permute.xlu0 %1176
    %1178 = vrot.lane.b32.xlu0 %v1070, 56
    %v1179 = vpop.permute.xlu0 %1178
    %1180 = vrot.lane.b32.xlu0 %v1071, 56
    %v1181 = vpop.permute.xlu0 %1180
    %1182 = vrot.lane.b32.xlu0 %v1072, 56
    %v1183 = vpop.permute.xlu0 %1182
    %1184 = vrot.lane.b32.xlu0 %v1073, 56
    %v1185 = vpop.permute.xlu0 %1184
    %1186 = vrot.lane.b32.xlu0 %v1074, 56
    %v1187 = vpop.permute.xlu0 %1186
    %1188 = vrot.lane.b32.xlu0 %v1075, 56
    %v1189 = vpop.permute.xlu0 %1188
    %1190 = vrot.lane.b32.xlu0 %v1076, 56
    %v1191 = vpop.permute.xlu0 %1190
    %1192 = vrot.lane.b32.xlu0 %v1077, 56
    %v1193 = vpop.permute.xlu0 %1192
    %1194 = vrot.lane.b32.xlu0 %v1078, 56
    %v1195 = vpop.permute.xlu0 %1194
    %1196 = vrot.lane.b32.xlu0 %v1079, 56
    %v1197 = vpop.permute.xlu0 %1196
    %1198 = vrot.lane.b32.xlu0 %v1080, 56
    %v1199 = vpop.permute.xlu0 %1198
    %1200 = vrot.lane.b32.xlu0 %v1081, 56
    %v1201 = vpop.permute.xlu0 %1200
    %1202 = vrot.lane.b32.xlu0 %v1082, 56
    %v1203 = vpop.permute.xlu0 %1202
    %1204 = vrot.lane.b32.xlu0 %v1083, 56
    %v1205 = vpop.permute.xlu0 %1204
    %1206 = vrot.lane.b32.xlu0 %v1084, 56
    %v1207 = vpop.permute.xlu0 %1206
    %1208 = vrot.lane.b32.xlu0 %v1085, 56
    %v1209 = vpop.permute.xlu0 %1208
    %1210 = vrot.lane.b32.xlu0 %v1086, 56
    %v1211 = vpop.permute.xlu0 %1210
    %1212 = vrot.lane.b32.xlu0 %v1087, 56
    %v1213 = vpop.permute.xlu0 %1212
    %1214 = vrot.lane.b32.xlu0 %v1088, 56
    %v1215 = vpop.permute.xlu0 %1214
    %1216 = vrot.lane.b32.xlu0 %v1089, 56
    %v1217 = vpop.permute.xlu0 %1216
    %1218 = vrot.lane.b32.xlu0 %v1090, 56
    %v1219 = vpop.permute.xlu0 %1218
    %1220 = vrot.lane.b32.xlu0 %v1091, 56
    %v1221 = vpop.permute.xlu0 %1220
    %1222 = vrot.lane.b32.xlu0 %v1092, 56
    %v1223 = vpop.permute.xlu0 %1222
    %1224 = vrot.lane.b32.xlu0 %v1093, 56
    %v1225 = vpop.permute.xlu0 %1224
    %1226 = vrot.lane.b32.xlu0 %v1094, 56
    %v1227 = vpop.permute.xlu0 %1226
    %1228 = vrot.lane.b32.xlu0 %v1095, 56
    %v1229 = vpop.permute.xlu0 %1228
    %1230 = vrot.lane.b32.xlu0 %v1096, 56
    %v1231 = vpop.permute.xlu0 %1230
    %1232 = vrot.lane.b32.xlu0 %v1097, 56
    %v1233 = vpop.permute.xlu0 %1232
    %1234 = vrot.lane.b32.xlu0 %v1098, 56
    %v1235 = vpop.permute.xlu0 %1234
    %1236 = vrot.lane.b32.xlu0 %v1099, 56
    %v1237 = vpop.permute.xlu0 %1236
    %1238 = vrot.lane.b32.xlu0 %v1100, 56
    %v1239 = vpop.permute.xlu0 %1238
    %1240 = vrot.lane.b32.xlu0 %v1101, 56
    %v1241 = vpop.permute.xlu0 %1240
    %1242 = vrot.lane.b32.xlu0 %v1102, 56
    %v1243 = vpop.permute.xlu0 %1242
    %1244 = vrot.lane.b32.xlu0 %v1103, 56
    %v1245 = vpop.permute.xlu0 %1244
    %1246 = vrot.lane.b32.xlu0 %v1104, 56
    %v1247 = vpop.permute.xlu0 %1246
    %1248 = vrot.lane.b32.xlu0 %v1105, 56
    %v1249 = vpop.permute.xlu0 %1248
    %v1250 = vsel %vm645, %v1155, %v1157
    %v1251 = vsel %vm645, %v1159, %v1161
    %v1252 = vsel %vm645, %v1163, %v1165
    %v1253 = vsel %vm645, %v1167, %v1169
    %v1254 = vsel %vm645, %v1171, %v1173
    %v1255 = vsel %vm645, %v1175, %v1177
    %v1256 = vsel %vm645, %v1179, %v1181
    %v1257 = vsel %vm645, %v1183, %v1185
    %v1258 = vsel %vm645, %v1187, %v1189
    %v1259 = vsel %vm645, %v1191, %v1193
    %v1260 = vsel %vm645, %v1195, %v1197
    %v1261 = vsel %vm645, %v1199, %v1201
    %v1262 = vsel %vm645, %v1203, %v1205
    %v1263 = vsel %vm645, %v1207, %v1209
    %v1264 = vsel %vm645, %v1211, %v1213
    %v1265 = vsel %vm645, %v1215, %v1217
    %v1266 = vsel %vm645, %v1219, %v1221
    %v1267 = vsel %vm645, %v1223, %v1225
    %v1268 = vsel %vm645, %v1227, %v1229
    %v1269 = vsel %vm645, %v1231, %v1233
    %v1270 = vsel %vm645, %v1235, %v1237
    %v1271 = vsel %vm645, %v1239, %v1241
    %v1272 = vsel %vm645, %v1243, %v1245
    %v1273 = vsel %vm645, %v1247, %v1249
    %v1298 = vmax.f32 %v1058, %v1250
    %v1299 = vmax.f32 %v1060, %v1251
    %v1300 = vmax.f32 %v1062, %v1252
    %v1301 = vmax.f32 %v1064, %v1253
    %v1302 = vmax.f32 %v1066, %v1254
    %v1303 = vmax.f32 %v1068, %v1255
    %v1304 = vmax.f32 %v1070, %v1256
    %v1305 = vmax.f32 %v1072, %v1257
    %v1306 = vmax.f32 %v1074, %v1258
    %v1307 = vmax.f32 %v1076, %v1259
    %v1308 = vmax.f32 %v1078, %v1260
    %v1309 = vmax.f32 %v1080, %v1261
    %v1310 = vmax.f32 %v1082, %v1262
    %v1311 = vmax.f32 %v1084, %v1263
    %v1312 = vmax.f32 %v1086, %v1264
    %v1313 = vmax.f32 %v1088, %v1265
    %v1314 = vmax.f32 %v1090, %v1266
    %v1315 = vmax.f32 %v1092, %v1267
    %v1316 = vmax.f32 %v1094, %v1268
    %v1317 = vmax.f32 %v1096, %v1269
    %v1318 = vmax.f32 %v1098, %v1270
    %v1319 = vmax.f32 %v1100, %v1271
    %v1320 = vmax.f32 %v1102, %v1272
    %v1321 = vmax.f32 %v1104, %v1273
    %vm1322 = vcmask 588800
    %1323 = vst.msk [vmem:[#allocation2] sm:$0xff] %vm1322, %v1298
    %1324 = vst.msk [vmem:[#allocation2 + $0x8] sm:$0xff] %vm1322, %v1299
    %1325 = vst.msk [vmem:[#allocation2 + $0x10] sm:$0xff] %vm1322, %v1300
    %1326 = vst.msk [vmem:[#allocation2 + $0x18] sm:$0xff] %vm1322, %v1301
    %1327 = vst.msk [vmem:[#allocation2 + $0x20] sm:$0xff] %vm1322, %v1302
    %1328 = vst.msk [vmem:[#allocation2 + $0x28] sm:$0xff] %vm1322, %v1303
    %1329 = vst.msk [vmem:[#allocation2 + $0x30] sm:$0xff] %vm1322, %v1304
    %1330 = vst.msk [vmem:[#allocation2 + $0x38] sm:$0xff] %vm1322, %v1305
    %1331 = vst.msk [vmem:[#allocation2 + $0x40] sm:$0xff] %vm1322, %v1306
    %1332 = vst.msk [vmem:[#allocation2 + $0x48] sm:$0xff] %vm1322, %v1307
    %1333 = vst.msk [vmem:[#allocation2 + $0x50] sm:$0xff] %vm1322, %v1308
    %1334 = vst.msk [vmem:[#allocation2 + $0x58] sm:$0xff] %vm1322, %v1309
    %1335 = vst.msk [vmem:[#allocation2 + $0x60] sm:$0xff] %vm1322, %v1310
    %1336 = vst.msk [vmem:[#allocation2 + $0x68] sm:$0xff] %vm1322, %v1311
    %1337 = vst.msk [vmem:[#allocation2 + $0x70] sm:$0xff] %vm1322, %v1312
    %1338 = vst.msk [vmem:[#allocation2 + $0x78] sm:$0xff] %vm1322, %v1313
    %1339 = vst.msk [vmem:[#allocation2 + $0x80] sm:$0xff] %vm1322, %v1314
    %1340 = vst.msk [vmem:[#allocation2 + $0x88] sm:$0xff] %vm1322, %v1315
    %1341 = vst.msk [vmem:[#allocation2 + $0x90] sm:$0xff] %vm1322, %v1316
    %1342 = vst.msk [vmem:[#allocation2 + $0x98] sm:$0xff] %vm1322, %v1317
    %1343 = vst.msk [vmem:[#allocation2 + $0xa0] sm:$0xff] %vm1322, %v1318
    %1344 = vst.msk [vmem:[#allocation2 + $0xa8] sm:$0xff] %vm1322, %v1319
    %1345 = vst.msk [vmem:[#allocation2 + $0xb0] sm:$0xff] %vm1322, %v1320
    %1346 = vst.msk [vmem:[#allocation2 + $0xb8] sm:$0xff] %vm1322, %v1321
    %v1347 = vld [vmem:[#allocation2] ss:$2 sm:$0xff]
    %s1348 = scalar_lea.vmem [#allocation2], 16
    %v1349 = vld [vmem:[%s1348] ss:$2 sm:$0xf]
    %s1350 = scalar_lea.vmem [#allocation2], 24
    %v1351 = vld [vmem:[%s1350] ss:$2 sm:$0xff]
    %s1352 = scalar_lea.vmem [#allocation2], 40
    %v1353 = vld [vmem:[%s1352] ss:$2 sm:$0xf]
    %s1354 = scalar_lea.vmem [#allocation2], 48
    %v1355 = vld [vmem:[%s1354] ss:$2 sm:$0xff]
    %s1356 = scalar_lea.vmem [#allocation2], 64
    %v1357 = vld [vmem:[%s1356] ss:$2 sm:$0xf]
    %s1358 = scalar_lea.vmem [#allocation2], 72
    %v1359 = vld [vmem:[%s1358] ss:$2 sm:$0xff]
    %s1360 = scalar_lea.vmem [#allocation2], 88
    %v1361 = vld [vmem:[%s1360] ss:$2 sm:$0xf]
    %s1362 = scalar_lea.vmem [#allocation2], 96
    %v1363 = vld [vmem:[%s1362] ss:$2 sm:$0xff]
    %s1364 = scalar_lea.vmem [#allocation2], 112
    %v1365 = vld [vmem:[%s1364] ss:$2 sm:$0xf]
    %s1366 = scalar_lea.vmem [#allocation2], 120
    %v1367 = vld [vmem:[%s1366] ss:$2 sm:$0xff]
    %s1368 = scalar_lea.vmem [#allocation2], 136
    %v1369 = vld [vmem:[%s1368] ss:$2 sm:$0xf]
    %s1370 = scalar_lea.vmem [#allocation2], 144
    %v1371 = vld [vmem:[%s1370] ss:$2 sm:$0xff]
    %s1372 = scalar_lea.vmem [#allocation2], 160
    %v1373 = vld [vmem:[%s1372] ss:$2 sm:$0xf]
    %s1374 = scalar_lea.vmem [#allocation2], 168
    %v1375 = vld [vmem:[%s1374] ss:$2 sm:$0xff]
    %s1376 = scalar_lea.vmem [#allocation2], 184
    %v1377 = vld [vmem:[%s1376] ss:$2 sm:$0xf]
    %s1378 = scalar_lea.vmem [#allocation2], 1
    %v1379 = vld [vmem:[%s1378] ss:$2 sm:$0xff]
    %s1380 = scalar_lea.vmem [#allocation2], 17
    %v1381 = vld [vmem:[%s1380] ss:$2 sm:$0xf]
    %s1382 = scalar_lea.vmem [#allocation2], 25
    %v1383 = vld [vmem:[%s1382] ss:$2 sm:$0xff]
    %s1384 = scalar_lea.vmem [#allocation2], 41
    %v1385 = vld [vmem:[%s1384] ss:$2 sm:$0xf]
    %s1386 = scalar_lea.vmem [#allocation2], 49
    %v1387 = vld [vmem:[%s1386] ss:$2 sm:$0xff]
    %s1388 = scalar_lea.vmem [#allocation2], 65
    %v1389 = vld [vmem:[%s1388] ss:$2 sm:$0xf]
    %s1390 = scalar_lea.vmem [#allocation2], 73
    %v1391 = vld [vmem:[%s1390] ss:$2 sm:$0xff]
    %s1392 = scalar_lea.vmem [#allocation2], 89
    %v1393 = vld [vmem:[%s1392] ss:$2 sm:$0xf]
    %s1394 = scalar_lea.vmem [#allocation2], 97
    %v1395 = vld [vmem:[%s1394] ss:$2 sm:$0xff]
    %s1396 = scalar_lea.vmem [#allocation2], 113
    %v1397 = vld [vmem:[%s1396] ss:$2 sm:$0xf]
    %s1398 = scalar_lea.vmem [#allocation2], 121
    %v1399 = vld [vmem:[%s1398] ss:$2 sm:$0xff]
    %s1400 = scalar_lea.vmem [#allocation2], 137
    %v1401 = vld [vmem:[%s1400] ss:$2 sm:$0xf]
    %s1402 = scalar_lea.vmem [#allocation2], 145
    %v1403 = vld [vmem:[%s1402] ss:$2 sm:$0xff]
    %s1404 = scalar_lea.vmem [#allocation2], 161
    %v1405 = vld [vmem:[%s1404] ss:$2 sm:$0xf]
    %s1406 = scalar_lea.vmem [#allocation2], 169
    %v1407 = vld [vmem:[%s1406] ss:$2 sm:$0xff]
    %s1408 = scalar_lea.vmem [#allocation2], 185
    %v1409 = vld [vmem:[%s1408] ss:$2 sm:$0xf]
    %v1410 = vmax.f32 %v1347, %v1379
    %v1411 = vmax.f32 %v1349, %v1381
    %v1412 = vmax.f32 %v1351, %v1383
    %v1413 = vmax.f32 %v1353, %v1385
    %v1414 = vmax.f32 %v1355, %v1387
    %v1415 = vmax.f32 %v1357, %v1389
    %v1416 = vmax.f32 %v1359, %v1391
    %v1417 = vmax.f32 %v1361, %v1393
    %v1418 = vmax.f32 %v1363, %v1395
    %v1419 = vmax.f32 %v1365, %v1397
    %v1420 = vmax.f32 %v1367, %v1399
    %v1421 = vmax.f32 %v1369, %v1401
    %v1422 = vmax.f32 %v1371, %v1403
    %v1423 = vmax.f32 %v1373, %v1405
    %v1424 = vmax.f32 %v1375, %v1407
    %v1425 = vmax.f32 %v1377, %v1409
    %v1442 = vrot.slane %v1410, 1
    %v1443 = vrot.slane %v1411, 1
    %v1444 = vsel %vm104, %v1442, %v1443
    %v1445 = vrot.slane %v1412, 1
    %v1446 = vrot.slane %v1413, 1
    %v1447 = vsel %vm104, %v1445, %v1446
    %v1448 = vrot.slane %v1414, 1
    %v1449 = vrot.slane %v1415, 1
    %v1450 = vsel %vm104, %v1448, %v1449
    %v1451 = vrot.slane %v1416, 1
    %v1452 = vrot.slane %v1417, 1
    %v1453 = vsel %vm104, %v1451, %v1452
    %v1454 = vrot.slane %v1418, 1
    %v1455 = vrot.slane %v1419, 1
    %v1456 = vsel %vm104, %v1454, %v1455
    %v1457 = vrot.slane %v1420, 1
    %v1458 = vrot.slane %v1421, 1
    %v1459 = vsel %vm104, %v1457, %v1458
    %v1460 = vrot.slane %v1422, 1
    %v1461 = vrot.slane %v1423, 1
    %v1462 = vsel %vm104, %v1460, %v1461
    %v1463 = vrot.slane %v1424, 1
    %v1464 = vrot.slane %v1425, 1
    %v1465 = vsel %vm104, %v1463, %v1464
    %1466 = vrot.lane.b32.xlu0 %v1444, 12
    %v1467 = vpop.permute.xlu0 %1466
    %1468 = vrot.lane.b32.xlu0 %v1447, 12
    %v1469 = vpop.permute.xlu0 %1468
    %1470 = vrot.lane.b32.xlu0 %v1450, 12
    %v1471 = vpop.permute.xlu0 %1470
    %1472 = vrot.lane.b32.xlu0 %v1453, 12
    %v1473 = vpop.permute.xlu0 %1472
    %1474 = vrot.lane.b32.xlu0 %v1456, 12
    %v1475 = vpop.permute.xlu0 %1474
    %1476 = vrot.lane.b32.xlu0 %v1459, 12
    %v1477 = vpop.permute.xlu0 %1476
    %1478 = vrot.lane.b32.xlu0 %v1462, 12
    %v1479 = vpop.permute.xlu0 %1478
    %1480 = vrot.lane.b32.xlu0 %v1465, 12
    %v1481 = vpop.permute.xlu0 %1480
    %v1490 = vrot.slane %v1410, 2
    %v1491 = vrot.slane %v1411, 2
    %v1492 = vsel %vm233, %v1490, %v1491
    %v1493 = vrot.slane %v1412, 2
    %v1494 = vrot.slane %v1413, 2
    %v1495 = vsel %vm233, %v1493, %v1494
    %v1496 = vrot.slane %v1414, 2
    %v1497 = vrot.slane %v1415, 2
    %v1498 = vsel %vm233, %v1496, %v1497
    %v1499 = vrot.slane %v1416, 2
    %v1500 = vrot.slane %v1417, 2
    %v1501 = vsel %vm233, %v1499, %v1500
    %v1502 = vrot.slane %v1418, 2
    %v1503 = vrot.slane %v1419, 2
    %v1504 = vsel %vm233, %v1502, %v1503
    %v1505 = vrot.slane %v1420, 2
    %v1506 = vrot.slane %v1421, 2
    %v1507 = vsel %vm233, %v1505, %v1506
    %v1508 = vrot.slane %v1422, 2
    %v1509 = vrot.slane %v1423, 2
    %v1510 = vsel %vm233, %v1508, %v1509
    %v1511 = vrot.slane %v1424, 2
    %v1512 = vrot.slane %v1425, 2
    %v1513 = vsel %vm233, %v1511, %v1512
    %1514 = vrot.lane.b32.xlu0 %v1492, 24
    %v1515 = vpop.permute.xlu0 %1514
    %1516 = vrot.lane.b32.xlu0 %v1495, 24
    %v1517 = vpop.permute.xlu0 %1516
    %1518 = vrot.lane.b32.xlu0 %v1498, 24
    %v1519 = vpop.permute.xlu0 %1518
    %1520 = vrot.lane.b32.xlu0 %v1501, 24
    %v1521 = vpop.permute.xlu0 %1520
    %1522 = vrot.lane.b32.xlu0 %v1504, 24
    %v1523 = vpop.permute.xlu0 %1522
    %1524 = vrot.lane.b32.xlu0 %v1507, 24
    %v1525 = vpop.permute.xlu0 %1524
    %1526 = vrot.lane.b32.xlu0 %v1510, 24
    %v1527 = vpop.permute.xlu0 %1526
    %1528 = vrot.lane.b32.xlu0 %v1513, 24
    %v1529 = vpop.permute.xlu0 %1528
    %v1538 = vrot.slane %v1410, 3
    %v1539 = vrot.slane %v1411, 3
    %v1540 = vsel %vm362, %v1538, %v1539
    %v1541 = vrot.slane %v1412, 3
    %v1542 = vrot.slane %v1413, 3
    %v1543 = vsel %vm362, %v1541, %v1542
    %v1544 = vrot.slane %v1414, 3
    %v1545 = vrot.slane %v1415, 3
    %v1546 = vsel %vm362, %v1544, %v1545
    %v1547 = vrot.slane %v1416, 3
    %v1548 = vrot.slane %v1417, 3
    %v1549 = vsel %vm362, %v1547, %v1548
    %v1550 = vrot.slane %v1418, 3
    %v1551 = vrot.slane %v1419, 3
    %v1552 = vsel %vm362, %v1550, %v1551
    %v1553 = vrot.slane %v1420, 3
    %v1554 = vrot.slane %v1421, 3
    %v1555 = vsel %vm362, %v1553, %v1554
    %v1556 = vrot.slane %v1422, 3
    %v1557 = vrot.slane %v1423, 3
    %v1558 = vsel %vm362, %v1556, %v1557
    %v1559 = vrot.slane %v1424, 3
    %v1560 = vrot.slane %v1425, 3
    %v1561 = vsel %vm362, %v1559, %v1560
    %1562 = vrot.lane.b32.xlu0 %v1540, 36
    %v1563 = vpop.permute.xlu0 %1562
    %1564 = vrot.lane.b32.xlu0 %v1543, 36
    %v1565 = vpop.permute.xlu0 %1564
    %1566 = vrot.lane.b32.xlu0 %v1546, 36
    %v1567 = vpop.permute.xlu0 %1566
    %1568 = vrot.lane.b32.xlu0 %v1549, 36
    %v1569 = vpop.permute.xlu0 %1568
    %1570 = vrot.lane.b32.xlu0 %v1552, 36
    %v1571 = vpop.permute.xlu0 %1570
    %1572 = vrot.lane.b32.xlu0 %v1555, 36
    %v1573 = vpop.permute.xlu0 %1572
    %1574 = vrot.lane.b32.xlu0 %v1558, 36
    %v1575 = vpop.permute.xlu0 %1574
    %1576 = vrot.lane.b32.xlu0 %v1561, 36
    %v1577 = vpop.permute.xlu0 %1576
    %v1586 = vrot.slane %v1410, 4
    %v1587 = vrot.slane %v1411, 4
    %v1588 = vsel %vm491, %v1586, %v1587
    %v1589 = vrot.slane %v1412, 4
    %v1590 = vrot.slane %v1413, 4
    %v1591 = vsel %vm491, %v1589, %v1590
    %v1592 = vrot.slane %v1414, 4
    %v1593 = vrot.slane %v1415, 4
    %v1594 = vsel %vm491, %v1592, %v1593
    %v1595 = vrot.slane %v1416, 4
    %v1596 = vrot.slane %v1417, 4
    %v1597 = vsel %vm491, %v1595, %v1596
    %v1598 = vrot.slane %v1418, 4
    %v1599 = vrot.slane %v1419, 4
    %v1600 = vsel %vm491, %v1598, %v1599
    %v1601 = vrot.slane %v1420, 4
    %v1602 = vrot.slane %v1421, 4
    %v1603 = vsel %vm491, %v1601, %v1602
    %v1604 = vrot.slane %v1422, 4
    %v1605 = vrot.slane %v1423, 4
    %v1606 = vsel %vm491, %v1604, %v1605
    %v1607 = vrot.slane %v1424, 4
    %v1608 = vrot.slane %v1425, 4
    %v1609 = vsel %vm491, %v1607, %v1608
    %1610 = vrot.lane.b32.xlu0 %v1588, 48
    %v1611 = vpop.permute.xlu0 %1610
    %1612 = vrot.lane.b32.xlu0 %v1591, 48
    %v1613 = vpop.permute.xlu0 %1612
    %1614 = vrot.lane.b32.xlu0 %v1594, 48
    %v1615 = vpop.permute.xlu0 %1614
    %1616 = vrot.lane.b32.xlu0 %v1597, 48
    %v1617 = vpop.permute.xlu0 %1616
    %1618 = vrot.lane.b32.xlu0 %v1600, 48
    %v1619 = vpop.permute.xlu0 %1618
    %1620 = vrot.lane.b32.xlu0 %v1603, 48
    %v1621 = vpop.permute.xlu0 %1620
    %1622 = vrot.lane.b32.xlu0 %v1606, 48
    %v1623 = vpop.permute.xlu0 %1622
    %1624 = vrot.lane.b32.xlu0 %v1609, 48
    %v1625 = vpop.permute.xlu0 %1624
    %1634 = vrot.lane.b32.xlu0 %v1410, 48
    %v1635 = vpop.permute.xlu0 %1634
    %1636 = vrot.lane.b32.xlu0 %v1412, 48
    %v1637 = vpop.permute.xlu0 %1636
    %1638 = vrot.lane.b32.xlu0 %v1414, 48
    %v1639 = vpop.permute.xlu0 %1638
    %1640 = vrot.lane.b32.xlu0 %v1416, 48
    %v1641 = vpop.permute.xlu0 %1640
    %1642 = vrot.lane.b32.xlu0 %v1418, 48
    %v1643 = vpop.permute.xlu0 %1642
    %1644 = vrot.lane.b32.xlu0 %v1420, 48
    %v1645 = vpop.permute.xlu0 %1644
    %1646 = vrot.lane.b32.xlu0 %v1422, 48
    %v1647 = vpop.permute.xlu0 %1646
    %1648 = vrot.lane.b32.xlu0 %v1424, 48
    %v1649 = vpop.permute.xlu0 %1648
    %1658 = vrot.lane.b32.xlu0 %v1444, 60
    %v1659 = vpop.permute.xlu0 %1658
    %1660 = vrot.lane.b32.xlu0 %v1447, 60
    %v1661 = vpop.permute.xlu0 %1660
    %1662 = vrot.lane.b32.xlu0 %v1450, 60
    %v1663 = vpop.permute.xlu0 %1662
    %1664 = vrot.lane.b32.xlu0 %v1453, 60
    %v1665 = vpop.permute.xlu0 %1664
    %1666 = vrot.lane.b32.xlu0 %v1456, 60
    %v1667 = vpop.permute.xlu0 %1666
    %1668 = vrot.lane.b32.xlu0 %v1459, 60
    %v1669 = vpop.permute.xlu0 %1668
    %1670 = vrot.lane.b32.xlu0 %v1462, 60
    %v1671 = vpop.permute.xlu0 %1670
    %1672 = vrot.lane.b32.xlu0 %v1465, 60
    %v1673 = vpop.permute.xlu0 %1672
    %1682 = vrot.lane.b32.xlu0 %v1492, 72
    %v1683 = vpop.permute.xlu0 %1682
    %1684 = vrot.lane.b32.xlu0 %v1495, 72
    %v1685 = vpop.permute.xlu0 %1684
    %1686 = vrot.lane.b32.xlu0 %v1498, 72
    %v1687 = vpop.permute.xlu0 %1686
    %1688 = vrot.lane.b32.xlu0 %v1501, 72
    %v1689 = vpop.permute.xlu0 %1688
    %1690 = vrot.lane.b32.xlu0 %v1504, 72
    %v1691 = vpop.permute.xlu0 %1690
    %1692 = vrot.lane.b32.xlu0 %v1507, 72
    %v1693 = vpop.permute.xlu0 %1692
    %1694 = vrot.lane.b32.xlu0 %v1510, 72
    %v1695 = vpop.permute.xlu0 %1694
    %1696 = vrot.lane.b32.xlu0 %v1513, 72
    %v1697 = vpop.permute.xlu0 %1696
    %1706 = vrot.lane.b32.xlu0 %v1540, 84
    %v1707 = vpop.permute.xlu0 %1706
    %1708 = vrot.lane.b32.xlu0 %v1543, 84
    %v1709 = vpop.permute.xlu0 %1708
    %1710 = vrot.lane.b32.xlu0 %v1546, 84
    %v1711 = vpop.permute.xlu0 %1710
    %1712 = vrot.lane.b32.xlu0 %v1549, 84
    %v1713 = vpop.permute.xlu0 %1712
    %1714 = vrot.lane.b32.xlu0 %v1552, 84
    %v1715 = vpop.permute.xlu0 %1714
    %1716 = vrot.lane.b32.xlu0 %v1555, 84
    %v1717 = vpop.permute.xlu0 %1716
    %1718 = vrot.lane.b32.xlu0 %v1558, 84
    %v1719 = vpop.permute.xlu0 %1718
    %1720 = vrot.lane.b32.xlu0 %v1561, 84
    %v1721 = vpop.permute.xlu0 %1720
    %1730 = vrot.lane.b32.xlu0 %v1588, 96
    %v1731 = vpop.permute.xlu0 %1730
    %1732 = vrot.lane.b32.xlu0 %v1591, 96
    %v1733 = vpop.permute.xlu0 %1732
    %1734 = vrot.lane.b32.xlu0 %v1594, 96
    %v1735 = vpop.permute.xlu0 %1734
    %1736 = vrot.lane.b32.xlu0 %v1597, 96
    %v1737 = vpop.permute.xlu0 %1736
    %1738 = vrot.lane.b32.xlu0 %v1600, 96
    %v1739 = vpop.permute.xlu0 %1738
    %1740 = vrot.lane.b32.xlu0 %v1603, 96
    %v1741 = vpop.permute.xlu0 %1740
    %1742 = vrot.lane.b32.xlu0 %v1606, 96
    %v1743 = vpop.permute.xlu0 %1742
    %1744 = vrot.lane.b32.xlu0 %v1609, 96
    %v1745 = vpop.permute.xlu0 %1744
    %1754 = vrot.lane.b32.xlu0 %v1410, 96
    %v1755 = vpop.permute.xlu0 %1754
    %1756 = vrot.lane.b32.xlu0 %v1412, 96
    %v1757 = vpop.permute.xlu0 %1756
    %1758 = vrot.lane.b32.xlu0 %v1414, 96
    %v1759 = vpop.permute.xlu0 %1758
    %1760 = vrot.lane.b32.xlu0 %v1416, 96
    %v1761 = vpop.permute.xlu0 %1760
    %1762 = vrot.lane.b32.xlu0 %v1418, 96
    %v1763 = vpop.permute.xlu0 %1762
    %1764 = vrot.lane.b32.xlu0 %v1420, 96
    %v1765 = vpop.permute.xlu0 %1764
    %1766 = vrot.lane.b32.xlu0 %v1422, 96
    %v1767 = vpop.permute.xlu0 %1766
    %1768 = vrot.lane.b32.xlu0 %v1424, 96
    %v1769 = vpop.permute.xlu0 %1768
    %1778 = vrot.lane.b32.xlu0 %v1444, 108
    %v1779 = vpop.permute.xlu0 %1778
    %1780 = vrot.lane.b32.xlu0 %v1447, 108
    %v1781 = vpop.permute.xlu0 %1780
    %1782 = vrot.lane.b32.xlu0 %v1450, 108
    %v1783 = vpop.permute.xlu0 %1782
    %1784 = vrot.lane.b32.xlu0 %v1453, 108
    %v1785 = vpop.permute.xlu0 %1784
    %1786 = vrot.lane.b32.xlu0 %v1456, 108
    %v1787 = vpop.permute.xlu0 %1786
    %1788 = vrot.lane.b32.xlu0 %v1459, 108
    %v1789 = vpop.permute.xlu0 %1788
    %1790 = vrot.lane.b32.xlu0 %v1462, 108
    %v1791 = vpop.permute.xlu0 %1790
    %1792 = vrot.lane.b32.xlu0 %v1465, 108
    %v1793 = vpop.permute.xlu0 %1792
    %1802 = vrot.lane.b32.xlu0 %v1492, 120
    %v1803 = vpop.permute.xlu0 %1802
    %1804 = vrot.lane.b32.xlu0 %v1495, 120
    %v1805 = vpop.permute.xlu0 %1804
    %1806 = vrot.lane.b32.xlu0 %v1498, 120
    %v1807 = vpop.permute.xlu0 %1806
    %1808 = vrot.lane.b32.xlu0 %v1501, 120
    %v1809 = vpop.permute.xlu0 %1808
    %1810 = vrot.lane.b32.xlu0 %v1504, 120
    %v1811 = vpop.permute.xlu0 %1810
    %1812 = vrot.lane.b32.xlu0 %v1507, 120
    %v1813 = vpop.permute.xlu0 %1812
    %1814 = vrot.lane.b32.xlu0 %v1510, 120
    %v1815 = vpop.permute.xlu0 %1814
    %1816 = vrot.lane.b32.xlu0 %v1513, 120
    %v1817 = vpop.permute.xlu0 %1816
    %1826 = vrot.lane.b32.xlu0 %v1540, 4
    %v1827 = vpop.permute.xlu0 %1826
    %1828 = vrot.lane.b32.xlu0 %v1543, 4
    %v1829 = vpop.permute.xlu0 %1828
    %1830 = vrot.lane.b32.xlu0 %v1546, 4
    %v1831 = vpop.permute.xlu0 %1830
    %1832 = vrot.lane.b32.xlu0 %v1549, 4
    %v1833 = vpop.permute.xlu0 %1832
    %1834 = vrot.lane.b32.xlu0 %v1552, 4
    %v1835 = vpop.permute.xlu0 %1834
    %1836 = vrot.lane.b32.xlu0 %v1555, 4
    %v1837 = vpop.permute.xlu0 %1836
    %1838 = vrot.lane.b32.xlu0 %v1558, 4
    %v1839 = vpop.permute.xlu0 %1838
    %1840 = vrot.lane.b32.xlu0 %v1561, 4
    %v1841 = vpop.permute.xlu0 %1840
    %1850 = vrot.lane.b32.xlu0 %v1588, 16
    %v1851 = vpop.permute.xlu0 %1850
    %1852 = vrot.lane.b32.xlu0 %v1591, 16
    %v1853 = vpop.permute.xlu0 %1852
    %1854 = vrot.lane.b32.xlu0 %v1594, 16
    %v1855 = vpop.permute.xlu0 %1854
    %1856 = vrot.lane.b32.xlu0 %v1597, 16
    %v1857 = vpop.permute.xlu0 %1856
    %1858 = vrot.lane.b32.xlu0 %v1600, 16
    %v1859 = vpop.permute.xlu0 %1858
    %1860 = vrot.lane.b32.xlu0 %v1603, 16
    %v1861 = vpop.permute.xlu0 %1860
    %1862 = vrot.lane.b32.xlu0 %v1606, 16
    %v1863 = vpop.permute.xlu0 %1862
    %1864 = vrot.lane.b32.xlu0 %v1609, 16
    %v1865 = vpop.permute.xlu0 %1864
    %1874 = vrot.lane.b32.xlu0 %v1410, 16
    %v1875 = vpop.permute.xlu0 %1874
    %1876 = vrot.lane.b32.xlu0 %v1412, 16
    %v1877 = vpop.permute.xlu0 %1876
    %1878 = vrot.lane.b32.xlu0 %v1414, 16
    %v1879 = vpop.permute.xlu0 %1878
    %1880 = vrot.lane.b32.xlu0 %v1416, 16
    %v1881 = vpop.permute.xlu0 %1880
    %1882 = vrot.lane.b32.xlu0 %v1418, 16
    %v1883 = vpop.permute.xlu0 %1882
    %1884 = vrot.lane.b32.xlu0 %v1420, 16
    %v1885 = vpop.permute.xlu0 %1884
    %1886 = vrot.lane.b32.xlu0 %v1422, 16
    %v1887 = vpop.permute.xlu0 %1886
    %1888 = vrot.lane.b32.xlu0 %v1424, 16
    %v1889 = vpop.permute.xlu0 %1888
    %v1898 = vsel %vm862, %v1410, %v1467
    %v1899 = vsel %vm862, %v1412, %v1469
    %v1900 = vsel %vm862, %v1414, %v1471
    %v1901 = vsel %vm862, %v1416, %v1473
    %v1902 = vsel %vm862, %v1418, %v1475
    %v1903 = vsel %vm862, %v1420, %v1477
    %v1904 = vsel %vm862, %v1422, %v1479
    %v1905 = vsel %vm862, %v1424, %v1481
    %vm1906 = vcmask 195584
    %v1907 = vsel %vm1906, %v1898, %v1515
    %v1908 = vsel %vm1906, %v1899, %v1517
    %v1909 = vsel %vm1906, %v1900, %v1519
    %v1910 = vsel %vm1906, %v1901, %v1521
    %v1911 = vsel %vm1906, %v1902, %v1523
    %v1912 = vsel %vm1906, %v1903, %v1525
    %v1913 = vsel %vm1906, %v1904, %v1527
    %v1914 = vsel %vm1906, %v1905, %v1529
    %vm1915 = vcmask 293888
    %v1916 = vsel %vm1915, %v1907, %v1563
    %v1917 = vsel %vm1915, %v1908, %v1565
    %v1918 = vsel %vm1915, %v1909, %v1567
    %v1919 = vsel %vm1915, %v1910, %v1569
    %v1920 = vsel %vm1915, %v1911, %v1571
    %v1921 = vsel %vm1915, %v1912, %v1573
    %v1922 = vsel %vm1915, %v1913, %v1575
    %v1923 = vsel %vm1915, %v1914, %v1577
    %vm1924 = vcmask 392192
    %v1925 = vsel %vm1924, %v1916, %v1611
    %v1926 = vsel %vm1924, %v1917, %v1613
    %v1927 = vsel %vm1924, %v1918, %v1615
    %v1928 = vsel %vm1924, %v1919, %v1617
    %v1929 = vsel %vm1924, %v1920, %v1619
    %v1930 = vsel %vm1924, %v1921, %v1621
    %v1931 = vsel %vm1924, %v1922, %v1623
    %v1932 = vsel %vm1924, %v1923, %v1625
    %vm1933 = vcmask 490496
    %v1934 = vsel %vm1933, %v1925, %v1635
    %v1935 = vsel %vm1933, %v1926, %v1637
    %v1936 = vsel %vm1933, %v1927, %v1639
    %v1937 = vsel %vm1933, %v1928, %v1641
    %v1938 = vsel %vm1933, %v1929, %v1643
    %v1939 = vsel %vm1933, %v1930, %v1645
    %v1940 = vsel %vm1933, %v1931, %v1647
    %v1941 = vsel %vm1933, %v1932, %v1649
    %v1942 = vsel %vm1322, %v1934, %v1659
    %v1943 = vsel %vm1322, %v1935, %v1661
    %v1944 = vsel %vm1322, %v1936, %v1663
    %v1945 = vsel %vm1322, %v1937, %v1665
    %v1946 = vsel %vm1322, %v1938, %v1667
    %v1947 = vsel %vm1322, %v1939, %v1669
    %v1948 = vsel %vm1322, %v1940, %v1671
    %v1949 = vsel %vm1322, %v1941, %v1673
    %v1950 = vsel %vm670, %v1942, %v1683
    %v1951 = vsel %vm670, %v1943, %v1685
    %v1952 = vsel %vm670, %v1944, %v1687
    %v1953 = vsel %vm670, %v1945, %v1689
    %v1954 = vsel %vm670, %v1946, %v1691
    %v1955 = vsel %vm670, %v1947, %v1693
    %v1956 = vsel %vm670, %v1948, %v1695
    %v1957 = vsel %vm670, %v1949, %v1697
    %vm1958 = vcmask 785408
    %v1959 = vsel %vm1958, %v1950, %v1707
    %v1960 = vsel %vm1958, %v1951, %v1709
    %v1961 = vsel %vm1958, %v1952, %v1711
    %v1962 = vsel %vm1958, %v1953, %v1713
    %v1963 = vsel %vm1958, %v1954, %v1715
    %v1964 = vsel %vm1958, %v1955, %v1717
    %v1965 = vsel %vm1958, %v1956, %v1719
    %v1966 = vsel %vm1958, %v1957, %v1721
    %vm1967 = vcmask 883712
    %v1968 = vsel %vm1967, %v1959, %v1731
    %v1969 = vsel %vm1967, %v1960, %v1733
    %v1970 = vsel %vm1967, %v1961, %v1735
    %v1971 = vsel %vm1967, %v1962, %v1737
    %v1972 = vsel %vm1967, %v1963, %v1739
    %v1973 = vsel %vm1967, %v1964, %v1741
    %v1974 = vsel %vm1967, %v1965, %v1743
    %v1975 = vsel %vm1967, %v1966, %v1745
    %vm1976 = vcmask 982016
    %v1977 = vsel %vm1976, %v1968, %v1755
    %v1978 = vsel %vm1976, %v1969, %v1757
    %v1979 = vsel %vm1976, %v1970, %v1759
    %v1980 = vsel %vm1976, %v1971, %v1761
    %v1981 = vsel %vm1976, %v1972, %v1763
    %v1982 = vsel %vm1976, %v1973, %v1765
    %v1983 = vsel %vm1976, %v1974, %v1767
    %v1984 = vsel %vm1976, %v1975, %v1769
    %vm1985 = vcmask 31744
    %v1986 = vsel %vm1985, %v1755, %v1779
    %v1987 = vsel %vm1985, %v1757, %v1781
    %v1988 = vsel %vm1985, %v1759, %v1783
    %v1989 = vsel %vm1985, %v1761, %v1785
    %v1990 = vsel %vm1985, %v1763, %v1787
    %v1991 = vsel %vm1985, %v1765, %v1789
    %v1992 = vsel %vm1985, %v1767, %v1791
    %v1993 = vsel %vm1985, %v1769, %v1793
    %vm1994 = vcmask 130048
    %v1995 = vsel %vm1994, %v1986, %v1803
    %v1996 = vsel %vm1994, %v1987, %v1805
    %v1997 = vsel %vm1994, %v1988, %v1807
    %v1998 = vsel %vm1994, %v1989, %v1809
    %v1999 = vsel %vm1994, %v1990, %v1811
    %v2000 = vsel %vm1994, %v1991, %v1813
    %v2001 = vsel %vm1994, %v1992, %v1815
    %v2002 = vsel %vm1994, %v1993, %v1817
    %v2003 = vsel %vm620, %v1995, %v1827
    %v2004 = vsel %vm620, %v1996, %v1829
    %v2005 = vsel %vm620, %v1997, %v1831
    %v2006 = vsel %vm620, %v1998, %v1833
    %v2007 = vsel %vm620, %v1999, %v1835
    %v2008 = vsel %vm620, %v2000, %v1837
    %v2009 = vsel %vm620, %v2001, %v1839
    %v2010 = vsel %vm620, %v2002, %v1841
    %vm2011 = vcmask 326656
    %v2012 = vsel %vm2011, %v2003, %v1851
    %v2013 = vsel %vm2011, %v2004, %v1853
    %v2014 = vsel %vm2011, %v2005, %v1855
    %v2015 = vsel %vm2011, %v2006, %v1857
    %v2016 = vsel %vm2011, %v2007, %v1859
    %v2017 = vsel %vm2011, %v2008, %v1861
    %v2018 = vsel %vm2011, %v2009, %v1863
    %v2019 = vsel %vm2011, %v2010, %v1865
    %vm2020 = vcmask 424960
    %v2021 = vsel %vm2020, %v2012, %v1875
    %v2022 = vsel %vm2020, %v2013, %v1877
    %v2023 = vsel %vm2020, %v2014, %v1879
    %v2024 = vsel %vm2020, %v2015, %v1881
    %v2025 = vsel %vm2020, %v2016, %v1883
    %v2026 = vsel %vm2020, %v2017, %v1885
    %v2027 = vsel %vm2020, %v2018, %v1887
    %v2028 = vsel %vm2020, %v2019, %v1889
    %2029 = vrot.lane.b32.xlu0 %v1410, 92
    %v2030 = vpop.permute.xlu0 %2029
    %2031 = vrot.lane.b32.xlu0 %v1411, 92
    %v2032 = vpop.permute.xlu0 %2031
    %2033 = vrot.lane.b32.xlu0 %v1412, 92
    %v2034 = vpop.permute.xlu0 %2033
    %2035 = vrot.lane.b32.xlu0 %v1413, 92
    %v2036 = vpop.permute.xlu0 %2035
    %2037 = vrot.lane.b32.xlu0 %v1414, 92
    %v2038 = vpop.permute.xlu0 %2037
    %2039 = vrot.lane.b32.xlu0 %v1415, 92
    %v2040 = vpop.permute.xlu0 %2039
    %2041 = vrot.lane.b32.xlu0 %v1416, 92
    %v2042 = vpop.permute.xlu0 %2041
    %2043 = vrot.lane.b32.xlu0 %v1417, 92
    %v2044 = vpop.permute.xlu0 %2043
    %2045 = vrot.lane.b32.xlu0 %v1418, 92
    %v2046 = vpop.permute.xlu0 %2045
    %2047 = vrot.lane.b32.xlu0 %v1419, 92
    %v2048 = vpop.permute.xlu0 %2047
    %2049 = vrot.lane.b32.xlu0 %v1420, 92
    %v2050 = vpop.permute.xlu0 %2049
    %2051 = vrot.lane.b32.xlu0 %v1421, 92
    %v2052 = vpop.permute.xlu0 %2051
    %2053 = vrot.lane.b32.xlu0 %v1422, 92
    %v2054 = vpop.permute.xlu0 %2053
    %2055 = vrot.lane.b32.xlu0 %v1423, 92
    %v2056 = vpop.permute.xlu0 %2055
    %2057 = vrot.lane.b32.xlu0 %v1424, 92
    %v2058 = vpop.permute.xlu0 %2057
    %2059 = vrot.lane.b32.xlu0 %v1425, 92
    %v2060 = vpop.permute.xlu0 %2059
    %2077 = vrot.lane.b32.xlu0 %v1444, 104
    %v2078 = vpop.permute.xlu0 %2077
    %2079 = vrot.lane.b32.xlu0 %v1443, 104
    %v2080 = vpop.permute.xlu0 %2079
    %2081 = vrot.lane.b32.xlu0 %v1447, 104
    %v2082 = vpop.permute.xlu0 %2081
    %2083 = vrot.lane.b32.xlu0 %v1446, 104
    %v2084 = vpop.permute.xlu0 %2083
    %2085 = vrot.lane.b32.xlu0 %v1450, 104
    %v2086 = vpop.permute.xlu0 %2085
    %2087 = vrot.lane.b32.xlu0 %v1449, 104
    %v2088 = vpop.permute.xlu0 %2087
    %2089 = vrot.lane.b32.xlu0 %v1453, 104
    %v2090 = vpop.permute.xlu0 %2089
    %2091 = vrot.lane.b32.xlu0 %v1452, 104
    %v2092 = vpop.permute.xlu0 %2091
    %2093 = vrot.lane.b32.xlu0 %v1456, 104
    %v2094 = vpop.permute.xlu0 %2093
    %2095 = vrot.lane.b32.xlu0 %v1455, 104
    %v2096 = vpop.permute.xlu0 %2095
    %2097 = vrot.lane.b32.xlu0 %v1459, 104
    %v2098 = vpop.permute.xlu0 %2097
    %2099 = vrot.lane.b32.xlu0 %v1458, 104
    %v2100 = vpop.permute.xlu0 %2099
    %2101 = vrot.lane.b32.xlu0 %v1462, 104
    %v2102 = vpop.permute.xlu0 %2101
    %2103 = vrot.lane.b32.xlu0 %v1461, 104
    %v2104 = vpop.permute.xlu0 %2103
    %2105 = vrot.lane.b32.xlu0 %v1465, 104
    %v2106 = vpop.permute.xlu0 %2105
    %2107 = vrot.lane.b32.xlu0 %v1464, 104
    %v2108 = vpop.permute.xlu0 %2107
    %2125 = vrot.lane.b32.xlu0 %v1492, 116
    %v2126 = vpop.permute.xlu0 %2125
    %2127 = vrot.lane.b32.xlu0 %v1491, 116
    %v2128 = vpop.permute.xlu0 %2127
    %2129 = vrot.lane.b32.xlu0 %v1495, 116
    %v2130 = vpop.permute.xlu0 %2129
    %2131 = vrot.lane.b32.xlu0 %v1494, 116
    %v2132 = vpop.permute.xlu0 %2131
    %2133 = vrot.lane.b32.xlu0 %v1498, 116
    %v2134 = vpop.permute.xlu0 %2133
    %2135 = vrot.lane.b32.xlu0 %v1497, 116
    %v2136 = vpop.permute.xlu0 %2135
    %2137 = vrot.lane.b32.xlu0 %v1501, 116
    %v2138 = vpop.permute.xlu0 %2137
    %2139 = vrot.lane.b32.xlu0 %v1500, 116
    %v2140 = vpop.permute.xlu0 %2139
    %2141 = vrot.lane.b32.xlu0 %v1504, 116
    %v2142 = vpop.permute.xlu0 %2141
    %2143 = vrot.lane.b32.xlu0 %v1503, 116
    %v2144 = vpop.permute.xlu0 %2143
    %2145 = vrot.lane.b32.xlu0 %v1507, 116
    %v2146 = vpop.permute.xlu0 %2145
    %2147 = vrot.lane.b32.xlu0 %v1506, 116
    %v2148 = vpop.permute.xlu0 %2147
    %2149 = vrot.lane.b32.xlu0 %v1510, 116
    %v2150 = vpop.permute.xlu0 %2149
    %2151 = vrot.lane.b32.xlu0 %v1509, 116
    %v2152 = vpop.permute.xlu0 %2151
    %2153 = vrot.lane.b32.xlu0 %v1513, 116
    %v2154 = vpop.permute.xlu0 %2153
    %2155 = vrot.lane.b32.xlu0 %v1512, 116
    %v2156 = vpop.permute.xlu0 %2155
    %v2189 = vrot.slane %v1410, 7
    %v2190 = vrot.slane %v1412, 7
    %v2191 = vrot.slane %v1414, 7
    %v2192 = vrot.slane %v1416, 7
    %v2193 = vrot.slane %v1418, 7
    %v2194 = vrot.slane %v1420, 7
    %v2195 = vrot.slane %v1422, 7
    %v2196 = vrot.slane %v1424, 7
    %2205 = vrot.lane.b32.xlu0 %v1410, 12
    %v2206 = vpop.permute.xlu0 %2205
    %2207 = vrot.lane.b32.xlu0 %v1411, 12
    %v2208 = vpop.permute.xlu0 %2207
    %2209 = vrot.lane.b32.xlu0 %v1412, 12
    %v2210 = vpop.permute.xlu0 %2209
    %2211 = vrot.lane.b32.xlu0 %v1413, 12
    %v2212 = vpop.permute.xlu0 %2211
    %2213 = vrot.lane.b32.xlu0 %v1414, 12
    %v2214 = vpop.permute.xlu0 %2213
    %2215 = vrot.lane.b32.xlu0 %v1415, 12
    %v2216 = vpop.permute.xlu0 %2215
    %2217 = vrot.lane.b32.xlu0 %v1416, 12
    %v2218 = vpop.permute.xlu0 %2217
    %2219 = vrot.lane.b32.xlu0 %v1417, 12
    %v2220 = vpop.permute.xlu0 %2219
    %2221 = vrot.lane.b32.xlu0 %v1418, 12
    %v2222 = vpop.permute.xlu0 %2221
    %2223 = vrot.lane.b32.xlu0 %v1419, 12
    %v2224 = vpop.permute.xlu0 %2223
    %2225 = vrot.lane.b32.xlu0 %v1420, 12
    %v2226 = vpop.permute.xlu0 %2225
    %2227 = vrot.lane.b32.xlu0 %v1421, 12
    %v2228 = vpop.permute.xlu0 %2227
    %2229 = vrot.lane.b32.xlu0 %v1422, 12
    %v2230 = vpop.permute.xlu0 %2229
    %2231 = vrot.lane.b32.xlu0 %v1423, 12
    %v2232 = vpop.permute.xlu0 %2231
    %2233 = vrot.lane.b32.xlu0 %v1424, 12
    %v2234 = vpop.permute.xlu0 %2233
    %2235 = vrot.lane.b32.xlu0 %v1425, 12
    %v2236 = vpop.permute.xlu0 %2235
    %2253 = vrot.lane.b32.xlu0 %v1444, 24
    %v2254 = vpop.permute.xlu0 %2253
    %2255 = vrot.lane.b32.xlu0 %v1443, 24
    %v2256 = vpop.permute.xlu0 %2255
    %2257 = vrot.lane.b32.xlu0 %v1447, 24
    %v2258 = vpop.permute.xlu0 %2257
    %2259 = vrot.lane.b32.xlu0 %v1446, 24
    %v2260 = vpop.permute.xlu0 %2259
    %2261 = vrot.lane.b32.xlu0 %v1450, 24
    %v2262 = vpop.permute.xlu0 %2261
    %2263 = vrot.lane.b32.xlu0 %v1449, 24
    %v2264 = vpop.permute.xlu0 %2263
    %2265 = vrot.lane.b32.xlu0 %v1453, 24
    %v2266 = vpop.permute.xlu0 %2265
    %2267 = vrot.lane.b32.xlu0 %v1452, 24
    %v2268 = vpop.permute.xlu0 %2267
    %2269 = vrot.lane.b32.xlu0 %v1456, 24
    %v2270 = vpop.permute.xlu0 %2269
    %2271 = vrot.lane.b32.xlu0 %v1455, 24
    %v2272 = vpop.permute.xlu0 %2271
    %2273 = vrot.lane.b32.xlu0 %v1459, 24
    %v2274 = vpop.permute.xlu0 %2273
    %2275 = vrot.lane.b32.xlu0 %v1458, 24
    %v2276 = vpop.permute.xlu0 %2275
    %2277 = vrot.lane.b32.xlu0 %v1462, 24
    %v2278 = vpop.permute.xlu0 %2277
    %2279 = vrot.lane.b32.xlu0 %v1461, 24
    %v2280 = vpop.permute.xlu0 %2279
    %2281 = vrot.lane.b32.xlu0 %v1465, 24
    %v2282 = vpop.permute.xlu0 %2281
    %2283 = vrot.lane.b32.xlu0 %v1464, 24
    %v2284 = vpop.permute.xlu0 %2283
    %2301 = vrot.lane.b32.xlu0 %v1492, 36
    %v2302 = vpop.permute.xlu0 %2301
    %2303 = vrot.lane.b32.xlu0 %v1491, 36
    %v2304 = vpop.permute.xlu0 %2303
    %2305 = vrot.lane.b32.xlu0 %v1495, 36
    %v2306 = vpop.permute.xlu0 %2305
    %2307 = vrot.lane.b32.xlu0 %v1494, 36
    %v2308 = vpop.permute.xlu0 %2307
    %2309 = vrot.lane.b32.xlu0 %v1498, 36
    %v2310 = vpop.permute.xlu0 %2309
    %2311 = vrot.lane.b32.xlu0 %v1497, 36
    %v2312 = vpop.permute.xlu0 %2311
    %2313 = vrot.lane.b32.xlu0 %v1501, 36
    %v2314 = vpop.permute.xlu0 %2313
    %2315 = vrot.lane.b32.xlu0 %v1500, 36
    %v2316 = vpop.permute.xlu0 %2315
    %2317 = vrot.lane.b32.xlu0 %v1504, 36
    %v2318 = vpop.permute.xlu0 %2317
    %2319 = vrot.lane.b32.xlu0 %v1503, 36
    %v2320 = vpop.permute.xlu0 %2319
    %2321 = vrot.lane.b32.xlu0 %v1507, 36
    %v2322 = vpop.permute.xlu0 %2321
    %2323 = vrot.lane.b32.xlu0 %v1506, 36
    %v2324 = vpop.permute.xlu0 %2323
    %2325 = vrot.lane.b32.xlu0 %v1510, 36
    %v2326 = vpop.permute.xlu0 %2325
    %2327 = vrot.lane.b32.xlu0 %v1509, 36
    %v2328 = vpop.permute.xlu0 %2327
    %2329 = vrot.lane.b32.xlu0 %v1513, 36
    %v2330 = vpop.permute.xlu0 %2329
    %2331 = vrot.lane.b32.xlu0 %v1512, 36
    %v2332 = vpop.permute.xlu0 %2331
    %2349 = vrot.lane.b32.xlu0 %v1540, 48
    %v2350 = vpop.permute.xlu0 %2349
    %2351 = vrot.lane.b32.xlu0 %v1539, 48
    %v2352 = vpop.permute.xlu0 %2351
    %2353 = vrot.lane.b32.xlu0 %v1543, 48
    %v2354 = vpop.permute.xlu0 %2353
    %2355 = vrot.lane.b32.xlu0 %v1542, 48
    %v2356 = vpop.permute.xlu0 %2355
    %2357 = vrot.lane.b32.xlu0 %v1546, 48
    %v2358 = vpop.permute.xlu0 %2357
    %2359 = vrot.lane.b32.xlu0 %v1545, 48
    %v2360 = vpop.permute.xlu0 %2359
    %2361 = vrot.lane.b32.xlu0 %v1549, 48
    %v2362 = vpop.permute.xlu0 %2361
    %2363 = vrot.lane.b32.xlu0 %v1548, 48
    %v2364 = vpop.permute.xlu0 %2363
    %2365 = vrot.lane.b32.xlu0 %v1552, 48
    %v2366 = vpop.permute.xlu0 %2365
    %2367 = vrot.lane.b32.xlu0 %v1551, 48
    %v2368 = vpop.permute.xlu0 %2367
    %2369 = vrot.lane.b32.xlu0 %v1555, 48
    %v2370 = vpop.permute.xlu0 %2369
    %2371 = vrot.lane.b32.xlu0 %v1554, 48
    %v2372 = vpop.permute.xlu0 %2371
    %2373 = vrot.lane.b32.xlu0 %v1558, 48
    %v2374 = vpop.permute.xlu0 %2373
    %2375 = vrot.lane.b32.xlu0 %v1557, 48
    %v2376 = vpop.permute.xlu0 %2375
    %2377 = vrot.lane.b32.xlu0 %v1561, 48
    %v2378 = vpop.permute.xlu0 %2377
    %2379 = vrot.lane.b32.xlu0 %v1560, 48
    %v2380 = vpop.permute.xlu0 %2379
    %2397 = vrot.lane.b32.xlu0 %v2189, 48
    %v2398 = vpop.permute.xlu0 %2397
    %2399 = vrot.lane.b32.xlu0 %v2190, 48
    %v2400 = vpop.permute.xlu0 %2399
    %2401 = vrot.lane.b32.xlu0 %v2191, 48
    %v2402 = vpop.permute.xlu0 %2401
    %2403 = vrot.lane.b32.xlu0 %v2192, 48
    %v2404 = vpop.permute.xlu0 %2403
    %2405 = vrot.lane.b32.xlu0 %v2193, 48
    %v2406 = vpop.permute.xlu0 %2405
    %2407 = vrot.lane.b32.xlu0 %v2194, 48
    %v2408 = vpop.permute.xlu0 %2407
    %2409 = vrot.lane.b32.xlu0 %v2195, 48
    %v2410 = vpop.permute.xlu0 %2409
    %2411 = vrot.lane.b32.xlu0 %v2196, 48
    %v2412 = vpop.permute.xlu0 %2411
    %2421 = vrot.lane.b32.xlu0 %v1410, 60
    %v2422 = vpop.permute.xlu0 %2421
    %2423 = vrot.lane.b32.xlu0 %v1411, 60
    %v2424 = vpop.permute.xlu0 %2423
    %2425 = vrot.lane.b32.xlu0 %v1412, 60
    %v2426 = vpop.permute.xlu0 %2425
    %2427 = vrot.lane.b32.xlu0 %v1413, 60
    %v2428 = vpop.permute.xlu0 %2427
    %2429 = vrot.lane.b32.xlu0 %v1414, 60
    %v2430 = vpop.permute.xlu0 %2429
    %2431 = vrot.lane.b32.xlu0 %v1415, 60
    %v2432 = vpop.permute.xlu0 %2431
    %2433 = vrot.lane.b32.xlu0 %v1416, 60
    %v2434 = vpop.permute.xlu0 %2433
    %2435 = vrot.lane.b32.xlu0 %v1417, 60
    %v2436 = vpop.permute.xlu0 %2435
    %2437 = vrot.lane.b32.xlu0 %v1418, 60
    %v2438 = vpop.permute.xlu0 %2437
    %2439 = vrot.lane.b32.xlu0 %v1419, 60
    %v2440 = vpop.permute.xlu0 %2439
    %2441 = vrot.lane.b32.xlu0 %v1420, 60
    %v2442 = vpop.permute.xlu0 %2441
    %2443 = vrot.lane.b32.xlu0 %v1421, 60
    %v2444 = vpop.permute.xlu0 %2443
    %2445 = vrot.lane.b32.xlu0 %v1422, 60
    %v2446 = vpop.permute.xlu0 %2445
    %2447 = vrot.lane.b32.xlu0 %v1423, 60
    %v2448 = vpop.permute.xlu0 %2447
    %2449 = vrot.lane.b32.xlu0 %v1424, 60
    %v2450 = vpop.permute.xlu0 %2449
    %2451 = vrot.lane.b32.xlu0 %v1425, 60
    %v2452 = vpop.permute.xlu0 %2451
    %2469 = vrot.lane.b32.xlu0 %v1444, 72
    %v2470 = vpop.permute.xlu0 %2469
    %2471 = vrot.lane.b32.xlu0 %v1443, 72
    %v2472 = vpop.permute.xlu0 %2471
    %2473 = vrot.lane.b32.xlu0 %v1447, 72
    %v2474 = vpop.permute.xlu0 %2473
    %2475 = vrot.lane.b32.xlu0 %v1446, 72
    %v2476 = vpop.permute.xlu0 %2475
    %2477 = vrot.lane.b32.xlu0 %v1450, 72
    %v2478 = vpop.permute.xlu0 %2477
    %2479 = vrot.lane.b32.xlu0 %v1449, 72
    %v2480 = vpop.permute.xlu0 %2479
    %2481 = vrot.lane.b32.xlu0 %v1453, 72
    %v2482 = vpop.permute.xlu0 %2481
    %2483 = vrot.lane.b32.xlu0 %v1452, 72
    %v2484 = vpop.permute.xlu0 %2483
    %2485 = vrot.lane.b32.xlu0 %v1456, 72
    %v2486 = vpop.permute.xlu0 %2485
    %2487 = vrot.lane.b32.xlu0 %v1455, 72
    %v2488 = vpop.permute.xlu0 %2487
    %2489 = vrot.lane.b32.xlu0 %v1459, 72
    %v2490 = vpop.permute.xlu0 %2489
    %2491 = vrot.lane.b32.xlu0 %v1458, 72
    %v2492 = vpop.permute.xlu0 %2491
    %2493 = vrot.lane.b32.xlu0 %v1462, 72
    %v2494 = vpop.permute.xlu0 %2493
    %2495 = vrot.lane.b32.xlu0 %v1461, 72
    %v2496 = vpop.permute.xlu0 %2495
    %2497 = vrot.lane.b32.xlu0 %v1465, 72
    %v2498 = vpop.permute.xlu0 %2497
    %2499 = vrot.lane.b32.xlu0 %v1464, 72
    %v2500 = vpop.permute.xlu0 %2499
    %2517 = vrot.lane.b32.xlu0 %v1492, 84
    %v2518 = vpop.permute.xlu0 %2517
    %2519 = vrot.lane.b32.xlu0 %v1491, 84
    %v2520 = vpop.permute.xlu0 %2519
    %2521 = vrot.lane.b32.xlu0 %v1495, 84
    %v2522 = vpop.permute.xlu0 %2521
    %2523 = vrot.lane.b32.xlu0 %v1494, 84
    %v2524 = vpop.permute.xlu0 %2523
    %2525 = vrot.lane.b32.xlu0 %v1498, 84
    %v2526 = vpop.permute.xlu0 %2525
    %2527 = vrot.lane.b32.xlu0 %v1497, 84
    %v2528 = vpop.permute.xlu0 %2527
    %2529 = vrot.lane.b32.xlu0 %v1501, 84
    %v2530 = vpop.permute.xlu0 %2529
    %2531 = vrot.lane.b32.xlu0 %v1500, 84
    %v2532 = vpop.permute.xlu0 %2531
    %2533 = vrot.lane.b32.xlu0 %v1504, 84
    %v2534 = vpop.permute.xlu0 %2533
    %2535 = vrot.lane.b32.xlu0 %v1503, 84
    %v2536 = vpop.permute.xlu0 %2535
    %2537 = vrot.lane.b32.xlu0 %v1507, 84
    %v2538 = vpop.permute.xlu0 %2537
    %2539 = vrot.lane.b32.xlu0 %v1506, 84
    %v2540 = vpop.permute.xlu0 %2539
    %2541 = vrot.lane.b32.xlu0 %v1510, 84
    %v2542 = vpop.permute.xlu0 %2541
    %2543 = vrot.lane.b32.xlu0 %v1509, 84
    %v2544 = vpop.permute.xlu0 %2543
    %2545 = vrot.lane.b32.xlu0 %v1513, 84
    %v2546 = vpop.permute.xlu0 %2545
    %2547 = vrot.lane.b32.xlu0 %v1512, 84
    %v2548 = vpop.permute.xlu0 %2547
    %2565 = vrot.lane.b32.xlu0 %v1540, 96
    %v2566 = vpop.permute.xlu0 %2565
    %2567 = vrot.lane.b32.xlu0 %v1539, 96
    %v2568 = vpop.permute.xlu0 %2567
    %2569 = vrot.lane.b32.xlu0 %v1543, 96
    %v2570 = vpop.permute.xlu0 %2569
    %2571 = vrot.lane.b32.xlu0 %v1542, 96
    %v2572 = vpop.permute.xlu0 %2571
    %2573 = vrot.lane.b32.xlu0 %v1546, 96
    %v2574 = vpop.permute.xlu0 %2573
    %2575 = vrot.lane.b32.xlu0 %v1545, 96
    %v2576 = vpop.permute.xlu0 %2575
    %2577 = vrot.lane.b32.xlu0 %v1549, 96
    %v2578 = vpop.permute.xlu0 %2577
    %2579 = vrot.lane.b32.xlu0 %v1548, 96
    %v2580 = vpop.permute.xlu0 %2579
    %2581 = vrot.lane.b32.xlu0 %v1552, 96
    %v2582 = vpop.permute.xlu0 %2581
    %2583 = vrot.lane.b32.xlu0 %v1551, 96
    %v2584 = vpop.permute.xlu0 %2583
    %2585 = vrot.lane.b32.xlu0 %v1555, 96
    %v2586 = vpop.permute.xlu0 %2585
    %2587 = vrot.lane.b32.xlu0 %v1554, 96
    %v2588 = vpop.permute.xlu0 %2587
    %2589 = vrot.lane.b32.xlu0 %v1558, 96
    %v2590 = vpop.permute.xlu0 %2589
    %2591 = vrot.lane.b32.xlu0 %v1557, 96
    %v2592 = vpop.permute.xlu0 %2591
    %2593 = vrot.lane.b32.xlu0 %v1561, 96
    %v2594 = vpop.permute.xlu0 %2593
    %2595 = vrot.lane.b32.xlu0 %v1560, 96
    %v2596 = vpop.permute.xlu0 %2595
    %v2613 = vsel %vm862, %v2030, %v2078
    %v2614 = vsel %vm862, %v2032, %v2080
    %v2615 = vsel %vm862, %v2034, %v2082
    %v2616 = vsel %vm862, %v2036, %v2084
    %v2617 = vsel %vm862, %v2038, %v2086
    %v2618 = vsel %vm862, %v2040, %v2088
    %v2619 = vsel %vm862, %v2042, %v2090
    %v2620 = vsel %vm862, %v2044, %v2092
    %v2621 = vsel %vm862, %v2046, %v2094
    %v2622 = vsel %vm862, %v2048, %v2096
    %v2623 = vsel %vm862, %v2050, %v2098
    %v2624 = vsel %vm862, %v2052, %v2100
    %v2625 = vsel %vm862, %v2054, %v2102
    %v2626 = vsel %vm862, %v2056, %v2104
    %v2627 = vsel %vm862, %v2058, %v2106
    %v2628 = vsel %vm862, %v2060, %v2108
    %v2629 = vsel %vm1906, %v2613, %v2126
    %v2630 = vsel %vm1906, %v2614, %v2128
    %v2631 = vsel %vm1906, %v2615, %v2130
    %v2632 = vsel %vm1906, %v2616, %v2132
    %v2633 = vsel %vm1906, %v2617, %v2134
    %v2634 = vsel %vm1906, %v2618, %v2136
    %v2635 = vsel %vm1906, %v2619, %v2138
    %v2636 = vsel %vm1906, %v2620, %v2140
    %v2637 = vsel %vm1906, %v2621, %v2142
    %v2638 = vsel %vm1906, %v2622, %v2144
    %v2639 = vsel %vm1906, %v2623, %v2146
    %v2640 = vsel %vm1906, %v2624, %v2148
    %v2641 = vsel %vm1906, %v2625, %v2150
    %v2642 = vsel %vm1906, %v2626, %v2152
    %v2643 = vsel %vm1906, %v2627, %v2154
    %v2644 = vsel %vm1906, %v2628, %v2156
    %v2645 = vsel %vm1915, %v2629, %v1540
    %v2646 = vsel %vm1915, %v2630, %v1539
    %v2647 = vsel %vm1915, %v2631, %v1543
    %v2648 = vsel %vm1915, %v2632, %v1542
    %v2649 = vsel %vm1915, %v2633, %v1546
    %v2650 = vsel %vm1915, %v2634, %v1545
    %v2651 = vsel %vm1915, %v2635, %v1549
    %v2652 = vsel %vm1915, %v2636, %v1548
    %v2653 = vsel %vm1915, %v2637, %v1552
    %v2654 = vsel %vm1915, %v2638, %v1551
    %v2655 = vsel %vm1915, %v2639, %v1555
    %v2656 = vsel %vm1915, %v2640, %v1554
    %v2657 = vsel %vm1915, %v2641, %v1558
    %v2658 = vsel %vm1915, %v2642, %v1557
    %v2659 = vsel %vm1915, %v2643, %v1561
    %v2660 = vsel %vm1915, %v2644, %v1560
    %v2661 = vsel %vm1924, %v2645, %v2189
    %v2662 = vsel %vm1924, %v2646, %v2189
    %v2663 = vsel %vm1924, %v2647, %v2190
    %v2664 = vsel %vm1924, %v2648, %v2190
    %v2665 = vsel %vm1924, %v2649, %v2191
    %v2666 = vsel %vm1924, %v2650, %v2191
    %v2667 = vsel %vm1924, %v2651, %v2192
    %v2668 = vsel %vm1924, %v2652, %v2192
    %v2669 = vsel %vm1924, %v2653, %v2193
    %v2670 = vsel %vm1924, %v2654, %v2193
    %v2671 = vsel %vm1924, %v2655, %v2194
    %v2672 = vsel %vm1924, %v2656, %v2194
    %v2673 = vsel %vm1924, %v2657, %v2195
    %v2674 = vsel %vm1924, %v2658, %v2195
    %v2675 = vsel %vm1924, %v2659, %v2196
    %v2676 = vsel %vm1924, %v2660, %v2196
    %v2677 = vsel %vm1933, %v2661, %v2206
    %v2678 = vsel %vm1933, %v2662, %v2208
    %v2679 = vsel %vm1933, %v2663, %v2210
    %v2680 = vsel %vm1933, %v2664, %v2212
    %v2681 = vsel %vm1933, %v2665, %v2214
    %v2682 = vsel %vm1933, %v2666, %v2216
    %v2683 = vsel %vm1933, %v2667, %v2218
    %v2684 = vsel %vm1933, %v2668, %v2220
    %v2685 = vsel %vm1933, %v2669, %v2222
    %v2686 = vsel %vm1933, %v2670, %v2224
    %v2687 = vsel %vm1933, %v2671, %v2226
    %v2688 = vsel %vm1933, %v2672, %v2228
    %v2689 = vsel %vm1933, %v2673, %v2230
    %v2690 = vsel %vm1933, %v2674, %v2232
    %v2691 = vsel %vm1933, %v2675, %v2234
    %v2692 = vsel %vm1933, %v2676, %v2236
    %v2693 = vsel %vm1322, %v2677, %v2254
    %v2694 = vsel %vm1322, %v2678, %v2256
    %v2695 = vsel %vm1322, %v2679, %v2258
    %v2696 = vsel %vm1322, %v2680, %v2260
    %v2697 = vsel %vm1322, %v2681, %v2262
    %v2698 = vsel %vm1322, %v2682, %v2264
    %v2699 = vsel %vm1322, %v2683, %v2266
    %v2700 = vsel %vm1322, %v2684, %v2268
    %v2701 = vsel %vm1322, %v2685, %v2270
    %v2702 = vsel %vm1322, %v2686, %v2272
    %v2703 = vsel %vm1322, %v2687, %v2274
    %v2704 = vsel %vm1322, %v2688, %v2276
    %v2705 = vsel %vm1322, %v2689, %v2278
    %v2706 = vsel %vm1322, %v2690, %v2280
    %v2707 = vsel %vm1322, %v2691, %v2282
    %v2708 = vsel %vm1322, %v2692, %v2284
    %v2709 = vsel %vm670, %v2693, %v2302
    %v2710 = vsel %vm670, %v2694, %v2304
    %v2711 = vsel %vm670, %v2695, %v2306
    %v2712 = vsel %vm670, %v2696, %v2308
    %v2713 = vsel %vm670, %v2697, %v2310
    %v2714 = vsel %vm670, %v2698, %v2312
    %v2715 = vsel %vm670, %v2699, %v2314
    %v2716 = vsel %vm670, %v2700, %v2316
    %v2717 = vsel %vm670, %v2701, %v2318
    %v2718 = vsel %vm670, %v2702, %v2320
    %v2719 = vsel %vm670, %v2703, %v2322
    %v2720 = vsel %vm670, %v2704, %v2324
    %v2721 = vsel %vm670, %v2705, %v2326
    %v2722 = vsel %vm670, %v2706, %v2328
    %v2723 = vsel %vm670, %v2707, %v2330
    %v2724 = vsel %vm670, %v2708, %v2332
    %v2725 = vsel %vm1958, %v2709, %v2350
    %v2726 = vsel %vm1958, %v2710, %v2352
    %v2727 = vsel %vm1958, %v2711, %v2354
    %v2728 = vsel %vm1958, %v2712, %v2356
    %v2729 = vsel %vm1958, %v2713, %v2358
    %v2730 = vsel %vm1958, %v2714, %v2360
    %v2731 = vsel %vm1958, %v2715, %v2362
    %v2732 = vsel %vm1958, %v2716, %v2364
    %v2733 = vsel %vm1958, %v2717, %v2366
    %v2734 = vsel %vm1958, %v2718, %v2368
    %v2735 = vsel %vm1958, %v2719, %v2370
    %v2736 = vsel %vm1958, %v2720, %v2372
    %v2737 = vsel %vm1958, %v2721, %v2374
    %v2738 = vsel %vm1958, %v2722, %v2376
    %v2739 = vsel %vm1958, %v2723, %v2378
    %v2740 = vsel %vm1958, %v2724, %v2380
    %v2741 = vsel %vm1967, %v2725, %v2398
    %v2742 = vsel %vm1967, %v2726, %v2398
    %v2743 = vsel %vm1967, %v2727, %v2400
    %v2744 = vsel %vm1967, %v2728, %v2400
    %v2745 = vsel %vm1967, %v2729, %v2402
    %v2746 = vsel %vm1967, %v2730, %v2402
    %v2747 = vsel %vm1967, %v2731, %v2404
    %v2748 = vsel %vm1967, %v2732, %v2404
    %v2749 = vsel %vm1967, %v2733, %v2406
    %v2750 = vsel %vm1967, %v2734, %v2406
    %v2751 = vsel %vm1967, %v2735, %v2408
    %v2752 = vsel %vm1967, %v2736, %v2408
    %v2753 = vsel %vm1967, %v2737, %v2410
    %v2754 = vsel %vm1967, %v2738, %v2410
    %v2755 = vsel %vm1967, %v2739, %v2412
    %v2756 = vsel %vm1967, %v2740, %v2412
    %v2757 = vsel %vm1976, %v2741, %v2422
    %v2758 = vsel %vm1976, %v2742, %v2424
    %v2759 = vsel %vm1976, %v2743, %v2426
    %v2760 = vsel %vm1976, %v2744, %v2428
    %v2761 = vsel %vm1976, %v2745, %v2430
    %v2762 = vsel %vm1976, %v2746, %v2432
    %v2763 = vsel %vm1976, %v2747, %v2434
    %v2764 = vsel %vm1976, %v2748, %v2436
    %v2765 = vsel %vm1976, %v2749, %v2438
    %v2766 = vsel %vm1976, %v2750, %v2440
    %v2767 = vsel %vm1976, %v2751, %v2442
    %v2768 = vsel %vm1976, %v2752, %v2444
    %v2769 = vsel %vm1976, %v2753, %v2446
    %v2770 = vsel %vm1976, %v2754, %v2448
    %v2771 = vsel %vm1976, %v2755, %v2450
    %v2772 = vsel %vm1976, %v2756, %v2452
    %v2773 = vsel %vm1985, %v2422, %v2470
    %v2774 = vsel %vm1985, %v2424, %v2472
    %v2775 = vsel %vm1985, %v2426, %v2474
    %v2776 = vsel %vm1985, %v2428, %v2476
    %v2777 = vsel %vm1985, %v2430, %v2478
    %v2778 = vsel %vm1985, %v2432, %v2480
    %v2779 = vsel %vm1985, %v2434, %v2482
    %v2780 = vsel %vm1985, %v2436, %v2484
    %v2781 = vsel %vm1985, %v2438, %v2486
    %v2782 = vsel %vm1985, %v2440, %v2488
    %v2783 = vsel %vm1985, %v2442, %v2490
    %v2784 = vsel %vm1985, %v2444, %v2492
    %v2785 = vsel %vm1985, %v2446, %v2494
    %v2786 = vsel %vm1985, %v2448, %v2496
    %v2787 = vsel %vm1985, %v2450, %v2498
    %v2788 = vsel %vm1985, %v2452, %v2500
    %v2789 = vsel %vm1994, %v2773, %v2518
    %v2790 = vsel %vm1994, %v2774, %v2520
    %v2791 = vsel %vm1994, %v2775, %v2522
    %v2792 = vsel %vm1994, %v2776, %v2524
    %v2793 = vsel %vm1994, %v2777, %v2526
    %v2794 = vsel %vm1994, %v2778, %v2528
    %v2795 = vsel %vm1994, %v2779, %v2530
    %v2796 = vsel %vm1994, %v2780, %v2532
    %v2797 = vsel %vm1994, %v2781, %v2534
    %v2798 = vsel %vm1994, %v2782, %v2536
    %v2799 = vsel %vm1994, %v2783, %v2538
    %v2800 = vsel %vm1994, %v2784, %v2540
    %v2801 = vsel %vm1994, %v2785, %v2542
    %v2802 = vsel %vm1994, %v2786, %v2544
    %v2803 = vsel %vm1994, %v2787, %v2546
    %v2804 = vsel %vm1994, %v2788, %v2548
    %v2805 = vsel %vm620, %v2789, %v2566
    %v2806 = vsel %vm620, %v2790, %v2568
    %v2807 = vsel %vm620, %v2791, %v2570
    %v2808 = vsel %vm620, %v2792, %v2572
    %v2809 = vsel %vm620, %v2793, %v2574
    %v2810 = vsel %vm620, %v2794, %v2576
    %v2811 = vsel %vm620, %v2795, %v2578
    %v2812 = vsel %vm620, %v2796, %v2580
    %v2813 = vsel %vm620, %v2797, %v2582
    %v2814 = vsel %vm620, %v2798, %v2584
    %v2815 = vsel %vm620, %v2799, %v2586
    %v2816 = vsel %vm620, %v2800, %v2588
    %v2817 = vsel %vm620, %v2801, %v2590
    %v2818 = vsel %vm620, %v2802, %v2592
    %v2819 = vsel %vm620, %v2803, %v2594
    %v2820 = vsel %vm620, %v2804, %v2596
    %v2853 = vrot.slane %v2757, 1
    %v2854 = vrot.slane %v2758, 1
    %v2855 = vsel %vm104, %v2853, %v2854
    %v2856 = vrot.slane %v2805, 1
    %v2857 = vrot.slane %v2806, 1
    %v2858 = vsel %vm104, %v2856, %v2857
    %v2859 = vrot.slane %v2759, 1
    %v2860 = vrot.slane %v2760, 1
    %v2861 = vsel %vm104, %v2859, %v2860
    %v2862 = vrot.slane %v2807, 1
    %v2863 = vrot.slane %v2808, 1
    %v2864 = vsel %vm104, %v2862, %v2863
    %v2865 = vrot.slane %v2761, 1
    %v2866 = vrot.slane %v2762, 1
    %v2867 = vsel %vm104, %v2865, %v2866
    %v2868 = vrot.slane %v2809, 1
    %v2869 = vrot.slane %v2810, 1
    %v2870 = vsel %vm104, %v2868, %v2869
    %v2871 = vrot.slane %v2763, 1
    %v2872 = vrot.slane %v2764, 1
    %v2873 = vsel %vm104, %v2871, %v2872
    %v2874 = vrot.slane %v2811, 1
    %v2875 = vrot.slane %v2812, 1
    %v2876 = vsel %vm104, %v2874, %v2875
    %v2877 = vrot.slane %v2765, 1
    %v2878 = vrot.slane %v2766, 1
    %v2879 = vsel %vm104, %v2877, %v2878
    %v2880 = vrot.slane %v2813, 1
    %v2881 = vrot.slane %v2814, 1
    %v2882 = vsel %vm104, %v2880, %v2881
    %v2883 = vrot.slane %v2767, 1
    %v2884 = vrot.slane %v2768, 1
    %v2885 = vsel %vm104, %v2883, %v2884
    %v2886 = vrot.slane %v2815, 1
    %v2887 = vrot.slane %v2816, 1
    %v2888 = vsel %vm104, %v2886, %v2887
    %v2889 = vrot.slane %v2769, 1
    %v2890 = vrot.slane %v2770, 1
    %v2891 = vsel %vm104, %v2889, %v2890
    %v2892 = vrot.slane %v2817, 1
    %v2893 = vrot.slane %v2818, 1
    %v2894 = vsel %vm104, %v2892, %v2893
    %v2895 = vrot.slane %v2771, 1
    %v2896 = vrot.slane %v2772, 1
    %v2897 = vsel %vm104, %v2895, %v2896
    %v2898 = vrot.slane %v2819, 1
    %v2899 = vrot.slane %v2820, 1
    %v2900 = vsel %vm104, %v2898, %v2899
    %2901 = vrot.lane.b32.xlu0 %v2855, 64
    %v2902 = vpop.permute.xlu0 %2901
    %2903 = vrot.lane.b32.xlu0 %v2858, 64
    %v2904 = vpop.permute.xlu0 %2903
    %2905 = vrot.lane.b32.xlu0 %v2861, 64
    %v2906 = vpop.permute.xlu0 %2905
    %2907 = vrot.lane.b32.xlu0 %v2864, 64
    %v2908 = vpop.permute.xlu0 %2907
    %2909 = vrot.lane.b32.xlu0 %v2867, 64
    %v2910 = vpop.permute.xlu0 %2909
    %2911 = vrot.lane.b32.xlu0 %v2870, 64
    %v2912 = vpop.permute.xlu0 %2911
    %2913 = vrot.lane.b32.xlu0 %v2873, 64
    %v2914 = vpop.permute.xlu0 %2913
    %2915 = vrot.lane.b32.xlu0 %v2876, 64
    %v2916 = vpop.permute.xlu0 %2915
    %2917 = vrot.lane.b32.xlu0 %v2879, 64
    %v2918 = vpop.permute.xlu0 %2917
    %2919 = vrot.lane.b32.xlu0 %v2882, 64
    %v2920 = vpop.permute.xlu0 %2919
    %2921 = vrot.lane.b32.xlu0 %v2885, 64
    %v2922 = vpop.permute.xlu0 %2921
    %2923 = vrot.lane.b32.xlu0 %v2888, 64
    %v2924 = vpop.permute.xlu0 %2923
    %2925 = vrot.lane.b32.xlu0 %v2891, 64
    %v2926 = vpop.permute.xlu0 %2925
    %2927 = vrot.lane.b32.xlu0 %v2894, 64
    %v2928 = vpop.permute.xlu0 %2927
    %2929 = vrot.lane.b32.xlu0 %v2897, 64
    %v2930 = vpop.permute.xlu0 %2929
    %2931 = vrot.lane.b32.xlu0 %v2900, 64
    %v2932 = vpop.permute.xlu0 %2931
    %vm2933 = vcmask 523264
    %v2934 = vsel %vm2933, %v2902, %v2904
    %v2935 = vsel %vm2933, %v2906, %v2908
    %v2936 = vsel %vm2933, %v2910, %v2912
    %v2937 = vsel %vm2933, %v2914, %v2916
    %v2938 = vsel %vm2933, %v2918, %v2920
    %v2939 = vsel %vm2933, %v2922, %v2924
    %v2940 = vsel %vm2933, %v2926, %v2928
    %v2941 = vsel %vm2933, %v2930, %v2932
    %v2958 = vsel %vm2933, %v2021, %v2902
    %v2959 = vsel %vm2933, %v2022, %v2906
    %v2960 = vsel %vm2933, %v2023, %v2910
    %v2961 = vsel %vm2933, %v2024, %v2914
    %v2962 = vsel %vm2933, %v2025, %v2918
    %v2963 = vsel %vm2933, %v2026, %v2922
    %v2964 = vsel %vm2933, %v2027, %v2926
    %v2965 = vsel %vm2933, %v2028, %v2930
    %v2966 = vpack.c.bf16 %v1978, %v1977
    %v2967 = vpack.c.bf16 %v2959, %v2958
    %v2968 = vpack.c.bf16 %v2935, %v2934
    %v2969 = vpack.c.bf16 %v1980, %v1979
    %v2970 = vpack.c.bf16 %v2961, %v2960
    %v2971 = vpack.c.bf16 %v2937, %v2936
    %v2972 = vpack.c.bf16 %v1982, %v1981
    %v2973 = vpack.c.bf16 %v2963, %v2962
    %v2974 = vpack.c.bf16 %v2939, %v2938
    %v2975 = vpack.c.bf16 %v1984, %v1983
    %v2976 = vpack.c.bf16 %v2965, %v2964
    %v2977 = vpack.c.bf16 %v2941, %v2940
    %v2978 = vld [vmem:[%s3] sm:$0xf]
    %v2979 = vld [vmem:[%s3 + $0x4] sm:$0xf]
    %v2980 = vld [vmem:[%s3 + $0x8] sm:$0xf]
    %v2981 = vld [vmem:[%s3 + $0xc] sm:$0xf]
    %v2982 = vld [vmem:[%s3 + $0x10] sm:$0xf]
    %v2983 = vld [vmem:[%s3 + $0x14] sm:$0xf]
    %v2984 = vld [vmem:[%s3 + $0x18] sm:$0xf]
    %v2985 = vld [vmem:[%s3 + $0x1c] sm:$0xf]
    %v2986 = vld [vmem:[%s3 + $0x20] sm:$0xf]
    %v2987 = vld [vmem:[%s3 + $0x24] sm:$0xf]
    %v2988 = vld [vmem:[%s3 + $0x28] sm:$0xf]
    %v2989 = vld [vmem:[%s3 + $0x2c] sm:$0xf]
    %v2990 = vld [vmem:[%s3 + $0x30] sm:$0xf]
    %v2991 = vld [vmem:[%s3 + $0x34] sm:$0xf]
    %v2992 = vld [vmem:[%s3 + $0x38] sm:$0xf]
    %v2993 = vld [vmem:[%s3 + $0x3c] sm:$0xf]
    %v2994 = vld [vmem:[%s3 + $0x40] sm:$0xf]
    %v2995 = vld [vmem:[%s3 + $0x44] sm:$0xf]
    %v2996 = vld [vmem:[%s3 + $0x48] sm:$0xf]
    %v2997 = vld [vmem:[%s3 + $0x4c] sm:$0xf]
    %v2998 = vld [vmem:[%s3 + $0x50] sm:$0xf]
    %v2999 = vld [vmem:[%s3 + $0x54] sm:$0xf]
    %v3000 = vld [vmem:[%s3 + $0x58] sm:$0xf]
    %v3001 = vld [vmem:[%s3 + $0x5c] sm:$0xf]
    %v3002 = vld [vmem:[%s3 + $0x60] sm:$0xf]
    %v3003 = vld [vmem:[%s3 + $0x64] sm:$0xf]
    %v3004 = vld [vmem:[%s3 + $0x68] sm:$0xf]
    %v3005 = vld [vmem:[%s3 + $0x6c] sm:$0xf]
    %v3006 = vld [vmem:[%s3 + $0x70] sm:$0xf]
    %v3007 = vld [vmem:[%s3 + $0x74] sm:$0xf]
    %v3008 = vld [vmem:[%s3 + $0x78] sm:$0xf]
    %v3009 = vld [vmem:[%s3 + $0x7c] sm:$0xf]
    %v3010 = vld [vmem:[%s3 + $0x80] sm:$0xf]
    %v3011 = vld [vmem:[%s3 + $0x84] sm:$0xf]
    %v3012 = vld [vmem:[%s3 + $0x88] sm:$0xf]
    %v3013 = vld [vmem:[%s3 + $0x8c] sm:$0xf]
    %v3014 = vld [vmem:[%s3 + $0x90] sm:$0xf]
    %v3015 = vld [vmem:[%s3 + $0x94] sm:$0xf]
    %v3016 = vld [vmem:[%s3 + $0x98] sm:$0xf]
    %v3017 = vld [vmem:[%s3 + $0x9c] sm:$0xf]
    %v3018 = vld [vmem:[%s3 + $0xa0] sm:$0xf]
    %v3019 = vld [vmem:[%s3 + $0xa4] sm:$0xf]
    %v3020 = vld [vmem:[%s3 + $0xa8] sm:$0xf]
    %v3021 = vld [vmem:[%s3 + $0xac] sm:$0xf]
    %v3022 = vld [vmem:[%s3 + $0xb0] sm:$0xf]
    %v3023 = vld [vmem:[%s4] sm:$0x1]
    %v3025 = vlaneseq
    %v3026 = vshrl.u32 %v3025, 7
    %v3027 = vsub.s32 0, %v3026
    %v3028 = vrot.slane %v3023, %v3027
    %v3075 = vunpack.c.l.b16 %v2978
    %v3076 = vunpack.c.l.b16 %v2979
    %v3077 = vunpack.c.l.b16 %v2980
    %v3078 = vunpack.c.l.b16 %v2981
    %v3079 = vunpack.c.l.b16 %v2982
    %v3080 = vunpack.c.l.b16 %v2983
    %v3081 = vunpack.c.l.b16 %v2984
    %v3082 = vunpack.c.l.b16 %v2985
    %v3083 = vunpack.c.l.b16 %v2986
    %v3084 = vunpack.c.l.b16 %v2987
    %v3085 = vunpack.c.l.b16 %v2988
    %v3086 = vunpack.c.l.b16 %v2989
    %v3087 = vunpack.c.l.b16 %v2990
    %v3088 = vunpack.c.l.b16 %v2991
    %v3089 = vunpack.c.l.b16 %v2992
    %v3090 = vunpack.c.l.b16 %v2993
    %v3091 = vunpack.c.l.b16 %v2994
    %v3092 = vunpack.c.l.b16 %v2995
    %v3093 = vunpack.c.l.b16 %v2996
    %v3094 = vunpack.c.l.b16 %v2997
    %v3095 = vunpack.c.l.b16 %v2998
    %v3096 = vunpack.c.l.b16 %v2999
    %v3097 = vunpack.c.l.b16 %v3000
    %v3098 = vunpack.c.l.b16 %v3001
    %v3099 = vunpack.c.l.b16 %v3002
    %v3100 = vunpack.c.l.b16 %v3003
    %v3101 = vunpack.c.l.b16 %v3004
    %v3102 = vunpack.c.l.b16 %v3005
    %v3103 = vunpack.c.l.b16 %v3006
    %v3104 = vunpack.c.l.b16 %v3007
    %v3105 = vunpack.c.l.b16 %v3008
    %v3106 = vunpack.c.l.b16 %v3009
    %v3107 = vunpack.c.l.b16 %v3010
    %v3108 = vunpack.c.l.b16 %v3011
    %v3109 = vunpack.c.l.b16 %v3012
    %v3110 = vunpack.c.l.b16 %v3013
    %v3111 = vunpack.c.l.b16 %v3014
    %v3112 = vunpack.c.l.b16 %v3015
    %v3113 = vunpack.c.l.b16 %v3016
    %v3114 = vunpack.c.l.b16 %v3017
    %v3115 = vunpack.c.l.b16 %v3018
    %v3116 = vunpack.c.l.b16 %v3019
    %v3117 = vunpack.c.l.b16 %v3020
    %v3118 = vunpack.c.l.b16 %v3021
    %v3119 = vunpack.c.l.b16 %v3022
    %v3120 = vpack.c.b16 %v3076, %v3075
    %v3121 = vpack.c.b16 %v3078, %v3077
    %v3122 = vpack.c.b16 %v3080, %v3079
    %v3123 = vpack.c.b16 %v3082, %v3081
    %v3124 = vpack.c.b16 %v3084, %v3083
    %v3125 = vpack.c.b16 %v3086, %v3085
    %v3126 = vpack.c.b16 %v3088, %v3087
    %v3127 = vpack.c.b16 %v3090, %v3089
    %v3128 = vpack.c.b16 %v3092, %v3091
    %v3129 = vpack.c.b16 %v3094, %v3093
    %v3130 = vpack.c.b16 %v3096, %v3095
    %v3131 = vpack.c.b16 %v3098, %v3097
    %v3132 = vpack.c.b16 %v3100, %v3099
    %v3133 = vpack.c.b16 %v3102, %v3101
    %v3134 = vpack.c.b16 %v3104, %v3103
    %v3135 = vpack.c.b16 %v3106, %v3105
    %v3136 = vpack.c.b16 %v3108, %v3107
    %v3137 = vpack.c.b16 %v3110, %v3109
    %v3138 = vpack.c.b16 %v3112, %v3111
    %v3139 = vpack.c.b16 %v3114, %v3113
    %v3140 = vpack.c.b16 %v3116, %v3115
    %v3141 = vpack.c.b16 %v3118, %v3117
    %v3142 = vpack.c.b16 %v3119, %v3119
    %vm3165 = vcmask 850944
    %v3167 = vsel %vm3165, %v2968, 0
    %v3170 = vsel %vm3165, %v2971, 0
    %v3173 = vsel %vm3165, %v2974, 0
    %v3176 = vsel %vm3165, %v2977, 0
    %v3179 = vsel %vm491, %v3142, 0
    %3181 = vmatprep.subr.bf16.mxu0 0
    %3182 = vmatpush1.bf16.msra.mxu0 %v3120
    %3183 = vmatprep.subr.bf16.mxu0 0
    %3184 = vmatpush1.bf16.msra.mxu0 %v3121
    %3185 = vmatprep.subr.bf16.mxu0 0
    %3186 = vmatpush1.bf16.msra.mxu0 %v3122
    %3187 = vmatprep.subr.bf16.mxu0 0
    %3188 = vmatpush1.bf16.msra.mxu0 %v3123
    %3189 = vmatprep.subr.bf16.mxu0 0
    %3190 = vmatpush1.bf16.msra.mxu0 %v3124
    %3191 = vmatprep.subr.bf16.mxu0 0
    %3192 = vmatpush1.bf16.msra.mxu0 %v3125
    %3193 = vmatprep.subr.bf16.mxu0 0
    %3194 = vmatpush1.bf16.msra.mxu0 %v3126
    %3195 = vmatprep.subr.bf16.mxu0 0
    %3196 = vmatpush1.bf16.msra.mxu0 %v3127
    %3197 = vmatprep.subr.bf16.mxu0 0
    %3198 = vmatpush1.bf16.msra.mxu0 %v3128
    %3199 = vmatprep.subr.bf16.mxu0 0
    %3200 = vmatpush1.bf16.msra.mxu0 %v3129
    %3201 = vmatprep.subr.bf16.mxu0 0
    %3202 = vmatpush1.bf16.msra.mxu0 %v3130
    %3203 = vmatprep.subr.bf16.mxu0 0
    %3204 = vmatpush1.bf16.msra.mxu0 %v3131
    %3205 = vmatprep.subr.bf16.mxu0 0
    %3206 = vmatpush1.bf16.msra.mxu0 %v3132
    %3207 = vmatprep.subr.bf16.mxu0 0
    %3208 = vmatpush1.bf16.msra.mxu0 %v3133
    %3209 = vmatprep.subr.bf16.mxu0 0
    %3210 = vmatpush1.bf16.msra.mxu0 %v3134
    %3211 = vmatprep.subr.bf16.mxu0 0
    %3212 = vmatpush1.bf16.msra.mxu0 %v3135
    %3213 = vmatprep.mubr.bf16.mxu0 %v2967
    %3214 = vmatmul.mubr.bf16.gmra.mrb[0].mxu0 %v2966
    %v3215 = vpop.f32.mrb[0].mxu0
    %v3216 = vadd.f32 %v3028, %v3215
    %v3217 = vpop.f32.mrb[0].mxu0
    %v3218 = vpop.f32.mrb[0].mxu0
    %v3219 = vadd.f32 %v3028, %v3218
    %v3220 = vpop.f32.mrb[0].mxu0
    %3221 = vmatprep.mubr.bf16.mxu0 %v2970
    %3222 = vmatmul.mubr.bf16.gmra.mrb[0].mxu0 %v2969
    %v3223 = vpop.f32.mrb[0].mxu0
    %v3224 = vadd.f32 %v3028, %v3223
    %v3225 = vpop.f32.mrb[0].mxu0
    %v3226 = vpop.f32.mrb[0].mxu0
    %v3227 = vadd.f32 %v3028, %v3226
    %v3228 = vpop.f32.mrb[0].mxu0
    %3229 = vmatprep.mubr.bf16.mxu0 %v2973
    %3230 = vmatmul.mubr.bf16.gmra.mrb[0].mxu0 %v2972
    %v3231 = vpop.f32.mrb[0].mxu0
    %v3232 = vadd.f32 %v3028, %v3231
    %v3233 = vpop.f32.mrb[0].mxu0
    %v3234 = vpop.f32.mrb[0].mxu0
    %v3235 = vadd.f32 %v3028, %v3234
    %v3236 = vpop.f32.mrb[0].mxu0
    %3237 = vmatprep.mubr.bf16.mxu0 %v2976
    %3238 = vmatmul.mubr.bf16.gmra.mrb[0].mxu0 %v2975
    %v3239 = vpop.f32.mrb[0].mxu0
    %v3240 = vadd.f32 %v3028, %v3239
    %v3241 = vpop.f32.mrb[0].mxu0
    %v3242 = vpop.f32.mrb[0].mxu0
    %v3243 = vadd.f32 %v3028, %v3242
    %v3244 = vpop.f32.mrb[0].mxu0
    %3245 = vdwg.mxu0
    %3246 = vmatprep.subr.bf16.mxu0 0
    %3247 = vmatpush1.bf16.msra.mxu0 %v3136
    %3248 = vmatprep.subr.bf16.mxu0 0
    %3249 = vmatpush1.bf16.msra.mxu0 %v3137
    %3250 = vmatprep.subr.bf16.mxu0 0
    %3251 = vmatpush1.bf16.msra.mxu0 %v3138
    %3252 = vmatprep.subr.bf16.mxu0 0
    %3253 = vmatpush1.bf16.msra.mxu0 %v3139
    %3254 = vmatprep.subr.bf16.mxu0 0
    %3255 = vmatpush1.bf16.msra.mxu0 %v3140
    %3256 = vmatprep.subr.bf16.mxu0 0
    %3257 = vmatpush1.bf16.msra.mxu0 %v3141
    %3258 = vmatprep.subr.bf16.mxu0 0
    %3259 = vmatpush1.bf16.msra.mxu0 %v3179
    %3260 = vmatprep.subr.bf16.mxu0 0
    %3261 = vmatpush1.bf16.msra.mxu0 0
    %3262 = vmatprep.subr.bf16.mxu0 0
    %3263 = vmatpush1.bf16.msra.mxu0 0
    %3264 = vmatprep.subr.bf16.mxu0 0
    %3265 = vmatpush1.bf16.msra.mxu0 0
    %3266 = vmatprep.subr.bf16.mxu0 0
    %3267 = vmatpush1.bf16.msra.mxu0 0
    %3268 = vmatprep.subr.bf16.mxu0 0
    %3269 = vmatpush1.bf16.msra.mxu0 0
    %3270 = vmatprep.subr.bf16.mxu0 0
    %3271 = vmatpush1.bf16.msra.mxu0 0
    %3272 = vmatprep.subr.bf16.mxu0 0
    %3273 = vmatpush1.bf16.msra.mxu0 0
    %3274 = vmatprep.subr.bf16.mxu0 0
    %3275 = vmatpush1.bf16.msra.mxu0 0
    %3276 = vmatprep.subr.bf16.mxu0 0
    %3277 = vmatpush1.bf16.msra.mxu0 0
    %3278 = vmatprep.mubr.bf16.mxu0 0
    %3279 = vmatmul.mubr.bf16.gmra.mrb[0].mxu0 %v3167
    %v3280 = vpop.f32.mrb[0].mxu0
    %v3281 = vadd.f32 %v3216, %v3280
    %v3282 = vpop.f32.mrb[0].mxu0
    %v3283 = vpop.f32.mrb[0].mxu0
    %v3284 = vadd.f32 %v3219, %v3283
    %v3285 = vpop.f32.mrb[0].mxu0
    %3286 = vmatprep.mubr.bf16.mxu0 0
    %3287 = vmatmul.mubr.bf16.gmra.mrb[0].mxu0 %v3170
    %v3288 = vpop.f32.mrb[0].mxu0
    %v3289 = vadd.f32 %v3224, %v3288
    %v3290 = vpop.f32.mrb[0].mxu0
    %v3291 = vpop.f32.mrb[0].mxu0
    %v3292 = vadd.f32 %v3227, %v3291
    %v3293 = vpop.f32.mrb[0].mxu0
    %3294 = vmatprep.mubr.bf16.mxu0 0
    %3295 = vmatmul.mubr.bf16.gmra.mrb[0].mxu0 %v3173
    %v3296 = vpop.f32.mrb[0].mxu0
    %v3297 = vadd.f32 %v3232, %v3296
    %v3298 = vpop.f32.mrb[0].mxu0
    %v3299 = vpop.f32.mrb[0].mxu0
    %v3300 = vadd.f32 %v3235, %v3299
    %v3301 = vpop.f32.mrb[0].mxu0
    %3302 = vmatprep.mubr.bf16.mxu0 0
    %3303 = vmatmul.mubr.bf16.gmra.mrb[0].mxu0 %v3176
    %v3304 = vpop.f32.mrb[0].mxu0
    %v3305 = vadd.f32 %v3240, %v3304
    %v3306 = vpop.f32.mrb[0].mxu0
    %v3307 = vpop.f32.mrb[0].mxu0
    %v3308 = vadd.f32 %v3243, %v3307
    %v3309 = vpop.f32.mrb[0].mxu0
    %3310 = vdwg.mxu0
    %v3311 = vmax.f32 %v3281, 0.0
    %v3312 = vmax.f32 %v3284, 0.0
    %v3313 = vmax.f32 %v3289, 0.0
    %v3314 = vmax.f32 %v3292, 0.0
    %v3315 = vmax.f32 %v3297, 0.0
    %v3316 = vmax.f32 %v3300, 0.0
    %v3317 = vmax.f32 %v3305, 0.0
    %v3318 = vmax.f32 %v3308, 0.0
    %3327 = vrot.lane.b32.xlu0 %v3311, 64
    %v3328 = vpop.permute.xlu0 %3327
    %3329 = vrot.lane.b32.xlu0 %v3312, 64
    %v3330 = vpop.permute.xlu0 %3329
    %3331 = vrot.lane.b32.xlu0 %v3313, 64
    %v3332 = vpop.permute.xlu0 %3331
    %3333 = vrot.lane.b32.xlu0 %v3314, 64
    %v3334 = vpop.permute.xlu0 %3333
    %3335 = vrot.lane.b32.xlu0 %v3315, 64
    %v3336 = vpop.permute.xlu0 %3335
    %3337 = vrot.lane.b32.xlu0 %v3316, 64
    %v3338 = vpop.permute.xlu0 %3337
    %3339 = vrot.lane.b32.xlu0 %v3317, 64
    %v3340 = vpop.permute.xlu0 %3339
    %3341 = vrot.lane.b32.xlu0 %v3318, 64
    %v3342 = vpop.permute.xlu0 %3341
    %v3351 = vmax.f32 %v3311, %v3328
    %v3352 = vmax.f32 %v3312, %v3330
    %v3353 = vmax.f32 %v3313, %v3332
    %v3354 = vmax.f32 %v3314, %v3334
    %v3355 = vmax.f32 %v3315, %v3336
    %v3356 = vmax.f32 %v3316, %v3338
    %v3357 = vmax.f32 %v3317, %v3340
    %v3358 = vmax.f32 %v3318, %v3342
    %3359 = vst.msk [vmem:[#allocation3] sm:$0xff] %vm2933, %v3351
    %3360 = vst.msk [vmem:[#allocation3 + $0x8] sm:$0xff] %vm2933, %v3352
    %3361 = vst.msk [vmem:[#allocation3 + $0x10] sm:$0xff] %vm2933, %v3353
    %3362 = vst.msk [vmem:[#allocation3 + $0x18] sm:$0xff] %vm2933, %v3354
    %3363 = vst.msk [vmem:[#allocation3 + $0x20] sm:$0xff] %vm2933, %v3355
    %3364 = vst.msk [vmem:[#allocation3 + $0x28] sm:$0xff] %vm2933, %v3356
    %3365 = vst.msk [vmem:[#allocation3 + $0x30] sm:$0xff] %vm2933, %v3357
    %3366 = vst.msk [vmem:[#allocation3 + $0x38] sm:$0xff] %vm2933, %v3358
    %v3367 = vld [vmem:[#allocation3] ss:$2 sm:$0xf]
    %s3368 = scalar_lea.vmem [#allocation3], 8
    %v3369 = vld [vmem:[%s3368] ss:$2 sm:$0xf]
    %s3370 = scalar_lea.vmem [#allocation3], 16
    %v3371 = vld [vmem:[%s3370] ss:$2 sm:$0xf]
    %s3372 = scalar_lea.vmem [#allocation3], 24
    %v3373 = vld [vmem:[%s3372] ss:$2 sm:$0xf]
    %s3374 = scalar_lea.vmem [#allocation3], 32
    %v3375 = vld [vmem:[%s3374] ss:$2 sm:$0xf]
    %s3376 = scalar_lea.vmem [#allocation3], 40
    %v3377 = vld [vmem:[%s3376] ss:$2 sm:$0xf]
    %s3378 = scalar_lea.vmem [#allocation3], 48
    %v3379 = vld [vmem:[%s3378] ss:$2 sm:$0xf]
    %s3380 = scalar_lea.vmem [#allocation3], 56
    %v3381 = vld [vmem:[%s3380] ss:$2 sm:$0xf]
    %s3382 = scalar_lea.vmem [#allocation3], 1
    %v3383 = vld [vmem:[%s3382] ss:$2 sm:$0xf]
    %s3384 = scalar_lea.vmem [#allocation3], 9
    %v3385 = vld [vmem:[%s3384] ss:$2 sm:$0xf]
    %s3386 = scalar_lea.vmem [#allocation3], 17
    %v3387 = vld [vmem:[%s3386] ss:$2 sm:$0xf]
    %s3388 = scalar_lea.vmem [#allocation3], 25
    %v3389 = vld [vmem:[%s3388] ss:$2 sm:$0xf]
    %s3390 = scalar_lea.vmem [#allocation3], 33
    %v3391 = vld [vmem:[%s3390] ss:$2 sm:$0xf]
    %s3392 = scalar_lea.vmem [#allocation3], 41
    %v3393 = vld [vmem:[%s3392] ss:$2 sm:$0xf]
    %s3394 = scalar_lea.vmem [#allocation3], 49
    %v3395 = vld [vmem:[%s3394] ss:$2 sm:$0xf]
    %s3396 = scalar_lea.vmem [#allocation3], 57
    %v3397 = vld [vmem:[%s3396] ss:$2 sm:$0xf]
    %v3398 = vmax.f32 %v3367, %v3383
    %v3399 = vmax.f32 %v3369, %v3385
    %v3400 = vmax.f32 %v3371, %v3387
    %v3401 = vmax.f32 %v3373, %v3389
    %v3402 = vmax.f32 %v3375, %v3391
    %v3403 = vmax.f32 %v3377, %v3393
    %v3404 = vmax.f32 %v3379, %v3395
    %v3405 = vmax.f32 %v3381, %v3397
    %v3414 = vrot.slane %v3399, 7
    %vm3415 = vcmask 1041409
    %v3416 = vsel %vm3415, %v3414, %v3398
    %v3417 = vrot.slane %v3400, 6
    %vm3418 = vcmask 1042434
    %v3419 = vsel %vm3418, %v3417, %v3416
    %v3420 = vrot.slane %v3401, 5
    %vm3421 = vcmask 1043459
    %v3422 = vsel %vm3421, %v3420, %v3419
    %v3423 = vrot.slane %v3402, 4
    %vm3424 = vcmask 1044484
    %v3425 = vsel %vm3424, %v3423, %v3422
    %v3426 = vrot.slane %v3403, 3
    %vm3427 = vcmask 1045509
    %v3428 = vsel %vm3427, %v3426, %v3425
    %v3429 = vrot.slane %v3404, 2
    %vm3430 = vcmask 1046534
    %v3431 = vsel %vm3430, %v3429, %v3428
    %v3432 = vrot.slane %v3405, 1
    %vm3433 = vcmask 1047559
    %v3434 = vsel %vm3433, %v3432, %v3431
    %v3436 = vrot.slane %v3398, 1
    %v3437 = vsel %vm3415, %v3399, %v3436
    %v3438 = vrot.slane %v3400, 7
    %v3439 = vsel %vm3418, %v3438, %v3437
    %v3440 = vrot.slane %v3401, 6
    %v3441 = vsel %vm3421, %v3440, %v3439
    %v3442 = vrot.slane %v3402, 5
    %v3443 = vsel %vm3424, %v3442, %v3441
    %v3444 = vrot.slane %v3403, 4
    %v3445 = vsel %vm3427, %v3444, %v3443
    %v3446 = vrot.slane %v3404, 3
    %v3447 = vsel %vm3430, %v3446, %v3445
    %v3448 = vrot.slane %v3405, 2
    %v3449 = vsel %vm3433, %v3448, %v3447
    %3450 = vrot.lane.b32.xlu0 %v3449, 64
    %v3451 = vpop.permute.xlu0 %3450
    %v3453 = vrot.slane %v3398, 2
    %v3454 = vrot.slane %v3399, 1
    %v3455 = vsel %vm3415, %v3454, %v3453
    %v3456 = vsel %vm3418, %v3400, %v3455
    %v3457 = vrot.slane %v3401, 7
    %v3458 = vsel %vm3421, %v3457, %v3456
    %v3459 = vrot.slane %v3402, 6
    %v3460 = vsel %vm3424, %v3459, %v3458
    %v3461 = vrot.slane %v3403, 5
    %v3462 = vsel %vm3427, %v3461, %v3460
    %v3463 = vrot.slane %v3404, 4
    %v3464 = vsel %vm3430, %v3463, %v3462
    %v3465 = vrot.slane %v3405, 3
    %v3466 = vsel %vm3433, %v3465, %v3464
    %v3468 = vrot.slane %v3398, 3
    %v3469 = vrot.slane %v3399, 2
    %v3470 = vsel %vm3415, %v3469, %v3468
    %v3471 = vrot.slane %v3400, 1
    %v3472 = vsel %vm3418, %v3471, %v3470
    %v3473 = vsel %vm3421, %v3401, %v3472
    %v3474 = vrot.slane %v3402, 7
    %v3475 = vsel %vm3424, %v3474, %v3473
    %v3476 = vrot.slane %v3403, 6
    %v3477 = vsel %vm3427, %v3476, %v3475
    %v3478 = vrot.slane %v3404, 5
    %v3479 = vsel %vm3430, %v3478, %v3477
    %v3480 = vrot.slane %v3405, 4
    %v3481 = vsel %vm3433, %v3480, %v3479
    %3482 = vrot.lane.b32.xlu0 %v3481, 64
    %v3483 = vpop.permute.xlu0 %3482
    %v3485 = vsel %vm2933, %v3434, %v3451
    %v3486 = vsel %vm2933, %v3466, %v3483
    %v3487 = vpack.c.bf16 %v3485, %v3485
    %v3488 = vpack.c.bf16 %v3486, %v3486
    %v3489 = vld [vmem:[%s5] sm:$0xf]
    %v3490 = vld [vmem:[%s5 + $0x4] sm:$0xf]
    %v3491 = vld [vmem:[%s5 + $0x8] sm:$0xf]
    %v3492 = vld [vmem:[%s5 + $0xc] sm:$0xf]
    %v3493 = vld [vmem:[%s5 + $0x10] sm:$0xf]
    %v3494 = vld [vmem:[%s5 + $0x14] sm:$0xf]
    %v3495 = vld [vmem:[%s5 + $0x18] sm:$0xf]
    %v3496 = vld [vmem:[%s5 + $0x1c] sm:$0xf]
    %v3497 = vld [vmem:[%s5 + $0x20] sm:$0xf]
    %v3498 = vld [vmem:[%s5 + $0x24] sm:$0xf]
    %v3499 = vld [vmem:[%s5 + $0x28] sm:$0xf]
    %v3500 = vld [vmem:[%s5 + $0x2c] sm:$0xf]
    %v3501 = vld [vmem:[%s5 + $0x30] sm:$0xf]
    %v3502 = vld [vmem:[%s5 + $0x34] sm:$0xf]
    %v3503 = vld [vmem:[%s5 + $0x38] sm:$0xf]
    %v3504 = vld [vmem:[%s5 + $0x3c] sm:$0xf]
    %v3505 = vld [vmem:[%s5 + $0x40] sm:$0xf]
    %v3506 = vld [vmem:[%s5 + $0x44] sm:$0xf]
    %v3507 = vld [vmem:[%s5 + $0x48] sm:$0xf]
    %v3508 = vld [vmem:[%s5 + $0x4c] sm:$0xf]
    %v3509 = vld [vmem:[%s5 + $0x50] sm:$0xf]
    %v3510 = vld [vmem:[%s5 + $0x54] sm:$0xf]
    %v3511 = vld [vmem:[%s5 + $0x58] sm:$0xf]
    %v3512 = vld [vmem:[%s5 + $0x5c] sm:$0xf]
    %v3513 = vld [vmem:[%s5 + $0x60] sm:$0xf]
    %v3514 = vld [vmem:[%s5 + $0x64] sm:$0xf]
    %v3515 = vld [vmem:[%s5 + $0x68] sm:$0xf]
    %v3516 = vld [vmem:[%s5 + $0x6c] sm:$0xf]
    %v3517 = vld [vmem:[%s5 + $0x70] sm:$0xf]
    %v3518 = vld [vmem:[%s5 + $0x74] sm:$0xf]
    %v3519 = vld [vmem:[%s5 + $0x78] sm:$0xf]
    %v3520 = vld [vmem:[%s5 + $0x7c] sm:$0xf]
    %v3521 = vld [vmem:[%s6] sm:$0x1]
    %v3523 = vlaneseq
    %v3524 = vshrl.u32 %v3523, 7
    %v3525 = vsub.s32 0, %v3524
    %v3526 = vrot.slane %v3521, %v3525
    %v3560 = vunpack.c.l.b16 %v3489
    %v3561 = vunpack.c.l.b16 %v3490
    %v3562 = vunpack.c.l.b16 %v3491
    %v3563 = vunpack.c.l.b16 %v3492
    %v3564 = vunpack.c.l.b16 %v3493
    %v3565 = vunpack.c.l.b16 %v3494
    %v3566 = vunpack.c.l.b16 %v3495
    %v3567 = vunpack.c.l.b16 %v3496
    %v3568 = vunpack.c.l.b16 %v3497
    %v3569 = vunpack.c.l.b16 %v3498
    %v3570 = vunpack.c.l.b16 %v3499
    %v3571 = vunpack.c.l.b16 %v3500
    %v3572 = vunpack.c.l.b16 %v3501
    %v3573 = vunpack.c.l.b16 %v3502
    %v3574 = vunpack.c.l.b16 %v3503
    %v3575 = vunpack.c.l.b16 %v3504
    %v3576 = vunpack.c.l.b16 %v3505
    %v3577 = vunpack.c.l.b16 %v3506
    %v3578 = vunpack.c.l.b16 %v3507
    %v3579 = vunpack.c.l.b16 %v3508
    %v3580 = vunpack.c.l.b16 %v3509
    %v3581 = vunpack.c.l.b16 %v3510
    %v3582 = vunpack.c.l.b16 %v3511
    %v3583 = vunpack.c.l.b16 %v3512
    %v3584 = vunpack.c.l.b16 %v3513
    %v3585 = vunpack.c.l.b16 %v3514
    %v3586 = vunpack.c.l.b16 %v3515
    %v3587 = vunpack.c.l.b16 %v3516
    %v3588 = vunpack.c.l.b16 %v3517
    %v3589 = vunpack.c.l.b16 %v3518
    %v3590 = vunpack.c.l.b16 %v3519
    %v3591 = vunpack.c.l.b16 %v3520
    %v3592 = vpack.c.b16 %v3561, %v3560
    %v3593 = vpack.c.b16 %v3563, %v3562
    %v3594 = vpack.c.b16 %v3565, %v3564
    %v3595 = vpack.c.b16 %v3567, %v3566
    %v3596 = vpack.c.b16 %v3569, %v3568
    %v3597 = vpack.c.b16 %v3571, %v3570
    %v3598 = vpack.c.b16 %v3573, %v3572
    %v3599 = vpack.c.b16 %v3575, %v3574
    %v3600 = vpack.c.b16 %v3577, %v3576
    %v3601 = vpack.c.b16 %v3579, %v3578
    %v3602 = vpack.c.b16 %v3581, %v3580
    %v3603 = vpack.c.b16 %v3583, %v3582
    %v3604 = vpack.c.b16 %v3585, %v3584
    %v3605 = vpack.c.b16 %v3587, %v3586
    %v3606 = vpack.c.b16 %v3589, %v3588
    %v3607 = vpack.c.b16 %v3591, %v3590
    %3624 = vmatprep.subr.bf16.mxu0 0
    %3625 = vmatpush1.bf16.msra.mxu0 %v3592
    %3626 = vmatprep.subr.bf16.mxu0 0
    %3627 = vmatpush1.bf16.msra.mxu0 %v3593
    %3628 = vmatprep.subr.bf16.mxu0 0
    %3629 = vmatpush1.bf16.msra.mxu0 %v3594
    %3630 = vmatprep.subr.bf16.mxu0 0
    %3631 = vmatpush1.bf16.msra.mxu0 %v3595
    %3632 = vmatprep.subr.bf16.mxu0 0
    %3633 = vmatpush1.bf16.msra.mxu0 %v3596
    %3634 = vmatprep.subr.bf16.mxu0 0
    %3635 = vmatpush1.bf16.msra.mxu0 %v3597
    %3636 = vmatprep.subr.bf16.mxu0 0
    %3637 = vmatpush1.bf16.msra.mxu0 %v3598
    %3638 = vmatprep.subr.bf16.mxu0 0
    %3639 = vmatpush1.bf16.msra.mxu0 %v3599
    %3640 = vmatprep.subr.bf16.mxu0 0
    %3641 = vmatpush1.bf16.msra.mxu0 %v3600
    %3642 = vmatprep.subr.bf16.mxu0 0
    %3643 = vmatpush1.bf16.msra.mxu0 %v3601
    %3644 = vmatprep.subr.bf16.mxu0 0
    %3645 = vmatpush1.bf16.msra.mxu0 %v3602
    %3646 = vmatprep.subr.bf16.mxu0 0
    %3647 = vmatpush1.bf16.msra.mxu0 %v3603
    %3648 = vmatprep.subr.bf16.mxu0 0
    %3649 = vmatpush1.bf16.msra.mxu0 %v3604
    %3650 = vmatprep.subr.bf16.mxu0 0
    %3651 = vmatpush1.bf16.msra.mxu0 %v3605
    %3652 = vmatprep.subr.bf16.mxu0 0
    %3653 = vmatpush1.bf16.msra.mxu0 %v3606
    %3654 = vmatprep.subr.bf16.mxu0 0
    %3655 = vmatpush1.bf16.msra.mxu0 %v3607
    %3656 = vmatprep.mubr.bf16.mxu0 %v3488
    %3657 = vmatmul.mubr.bf16.gmra.mrb[0].mxu0 %v3487
    %v3658 = vpop.f32.mrb[0].mxu0
    %v3659 = vadd.f32 %v3526, %v3658
    %v3660 = vpop.f32.mrb[0].mxu0
    %v3661 = vpop.f32.mrb[0].mxu0
    %v3662 = vpop.f32.mrb[0].mxu0
    %3663 = vdwg.mxu0
    %v3664 = vmax.f32 %v3659, 0.0
    %v3665 = vpack.c.bf16 %v3664, %v3664
    %v3666 = vld [vmem:[%s7] sm:$0xf]
    %v3667 = vld [vmem:[%s7 + $0x4] sm:$0xf]
    %v3668 = vld [vmem:[%s7 + $0x8] sm:$0xf]
    %v3669 = vld [vmem:[%s7 + $0xc] sm:$0xf]
    %v3670 = vld [vmem:[%s7 + $0x10] sm:$0xf]
    %v3671 = vld [vmem:[%s7 + $0x14] sm:$0xf]
    %v3672 = vld [vmem:[%s7 + $0x18] sm:$0xf]
    %v3673 = vld [vmem:[%s7 + $0x1c] sm:$0xf]
    %v3674 = vld [vmem:[%s7 + $0x20] sm:$0xf]
    %v3675 = vld [vmem:[%s7 + $0x24] sm:$0xf]
    %v3676 = vld [vmem:[%s7 + $0x28] sm:$0xf]
    %v3677 = vld [vmem:[%s7 + $0x2c] sm:$0xf]
    %v3678 = vld [vmem:[%s7 + $0x30] sm:$0xf]
    %v3679 = vld [vmem:[%s7 + $0x34] sm:$0xf]
    %v3680 = vld [vmem:[%s7 + $0x38] sm:$0xf]
    %v3681 = vld [vmem:[%s7 + $0x3c] sm:$0xf]
    %v3682 = vld [vmem:[%s8] sm:$0x1]
    %v3684 = vlaneseq
    %v3685 = vshrl.u32 %v3684, 7
    %v3686 = vsub.s32 0, %v3685
    %v3687 = vrot.slane %v3682, %v3686
    %v3705 = vunpack.c.l.b16 %v3666
    %v3706 = vunpack.c.l.b16 %v3667
    %v3707 = vunpack.c.l.b16 %v3668
    %v3708 = vunpack.c.l.b16 %v3669
    %v3709 = vunpack.c.l.b16 %v3670
    %v3710 = vunpack.c.l.b16 %v3671
    %v3711 = vunpack.c.l.b16 %v3672
    %v3712 = vunpack.c.l.b16 %v3673
    %v3713 = vunpack.c.l.b16 %v3674
    %v3714 = vunpack.c.l.b16 %v3675
    %v3715 = vunpack.c.l.b16 %v3676
    %v3716 = vunpack.c.l.b16 %v3677
    %v3717 = vunpack.c.l.b16 %v3678
    %v3718 = vunpack.c.l.b16 %v3679
    %v3719 = vunpack.c.l.b16 %v3680
    %v3720 = vunpack.c.l.b16 %v3681
    %v3721 = vpack.c.b16 %v3706, %v3705
    %v3722 = vpack.c.b16 %v3708, %v3707
    %v3723 = vpack.c.b16 %v3710, %v3709
    %v3724 = vpack.c.b16 %v3712, %v3711
    %v3725 = vpack.c.b16 %v3714, %v3713
    %v3726 = vpack.c.b16 %v3716, %v3715
    %v3727 = vpack.c.b16 %v3718, %v3717
    %v3728 = vpack.c.b16 %v3720, %v3719
    %3737 = vmatprep.subr.bf16.mxu0 0
    %3738 = vmatpush1.bf16.msra.mxu0 %v3721
    %3739 = vmatprep.subr.bf16.mxu0 0
    %3740 = vmatpush1.bf16.msra.mxu0 %v3722
    %3741 = vmatprep.subr.bf16.mxu0 0
    %3742 = vmatpush1.bf16.msra.mxu0 %v3723
    %3743 = vmatprep.subr.bf16.mxu0 0
    %3744 = vmatpush1.bf16.msra.mxu0 %v3724
    %3745 = vmatprep.subr.bf16.mxu0 0
    %3746 = vmatpush1.bf16.msra.mxu0 %v3725
    %3747 = vmatprep.subr.bf16.mxu0 0
    %3748 = vmatpush1.bf16.msra.mxu0 %v3726
    %3749 = vmatprep.subr.bf16.mxu0 0
    %3750 = vmatpush1.bf16.msra.mxu0 %v3727
    %3751 = vmatprep.subr.bf16.mxu0 0
    %3752 = vmatpush1.bf16.msra.mxu0 %v3728
    %3753 = vmatprep.subr.bf16.mxu0 0
    %3754 = vmatpush1.bf16.msra.mxu0 0
    %3755 = vmatprep.subr.bf16.mxu0 0
    %3756 = vmatpush1.bf16.msra.mxu0 0
    %3757 = vmatprep.subr.bf16.mxu0 0
    %3758 = vmatpush1.bf16.msra.mxu0 0
    %3759 = vmatprep.subr.bf16.mxu0 0
    %3760 = vmatpush1.bf16.msra.mxu0 0
    %3761 = vmatprep.subr.bf16.mxu0 0
    %3762 = vmatpush1.bf16.msra.mxu0 0
    %3763 = vmatprep.subr.bf16.mxu0 0
    %3764 = vmatpush1.bf16.msra.mxu0 0
    %3765 = vmatprep.subr.bf16.mxu0 0
    %3766 = vmatpush1.bf16.msra.mxu0 0
    %3767 = vmatprep.subr.bf16.mxu0 0
    %3768 = vmatpush1.bf16.msra.mxu0 0
    %3769 = vmatprep.mubr.bf16.mxu0 0
    %3770 = vmatmul.mubr.bf16.gmra.mrb[0].mxu0 %v3665
    %v3771 = vpop.f32.mrb[0].mxu0
    %v3772 = vadd.f32 %v3687, %v3771
    %v3773 = vpop.f32.mrb[0].mxu0
    %v3774 = vpop.f32.mrb[0].mxu0
    %v3775 = vpop.f32.mrb[0].mxu0
    %3776 = vdwg.mxu0
    %v3777 = vmax.f32 %v3772, 0.0
    %v3778 = vpack.c.bf16 %v3777, %v3777
    %v3779 = vld [vmem:[%s9] sm:$0xf]
    %v3780 = vld [vmem:[%s9 + $0x4] sm:$0xf]
    %v3781 = vld [vmem:[%s9 + $0x8] sm:$0xf]
    %v3782 = vld [vmem:[%s9 + $0xc] sm:$0xf]
    %v3783 = vld [vmem:[%s9 + $0x10] sm:$0xf]
    %v3784 = vld [vmem:[%s9 + $0x14] sm:$0xf]
    %v3785 = vld [vmem:[%s9 + $0x18] sm:$0xf]
    %v3786 = vld [vmem:[%s9 + $0x1c] sm:$0xf]
    %v3787 = vld [vmem:[%s9 + $0x20] sm:$0xf]
    %v3788 = vld [vmem:[%s9 + $0x24] sm:$0xf]
    %v3789 = vld [vmem:[%s9 + $0x28] sm:$0xf]
    %v3790 = vld [vmem:[%s9 + $0x2c] sm:$0xf]
    %v3791 = vld [vmem:[%s9 + $0x30] sm:$0xf]
    %v3792 = vld [vmem:[%s9 + $0x34] sm:$0xf]
    %v3793 = vld [vmem:[%s9 + $0x38] sm:$0xf]
    %v3794 = vld [vmem:[%s9 + $0x3c] sm:$0xf]
    %v3795 = vld [vmem:[%s10] sm:$0x1]
    %v3797 = vlaneseq
    %v3798 = vshrl.u32 %v3797, 7
    %v3799 = vsub.s32 0, %v3798
    %v3800 = vrot.slane %v3795, %v3799
    %v3818 = vunpack.c.l.b16 %v3779
    %v3819 = vunpack.c.l.b16 %v3780
    %v3820 = vunpack.c.l.b16 %v3781
    %v3821 = vunpack.c.l.b16 %v3782
    %v3822 = vunpack.c.l.b16 %v3783
    %v3823 = vunpack.c.l.b16 %v3784
    %v3824 = vunpack.c.l.b16 %v3785
    %v3825 = vunpack.c.l.b16 %v3786
    %v3826 = vunpack.c.l.b16 %v3787
    %v3827 = vunpack.c.l.b16 %v3788
    %v3828 = vunpack.c.l.b16 %v3789
    %v3829 = vunpack.c.l.b16 %v3790
    %v3830 = vunpack.c.l.b16 %v3791
    %v3831 = vunpack.c.l.b16 %v3792
    %v3832 = vunpack.c.l.b16 %v3793
    %v3833 = vunpack.c.l.b16 %v3794
    %v3834 = vpack.c.b16 %v3819, %v3818
    %v3835 = vpack.c.b16 %v3821, %v3820
    %v3836 = vpack.c.b16 %v3823, %v3822
    %v3837 = vpack.c.b16 %v3825, %v3824
    %v3838 = vpack.c.b16 %v3827, %v3826
    %v3839 = vpack.c.b16 %v3829, %v3828
    %v3840 = vpack.c.b16 %v3831, %v3830
    %v3841 = vpack.c.b16 %v3833, %v3832
    %3850 = vmatprep.subr.bf16.mxu0 0
    %3851 = vmatpush1.bf16.msra.mxu0 %v3834
    %3852 = vmatprep.subr.bf16.mxu0 0
    %3853 = vmatpush1.bf16.msra.mxu0 %v3835
    %3854 = vmatprep.subr.bf16.mxu0 0
    %3855 = vmatpush1.bf16.msra.mxu0 %v3836
    %3856 = vmatprep.subr.bf16.mxu0 0
    %3857 = vmatpush1.bf16.msra.mxu0 %v3837
    %3858 = vmatprep.subr.bf16.mxu0 0
    %3859 = vmatpush1.bf16.msra.mxu0 %v3838
    %3860 = vmatprep.subr.bf16.mxu0 0
    %3861 = vmatpush1.bf16.msra.mxu0 %v3839
    %3862 = vmatprep.subr.bf16.mxu0 0
    %3863 = vmatpush1.bf16.msra.mxu0 %v3840
    %3864 = vmatprep.subr.bf16.mxu0 0
    %3865 = vmatpush1.bf16.msra.mxu0 %v3841
    %3866 = vmatprep.subr.bf16.mxu0 0
    %3867 = vmatpush1.bf16.msra.mxu0 0
    %3868 = vmatprep.subr.bf16.mxu0 0
    %3869 = vmatpush1.bf16.msra.mxu0 0
    %3870 = vmatprep.subr.bf16.mxu0 0
    %3871 = vmatpush1.bf16.msra.mxu0 0
    %3872 = vmatprep.subr.bf16.mxu0 0
    %3873 = vmatpush1.bf16.msra.mxu0 0
    %3874 = vmatprep.subr.bf16.mxu0 0
    %3875 = vmatpush1.bf16.msra.mxu0 0
    %3876 = vmatprep.subr.bf16.mxu0 0
    %3877 = vmatpush1.bf16.msra.mxu0 0
    %3878 = vmatprep.subr.bf16.mxu0 0
    %3879 = vmatpush1.bf16.msra.mxu0 0
    %3880 = vmatprep.subr.bf16.mxu0 0
    %3881 = vmatpush1.bf16.msra.mxu0 0
    %3882 = vmatprep.mubr.bf16.mxu0 0
    %3883 = vmatmul.mubr.bf16.gmra.mrb[0].mxu0 %v3778
    %v3884 = vpop.f32.mrb[0].mxu0
    %v3885 = vadd.f32 %v3800, %v3884
    %v3886 = vpop.f32.mrb[0].mxu0
    %v3887 = vpop.f32.mrb[0].mxu0
    %v3888 = vpop.f32.mrb[0].mxu0
    %3889 = vdwg.mxu0
    %v3890 = vmax.f32 %v3885, 0.0
    %vm3891 = vcmask 80896
    %3892 = vst.msk [vmem:[#allocation4] sm:$0xff] %vm3891, %v3890
    // Predicated region
    $region46: #{tpu_custom_call.1} parent=1 // pred_check
      _
    $region47: #{tpu_custom_call.1} parent=1 // pred_check_branch
      %3894 = sbr.rel (0) target = $region49
    $region48: #{tpu_custom_call.1} parent=1 // pred_region
      %s3896 = ssub.s32 128, 128
      %3897 = vsyncadd [#allocation5], %s3896
      %s3899 = sshll.u32 [#allocation4], 4
      %s3900 = int_to_ptr.vmem [resolvable:$true] %s3899
      %3902 = dma.vmem_to_hbm [thread:$0]  %s3900, 128, %s11, [#allocation5]
    $region49: #{tpu_custom_call.1} parent=1 // pred_fallthru
      _
    // Predicated region
    $region50: #{tpu_custom_call.1} parent=1 // pred_check
      _
    $region51: #{tpu_custom_call.1} parent=1 // pred_check_branch
      %3904 = sbr.rel (0) target = $region53
    $region52: #{tpu_custom_call.1} parent=1 // pred_region
      %3905 = dma.done [#allocation5], 128
    $region53: #{tpu_custom_call.1} parent=1 // pred_fallthru
      _
    %3906 = vsyncpa [#allocation5], 1

</llo_original>
